<compile_context>
chip_gen: v7x
topology: tpu7x:2x2x1
jax: 0.10.0
libtpu: 0.0.40
codegen_flags: <defaults>
</compile_context>

<pallas_src>
import jax
import jax.numpy as jnp
from jax.experimental import pallas as pl
from jax.experimental.pallas import tpu as pltpu

N_POP = 8.6e6          # self.N
INV_N = 1.0 / N_POP
HL_DIM = 32            # hl_dim
HL_NUM = 3             # hl_num (hidden Linear+Tanh blocks)
N_NETS = 5             # order: R, gamma, I0, kint, tint
HEAD_PAD = 8           # pad 5 head rows to 8 (one sublane group)


# ---------------------------------------------------------------------------
# Fused kernel: packed MLP heads -> softplus -> SIR params -> RK4 (3/8 rule)
# ---------------------------------------------------------------------------
def _network_kernel(x_ref, w0_ref, b0_ref, wh_ref, bh_ref, wlt_ref, blt_ref,
                    t_ref, out_ref):
    # x_ref:   (bt, D_in)           batch tile on sublanes
    # w0_ref:  (D_in, 5H)           packed first layer
    # wh_ref:  (HL_NUM, 5H, 5H)     block-diagonal hidden layers
    # wlt_ref: (HEAD_PAD, 5H)       transposed, block-structured output layer
    # t_ref:   (T, 1)               time grid
    # out_ref: (T, bt)              dI, time on sublanes / batch on lanes
    x = x_ref[...]

    # ---- fused 5-net MLP: 1 + HL_NUM + 1 lane-dense matmuls --------------
    h = jnp.tanh(jnp.dot(x, w0_ref[...], preferred_element_type=jnp.float32)
                 + b0_ref[...])                                  # (bt, 5H)
    for l in range(HL_NUM):                                      # static unroll
        h = jnp.tanh(jnp.dot(h, wh_ref[l], preferred_element_type=jnp.float32)
                     + bh_ref[l])
    # Heads with batch on lanes: (HEAD_PAD, bt); rows 0..4 = R,gamma,I0,kint,tint
    heads = (jnp.dot(wlt_ref[...], h.T, preferred_element_type=jnp.float32)
             + blt_ref[...])

    def softplus(v):  # torch.nn.Softplus (beta=1, threshold=20)
        return jnp.where(v > 20.0, v,
                         jnp.log(1.0 + jnp.exp(jnp.minimum(v, 20.0))))

    rnum  = softplus(heads[0:1, :]) + 1.5                        # (1, bt)
    gamma = softplus(heads[1:2, :]) + 0.1
    i0    = softplus(heads[2:3, :])
    kint  = softplus(heads[3:4, :])
    tint  = softplus(heads[4:5, :]) + 20.0

    beta0 = rnum * gamma
    dbeta = beta0 * (kint - 1.0)                                 # beta1 - beta0
    s0 = N_POP - i0

    # ---- beta(t) at every RK4 evaluation point, hoisted off the loop ----
    times = t_ref[...]                                           # (T, 1)
    n_steps = times.shape[0] - 1
    t0 = times[:-1, :]                                           # (T-1, 1)
    t1 = times[1:, :]
    dt = t1 - t0                                                 # (T-1, 1)
    third = 1.0 / 3.0
    inv_db = 4.0 / 7.0                                           # 1 / (7/4)

    def beta_over_n(t):      # (T-1, 1) x (1, bt) -> (T-1, bt), pre-scaled by 1/N
        # logistic exactly as the module defines it: 1 / (1 + exp(-z))
        z = (t - tint) * inv_db
        return ((1.0 / (1.0 + jnp.exp(-z))) * dbeta + beta0) * INV_N

    bA = beta_over_n(t0)                                         # at t0
    bB = beta_over_n(t0 + dt * third)                            # at t0 + dt/3
    bC = beta_over_n(t0 + 2.0 * dt * third)                      # at t0 + 2dt/3
    bD = beta_over_n(t1)                                         # at t1

    # Hoisted broadcasts (JAX does not CSE broadcast_in_dim inside the loop).
    dtB  = jnp.broadcast_to(dt, bA.shape)                        # (T-1, bt)
    dt3B = dtB * third
    dt8B = dtB * 0.125

    def rhs(bn, s_, i_):     # bn = beta(t)/N
        flow = bn * s_ * i_
        rec = gamma * i_
        return -flow, flow - rec

    out_ref[0:1, :] = jnp.zeros_like(s0)                         # dI[0] = 0
    S, I = s0, i0
    for s in range(n_steps):                                     # static unroll
        dts, dt3, dt8 = dtB[s:s + 1, :], dt3B[s:s + 1, :], dt8B[s:s + 1, :]
        # 3/8-rule RK4 (torchdiffeq fixed-grid 'rk4' / rk4_alt_step_func)
        k1s, k1i = rhs(bA[s:s + 1, :], S, I)
        k2s, k2i = rhs(bB[s:s + 1, :], S + dt3 * k1s, I + dt3 * k1i)
        k3s, k3i = rhs(bC[s:s + 1, :], S + dts * k2s - dt3 * k1s,
                                       I + dts * k2i - dt3 * k1i)
        k4s, k4i = rhs(bD[s:s + 1, :], S + dts * (k1s - k2s + k3s),
                                       I + dts * (k1i - k2i + k3i))
        S1 = S + (k1s + 3.0 * (k2s + k3s) + k4s) * dt8
        I1 = I + (k1i + 3.0 * (k2i + k3i) + k4i) * dt8
        out_ref[s + 1:s + 2, :] = S - S1                         # dI[s+1]
        S, I = S1, I1


# ---------------------------------------------------------------------------
# Parameter init: per-net Xavier-uniform weights / zero biases (as the torch
# module), then packed into lane-dense fused weights.
# ---------------------------------------------------------------------------
def init_params(key, input_size, hl_dim=HL_DIM, hl_num=HL_NUM, n_nets=N_NETS):
    k0, k1, k2 = jax.random.split(key, 3)

    def xavier(k, shape, fan_in, fan_out):
        a = float(jnp.sqrt(6.0 / (fan_in + fan_out)))
        return jax.random.uniform(k, shape, jnp.float32, -a, a)

    w0 = xavier(k0, (n_nets, input_size, hl_dim), input_size, hl_dim)
    wh = xavier(k1, (n_nets, hl_num, hl_dim, hl_dim), hl_dim, hl_dim)
    wl = xavier(k2, (n_nets, hl_dim, 1), hl_dim, 1)

    h5 = n_nets * hl_dim
    # Packed first layer: (D_in, 5H)
    w0p = jnp.concatenate([w0[n] for n in range(n_nets)], axis=1)
    b0p = jnp.zeros((1, h5), jnp.float32)
    # Packed hidden layers: block-diagonal (HL_NUM, 5H, 5H)
    whp = jnp.zeros((hl_num, h5, h5), jnp.float32)
    for n in range(n_nets):
        whp = whp.at[:, n * hl_dim:(n + 1) * hl_dim,
                     n * hl_dim:(n + 1) * hl_dim].set(wh[n])
    bhp = jnp.zeros((hl_num, 1, h5), jnp.float32)
    # Packed output layer, stored transposed: (HEAD_PAD, 5H); rows 5..7 zero.
    wlt = jnp.zeros((HEAD_PAD, h5), jnp.float32)
    for n in range(n_nets):
        wlt = wlt.at[n, n * hl_dim:(n + 1) * hl_dim].set(wl[n, :, 0])
    blt = jnp.zeros((HEAD_PAD, 1), jnp.float32)
    return (w0p, b0p, whp, bhp, wlt, blt)


# ---------------------------------------------------------------------------
# Wrapper: single fused pallas_call, batch tiled on the lane axis.
# ---------------------------------------------------------------------------
def network_forward(data, times, params, output_size):
    b, d_in = data.shape
    t = times.shape[0]
    w0p, b0p, whp, bhp, wlt, blt = params
    times2 = times.astype(jnp.float32).reshape(t, 1)

    # Batch tile: full batch for small B; 128-lane chunks for large B so the
    # "parallel" grid axis can shard across v7x's two TensorCores.
    bt = 128 if (b >= 256 and b % 128 == 0) else b
    grid = (b // bt,)

    def full(shape):
        nd = len(shape)
        return pl.BlockSpec(shape, lambda i, _nd=nd: (0,) * _nd)

    di = pl.pallas_call(
        _network_kernel,
        out_shape=jax.ShapeDtypeStruct((t, b), jnp.float32),
        grid=grid,
        in_specs=[
            pl.BlockSpec((bt, d_in), lambda i: (i, 0)),   # x: tile batch
            full(w0p.shape), full(b0p.shape),
            full(whp.shape), full(bhp.shape),
            full(wlt.shape), full(blt.shape),
            full(times2.shape),
        ],
        out_specs=pl.BlockSpec((t, bt), lambda i: (0, i)),
        compiler_params=pltpu.CompilerParams(
            dimension_semantics=("parallel",)),
    )(data, w0p, b0p, whp, bhp, wlt, blt, times2)

    return di.reshape((-1, output_size))   # matches torch: dI.reshape((-1, output_size))


if __name__ == "__main__":
    key = jax.random.PRNGKey(0)
    B, D_IN, T = 8, 4, 16
    OUTPUT_SIZE = B                  # so (T, B).reshape(-1, output_size) is well-defined

    kx, kp = jax.random.split(key)
    data = jax.random.normal(kx, (B, D_IN), jnp.float32)
    times = jnp.linspace(0.0, 30.0, T).astype(jnp.float32)
    params = init_params(kp, D_IN)

    out = network_forward(data, times, params, OUTPUT_SIZE)
    out = jax.block_until_ready(out)
    assert out.shape == (T, B), out.shape
    assert bool(jnp.all(jnp.isfinite(out)))
    print("KERNEL_OK")
</pallas_src>

<mosaic_0001>
module attributes {stable_mosaic.version = 11 : i64} {
  func.func @_network_kernel(%arg0: i32, %arg1: memref<8x4xf32, #tpu.memory_space<vmem>>, %arg2: memref<4x160xf32, #tpu.memory_space<vmem>>, %arg3: memref<1x160xf32, #tpu.memory_space<vmem>>, %arg4: memref<3x160x160xf32, #tpu.memory_space<vmem>>, %arg5: memref<3x1x160xf32, #tpu.memory_space<vmem>>, %arg6: memref<8x160xf32, #tpu.memory_space<vmem>>, %arg7: memref<8x1xf32, #tpu.memory_space<vmem>>, %arg8: memref<16x1xf32, #tpu.memory_space<vmem>>, %arg9: memref<16x8xf32, #tpu.memory_space<vmem>>) attributes {dimension_semantics = [#tpu.dimension_semantics<parallel>], iteration_bounds = array<i64: 1>, scalar_prefetch = 0 : i64, scratch_operands = 0 : i64, tpu.core_type = #tpu.core_type<tc>, window_params = [{transform_indices = @transform_0, window_bounds = array<i64: 8, 4>}, {pipeline_mode = #tpu.pipeline_mode<synchronous>, transform_indices = @transform_1, window_bounds = array<i64: 4, 160>}, {pipeline_mode = #tpu.pipeline_mode<synchronous>, transform_indices = @transform_2, window_bounds = array<i64: 1, 160>}, {pipeline_mode = #tpu.pipeline_mode<synchronous>, transform_indices = @transform_3, window_bounds = array<i64: 3, 160, 160>}, {pipeline_mode = #tpu.pipeline_mode<synchronous>, transform_indices = @transform_4, window_bounds = array<i64: 3, 1, 160>}, {pipeline_mode = #tpu.pipeline_mode<synchronous>, transform_indices = @transform_5, window_bounds = array<i64: 8, 160>}, {pipeline_mode = #tpu.pipeline_mode<synchronous>, transform_indices = @transform_6, window_bounds = array<i64: 8, 1>}, {pipeline_mode = #tpu.pipeline_mode<synchronous>, transform_indices = @transform_7, window_bounds = array<i64: 16, 1>}, {transform_indices = @transform_8, window_bounds = array<i64: 16, 8>}]} {
    %c0 = arith.constant 0 : index
    %c0_0 = arith.constant 0 : index
    %0 = vector.load %arg1[%c0, %c0_0] : memref<8x4xf32, #tpu.memory_space<vmem>>, vector<8x4xf32>
    %c0_1 = arith.constant 0 : index
    %c0_2 = arith.constant 0 : index
    %1 = vector.load %arg2[%c0_1, %c0_2] : memref<4x160xf32, #tpu.memory_space<vmem>>, vector<4x160xf32>
    %cst = arith.constant dense<0.000000e+00> : vector<8x160xf32>
    %2 = tpu.matmul %0, %1, %cst {dimension_numbers = #tpu.dot_dimension_numbers<[1], [0], [0], [1], [0, 0, 1, 1], [], []>} : vector<8x4xf32>, vector<4x160xf32>, vector<8x160xf32> -> vector<8x160xf32>
    %c0_3 = arith.constant 0 : index
    %c0_4 = arith.constant 0 : index
    %3 = vector.load %arg3[%c0_3, %c0_4] : memref<1x160xf32, #tpu.memory_space<vmem>>, vector<1x160xf32>
    %4 = vector.broadcast %3 : vector<1x160xf32> to vector<8x160xf32>
    %5 = arith.addf %2, %4 : vector<8x160xf32>
    %6 = math.tanh %5 : vector<8x160xf32>
    %c0_5 = arith.constant 0 : index
    %c0_6 = arith.constant 0 : index
    %c0_7 = arith.constant 0 : index
    %7 = vector.load %arg4[%c0_5, %c0_6, %c0_7] : memref<3x160x160xf32, #tpu.memory_space<vmem>>, vector<1x160x160xf32>
    %8 = vector.shape_cast %7 : vector<1x160x160xf32> to vector<160x160xf32>
    %cst_8 = arith.constant dense<0.000000e+00> : vector<8x160xf32>
    %9 = tpu.matmul %6, %8, %cst_8 {dimension_numbers = #tpu.dot_dimension_numbers<[1], [0], [0], [1], [0, 0, 1, 1], [], []>} : vector<8x160xf32>, vector<160x160xf32>, vector<8x160xf32> -> vector<8x160xf32>
    %c0_9 = arith.constant 0 : index
    %c0_10 = arith.constant 0 : index
    %c0_11 = arith.constant 0 : index
    %10 = vector.load %arg5[%c0_9, %c0_10, %c0_11] : memref<3x1x160xf32, #tpu.memory_space<vmem>>, vector<1x1x160xf32>
    %11 = vector.shape_cast %10 : vector<1x1x160xf32> to vector<1x160xf32>
    %12 = vector.broadcast %11 : vector<1x160xf32> to vector<8x160xf32>
    %13 = arith.addf %9, %12 : vector<8x160xf32>
    %14 = math.tanh %13 : vector<8x160xf32>
    %c1 = arith.constant 1 : index
    %c0_12 = arith.constant 0 : index
    %c0_13 = arith.constant 0 : index
    %15 = vector.load %arg4[%c1, %c0_12, %c0_13] : memref<3x160x160xf32, #tpu.memory_space<vmem>>, vector<1x160x160xf32>
    %16 = vector.shape_cast %15 : vector<1x160x160xf32> to vector<160x160xf32>
    %cst_14 = arith.constant dense<0.000000e+00> : vector<8x160xf32>
    %17 = tpu.matmul %14, %16, %cst_14 {dimension_numbers = #tpu.dot_dimension_numbers<[1], [0], [0], [1], [0, 0, 1, 1], [], []>} : vector<8x160xf32>, vector<160x160xf32>, vector<8x160xf32> -> vector<8x160xf32>
    %c1_15 = arith.constant 1 : index
    %c0_16 = arith.constant 0 : index
    %c0_17 = arith.constant 0 : index
    %18 = vector.load %arg5[%c1_15, %c0_16, %c0_17] : memref<3x1x160xf32, #tpu.memory_space<vmem>>, vector<1x1x160xf32>
    %19 = vector.shape_cast %18 : vector<1x1x160xf32> to vector<1x160xf32>
    %20 = vector.broadcast %19 : vector<1x160xf32> to vector<8x160xf32>
    %21 = arith.addf %17, %20 : vector<8x160xf32>
    %22 = math.tanh %21 : vector<8x160xf32>
    %c2 = arith.constant 2 : index
    %c0_18 = arith.constant 0 : index
    %c0_19 = arith.constant 0 : index
    %23 = vector.load %arg4[%c2, %c0_18, %c0_19] : memref<3x160x160xf32, #tpu.memory_space<vmem>>, vector<1x160x160xf32>
    %24 = vector.shape_cast %23 : vector<1x160x160xf32> to vector<160x160xf32>
    %cst_20 = arith.constant dense<0.000000e+00> : vector<8x160xf32>
    %25 = tpu.matmul %22, %24, %cst_20 {dimension_numbers = #tpu.dot_dimension_numbers<[1], [0], [0], [1], [0, 0, 1, 1], [], []>} : vector<8x160xf32>, vector<160x160xf32>, vector<8x160xf32> -> vector<8x160xf32>
    %c2_21 = arith.constant 2 : index
    %c0_22 = arith.constant 0 : index
    %c0_23 = arith.constant 0 : index
    %26 = vector.load %arg5[%c2_21, %c0_22, %c0_23] : memref<3x1x160xf32, #tpu.memory_space<vmem>>, vector<1x1x160xf32>
    %27 = vector.shape_cast %26 : vector<1x1x160xf32> to vector<1x160xf32>
    %28 = vector.broadcast %27 : vector<1x160xf32> to vector<8x160xf32>
    %29 = arith.addf %25, %28 : vector<8x160xf32>
    %30 = math.tanh %29 : vector<8x160xf32>
    %c0_24 = arith.constant 0 : index
    %c0_25 = arith.constant 0 : index
    %31 = vector.load %arg6[%c0_24, %c0_25] : memref<8x160xf32, #tpu.memory_space<vmem>>, vector<8x160xf32>
    %32 = tpu.transpose %30, [1, 0] : vector<8x160xf32> -> vector<160x8xf32>
    %cst_26 = arith.constant dense<0.000000e+00> : vector<8x8xf32>
    %33 = tpu.matmul %31, %32, %cst_26 {dimension_numbers = #tpu.dot_dimension_numbers<[1], [0], [0], [1], [0, 0, 1, 1], [], []>} : vector<8x160xf32>, vector<160x8xf32>, vector<8x8xf32> -> vector<8x8xf32>
    %c0_27 = arith.constant 0 : index
    %c0_28 = arith.constant 0 : index
    %34 = vector.load %arg7[%c0_27, %c0_28] : memref<8x1xf32, #tpu.memory_space<vmem>>, vector<8x1xf32>
    %35 = vector.broadcast %34 : vector<8x1xf32> to vector<8x8xf32>
    %36 = arith.addf %33, %35 : vector<8x8xf32>
    %37 = vector.extract_strided_slice %36 {offsets = [0, 0], sizes = [1, 8], strides = [1, 1]} : vector<8x8xf32> to vector<1x8xf32>
    %cst_29 = arith.constant 2.000000e+01 : f32
    %38 = vector.broadcast %cst_29 : f32 to vector<1x8xf32>
    %39 = arith.cmpf ogt, %37, %38 : vector<1x8xf32>
    %cst_30 = arith.constant 2.000000e+01 : f32
    %40 = vector.broadcast %cst_30 : f32 to vector<1x8xf32>
    %41 = arith.minimumf %37, %40 : vector<1x8xf32>
    %42 = math.exp %41 : vector<1x8xf32>
    %cst_31 = arith.constant 1.000000e+00 : f32
    %43 = vector.broadcast %cst_31 : f32 to vector<1x8xf32>
    %44 = arith.addf %43, %42 : vector<1x8xf32>
    %45 = math.log %44 : vector<1x8xf32>
    %46 = arith.select %39, %37, %45 : vector<1x8xi1>, vector<1x8xf32>
    %cst_32 = arith.constant 1.500000e+00 : f32
    %47 = vector.broadcast %cst_32 : f32 to vector<1x8xf32>
    %48 = arith.addf %46, %47 : vector<1x8xf32>
    %49 = vector.extract_strided_slice %36 {offsets = [1, 0], sizes = [1, 8], strides = [1, 1]} : vector<8x8xf32> to vector<1x8xf32>
    %cst_33 = arith.constant 2.000000e+01 : f32
    %50 = vector.broadcast %cst_33 : f32 to vector<1x8xf32>
    %51 = arith.cmpf ogt, %49, %50 : vector<1x8xf32>
    %cst_34 = arith.constant 2.000000e+01 : f32
    %52 = vector.broadcast %cst_34 : f32 to vector<1x8xf32>
    %53 = arith.minimumf %49, %52 : vector<1x8xf32>
    %54 = math.exp %53 : vector<1x8xf32>
    %cst_35 = arith.constant 1.000000e+00 : f32
    %55 = vector.broadcast %cst_35 : f32 to vector<1x8xf32>
    %56 = arith.addf %55, %54 : vector<1x8xf32>
    %57 = math.log %56 : vector<1x8xf32>
    %58 = arith.select %51, %49, %57 : vector<1x8xi1>, vector<1x8xf32>
    %cst_36 = arith.constant 1.000000e-01 : f32
    %59 = vector.broadcast %cst_36 : f32 to vector<1x8xf32>
    %60 = arith.addf %58, %59 : vector<1x8xf32>
    %61 = vector.extract_strided_slice %36 {offsets = [2, 0], sizes = [1, 8], strides = [1, 1]} : vector<8x8xf32> to vector<1x8xf32>
    %cst_37 = arith.constant 2.000000e+01 : f32
    %62 = vector.broadcast %cst_37 : f32 to vector<1x8xf32>
    %63 = arith.cmpf ogt, %61, %62 : vector<1x8xf32>
    %cst_38 = arith.constant 2.000000e+01 : f32
    %64 = vector.broadcast %cst_38 : f32 to vector<1x8xf32>
    %65 = arith.minimumf %61, %64 : vector<1x8xf32>
    %66 = math.exp %65 : vector<1x8xf32>
    %cst_39 = arith.constant 1.000000e+00 : f32
    %67 = vector.broadcast %cst_39 : f32 to vector<1x8xf32>
    %68 = arith.addf %67, %66 : vector<1x8xf32>
    %69 = math.log %68 : vector<1x8xf32>
    %70 = arith.select %63, %61, %69 : vector<1x8xi1>, vector<1x8xf32>
    %71 = vector.extract_strided_slice %36 {offsets = [3, 0], sizes = [1, 8], strides = [1, 1]} : vector<8x8xf32> to vector<1x8xf32>
    %cst_40 = arith.constant 2.000000e+01 : f32
    %72 = vector.broadcast %cst_40 : f32 to vector<1x8xf32>
    %73 = arith.cmpf ogt, %71, %72 : vector<1x8xf32>
    %cst_41 = arith.constant 2.000000e+01 : f32
    %74 = vector.broadcast %cst_41 : f32 to vector<1x8xf32>
    %75 = arith.minimumf %71, %74 : vector<1x8xf32>
    %76 = math.exp %75 : vector<1x8xf32>
    %cst_42 = arith.constant 1.000000e+00 : f32
    %77 = vector.broadcast %cst_42 : f32 to vector<1x8xf32>
    %78 = arith.addf %77, %76 : vector<1x8xf32>
    %79 = math.log %78 : vector<1x8xf32>
    %80 = arith.select %73, %71, %79 : vector<1x8xi1>, vector<1x8xf32>
    %81 = vector.extract_strided_slice %36 {offsets = [4, 0], sizes = [1, 8], strides = [1, 1]} : vector<8x8xf32> to vector<1x8xf32>
    %cst_43 = arith.constant 2.000000e+01 : f32
    %82 = vector.broadcast %cst_43 : f32 to vector<1x8xf32>
    %83 = arith.cmpf ogt, %81, %82 : vector<1x8xf32>
    %cst_44 = arith.constant 2.000000e+01 : f32
    %84 = vector.broadcast %cst_44 : f32 to vector<1x8xf32>
    %85 = arith.minimumf %81, %84 : vector<1x8xf32>
    %86 = math.exp %85 : vector<1x8xf32>
    %cst_45 = arith.constant 1.000000e+00 : f32
    %87 = vector.broadcast %cst_45 : f32 to vector<1x8xf32>
    %88 = arith.addf %87, %86 : vector<1x8xf32>
    %89 = math.log %88 : vector<1x8xf32>
    %90 = arith.select %83, %81, %89 : vector<1x8xi1>, vector<1x8xf32>
    %cst_46 = arith.constant 2.000000e+01 : f32
    %91 = vector.broadcast %cst_46 : f32 to vector<1x8xf32>
    %92 = arith.addf %90, %91 : vector<1x8xf32>
    %93 = arith.mulf %48, %60 : vector<1x8xf32>
    %cst_47 = arith.constant 1.000000e+00 : f32
    %94 = vector.broadcast %cst_47 : f32 to vector<1x8xf32>
    %95 = arith.subf %80, %94 : vector<1x8xf32>
    %96 = arith.mulf %93, %95 : vector<1x8xf32>
    %cst_48 = arith.constant 8.600000e+06 : f32
    %97 = vector.broadcast %cst_48 : f32 to vector<1x8xf32>
    %98 = arith.subf %97, %70 : vector<1x8xf32>
    %c0_49 = arith.constant 0 : index
    %c0_50 = arith.constant 0 : index
    %99 = vector.load %arg8[%c0_49, %c0_50] : memref<16x1xf32, #tpu.memory_space<vmem>>, vector<16x1xf32>
    %100 = vector.extract_strided_slice %99 {offsets = [0, 0], sizes = [15, 1], strides = [1, 1]} : vector<16x1xf32> to vector<15x1xf32>
    %101 = vector.extract_strided_slice %99 {offsets = [1, 0], sizes = [15, 1], strides = [1, 1]} : vector<16x1xf32> to vector<15x1xf32>
    %102 = arith.subf %101, %100 : vector<15x1xf32>
    %103 = vector.broadcast %100 : vector<15x1xf32> to vector<15x8xf32>
    %104 = vector.broadcast %92 : vector<1x8xf32> to vector<15x8xf32>
    %105 = arith.subf %103, %104 : vector<15x8xf32>
    %cst_51 = arith.constant 0.571428597 : f32
    %106 = vector.broadcast %cst_51 : f32 to vector<15x8xf32>
    %107 = arith.mulf %105, %106 : vector<15x8xf32>
    %cst_52 = arith.constant 0.000000e+00 : f32
    %108 = vector.broadcast %cst_52 : f32 to vector<15x8xf32>
    %109 = arith.subf %108, %107 : vector<15x8xf32>
    %110 = math.exp %109 : vector<15x8xf32>
    %cst_53 = arith.constant 1.000000e+00 : f32
    %111 = vector.broadcast %cst_53 : f32 to vector<15x8xf32>
    %112 = arith.addf %111, %110 : vector<15x8xf32>
    %cst_54 = arith.constant 1.000000e+00 : f32
    %113 = vector.broadcast %cst_54 : f32 to vector<15x8xf32>
    %114 = arith.divf %113, %112 : vector<15x8xf32>
    %115 = vector.broadcast %96 : vector<1x8xf32> to vector<15x8xf32>
    %116 = arith.mulf %114, %115 : vector<15x8xf32>
    %117 = vector.broadcast %93 : vector<1x8xf32> to vector<15x8xf32>
    %118 = arith.addf %116, %117 : vector<15x8xf32>
    %cst_55 = arith.constant 1.16279068E-7 : f32
    %119 = vector.broadcast %cst_55 : f32 to vector<15x8xf32>
    %120 = arith.mulf %118, %119 : vector<15x8xf32>
    %cst_56 = arith.constant 0.333333343 : f32
    %121 = vector.broadcast %cst_56 : f32 to vector<15x1xf32>
    %122 = arith.mulf %102, %121 : vector<15x1xf32>
    %123 = arith.addf %100, %122 : vector<15x1xf32>
    %124 = vector.broadcast %123 : vector<15x1xf32> to vector<15x8xf32>
    %125 = vector.broadcast %92 : vector<1x8xf32> to vector<15x8xf32>
    %126 = arith.subf %124, %125 : vector<15x8xf32>
    %cst_57 = arith.constant 0.571428597 : f32
    %127 = vector.broadcast %cst_57 : f32 to vector<15x8xf32>
    %128 = arith.mulf %126, %127 : vector<15x8xf32>
    %cst_58 = arith.constant 0.000000e+00 : f32
    %129 = vector.broadcast %cst_58 : f32 to vector<15x8xf32>
    %130 = arith.subf %129, %128 : vector<15x8xf32>
    %131 = math.exp %130 : vector<15x8xf32>
    %cst_59 = arith.constant 1.000000e+00 : f32
    %132 = vector.broadcast %cst_59 : f32 to vector<15x8xf32>
    %133 = arith.addf %132, %131 : vector<15x8xf32>
    %cst_60 = arith.constant 1.000000e+00 : f32
    %134 = vector.broadcast %cst_60 : f32 to vector<15x8xf32>
    %135 = arith.divf %134, %133 : vector<15x8xf32>
    %136 = vector.broadcast %96 : vector<1x8xf32> to vector<15x8xf32>
    %137 = arith.mulf %135, %136 : vector<15x8xf32>
    %138 = vector.broadcast %93 : vector<1x8xf32> to vector<15x8xf32>
    %139 = arith.addf %137, %138 : vector<15x8xf32>
    %cst_61 = arith.constant 1.16279068E-7 : f32
    %140 = vector.broadcast %cst_61 : f32 to vector<15x8xf32>
    %141 = arith.mulf %139, %140 : vector<15x8xf32>
    %cst_62 = arith.constant 2.000000e+00 : f32
    %142 = vector.broadcast %cst_62 : f32 to vector<15x1xf32>
    %143 = arith.mulf %142, %102 : vector<15x1xf32>
    %cst_63 = arith.constant 0.333333343 : f32
    %144 = vector.broadcast %cst_63 : f32 to vector<15x1xf32>
    %145 = arith.mulf %143, %144 : vector<15x1xf32>
    %146 = arith.addf %100, %145 : vector<15x1xf32>
    %147 = vector.broadcast %146 : vector<15x1xf32> to vector<15x8xf32>
    %148 = vector.broadcast %92 : vector<1x8xf32> to vector<15x8xf32>
    %149 = arith.subf %147, %148 : vector<15x8xf32>
    %cst_64 = arith.constant 0.571428597 : f32
    %150 = vector.broadcast %cst_64 : f32 to vector<15x8xf32>
    %151 = arith.mulf %149, %150 : vector<15x8xf32>
    %cst_65 = arith.constant 0.000000e+00 : f32
    %152 = vector.broadcast %cst_65 : f32 to vector<15x8xf32>
    %153 = arith.subf %152, %151 : vector<15x8xf32>
    %154 = math.exp %153 : vector<15x8xf32>
    %cst_66 = arith.constant 1.000000e+00 : f32
    %155 = vector.broadcast %cst_66 : f32 to vector<15x8xf32>
    %156 = arith.addf %155, %154 : vector<15x8xf32>
    %cst_67 = arith.constant 1.000000e+00 : f32
    %157 = vector.broadcast %cst_67 : f32 to vector<15x8xf32>
    %158 = arith.divf %157, %156 : vector<15x8xf32>
    %159 = vector.broadcast %96 : vector<1x8xf32> to vector<15x8xf32>
    %160 = arith.mulf %158, %159 : vector<15x8xf32>
    %161 = vector.broadcast %93 : vector<1x8xf32> to vector<15x8xf32>
    %162 = arith.addf %160, %161 : vector<15x8xf32>
    %cst_68 = arith.constant 1.16279068E-7 : f32
    %163 = vector.broadcast %cst_68 : f32 to vector<15x8xf32>
    %164 = arith.mulf %162, %163 : vector<15x8xf32>
    %165 = vector.broadcast %101 : vector<15x1xf32> to vector<15x8xf32>
    %166 = vector.broadcast %92 : vector<1x8xf32> to vector<15x8xf32>
    %167 = arith.subf %165, %166 : vector<15x8xf32>
    %cst_69 = arith.constant 0.571428597 : f32
    %168 = vector.broadcast %cst_69 : f32 to vector<15x8xf32>
    %169 = arith.mulf %167, %168 : vector<15x8xf32>
    %cst_70 = arith.constant 0.000000e+00 : f32
    %170 = vector.broadcast %cst_70 : f32 to vector<15x8xf32>
    %171 = arith.subf %170, %169 : vector<15x8xf32>
    %172 = math.exp %171 : vector<15x8xf32>
    %cst_71 = arith.constant 1.000000e+00 : f32
    %173 = vector.broadcast %cst_71 : f32 to vector<15x8xf32>
    %174 = arith.addf %173, %172 : vector<15x8xf32>
    %cst_72 = arith.constant 1.000000e+00 : f32
    %175 = vector.broadcast %cst_72 : f32 to vector<15x8xf32>
    %176 = arith.divf %175, %174 : vector<15x8xf32>
    %177 = vector.broadcast %96 : vector<1x8xf32> to vector<15x8xf32>
    %178 = arith.mulf %176, %177 : vector<15x8xf32>
    %179 = vector.broadcast %93 : vector<1x8xf32> to vector<15x8xf32>
    %180 = arith.addf %178, %179 : vector<15x8xf32>
    %cst_73 = arith.constant 1.16279068E-7 : f32
    %181 = vector.broadcast %cst_73 : f32 to vector<15x8xf32>
    %182 = arith.mulf %180, %181 : vector<15x8xf32>
    %183 = vector.shape_cast %102 : vector<15x1xf32> to vector<15x1xf32>
    %184 = vector.broadcast %183 : vector<15x1xf32> to vector<15x8xf32>
    %cst_74 = arith.constant 0.333333343 : f32
    %185 = vector.broadcast %cst_74 : f32 to vector<15x8xf32>
    %186 = arith.mulf %184, %185 : vector<15x8xf32>
    %cst_75 = arith.constant 1.250000e-01 : f32
    %187 = vector.broadcast %cst_75 : f32 to vector<15x8xf32>
    %188 = arith.mulf %184, %187 : vector<15x8xf32>
    %cst_76 = arith.constant 0.000000e+00 : f32
    %189 = vector.broadcast %cst_76 : f32 to vector<1x8xf32>
    %c0_77 = arith.constant 0 : index
    %c0_78 = arith.constant 0 : index
    %190 = vector.load %arg9[%c0_77, %c0_78] : memref<16x8xf32, #tpu.memory_space<vmem>>, vector<1x8xf32>
    tpu.vector_store %arg9[%c0_77, %c0_78], %189 {strides = array<i32>} : memref<16x8xf32, #tpu.memory_space<vmem>>, vector<1x8xf32>,
    %191 = vector.extract_strided_slice %184 {offsets = [0, 0], sizes = [1, 8], strides = [1, 1]} : vector<15x8xf32> to vector<1x8xf32>
    %192 = vector.extract_strided_slice %186 {offsets = [0, 0], sizes = [1, 8], strides = [1, 1]} : vector<15x8xf32> to vector<1x8xf32>
    %193 = vector.extract_strided_slice %188 {offsets = [0, 0], sizes = [1, 8], strides = [1, 1]} : vector<15x8xf32> to vector<1x8xf32>
    %194 = vector.extract_strided_slice %120 {offsets = [0, 0], sizes = [1, 8], strides = [1, 1]} : vector<15x8xf32> to vector<1x8xf32>
    %195 = arith.mulf %194, %98 : vector<1x8xf32>
    %196 = arith.mulf %195, %70 : vector<1x8xf32>
    %197 = arith.mulf %60, %70 : vector<1x8xf32>
    %cst_79 = arith.constant 0.000000e+00 : f32
    %198 = vector.broadcast %cst_79 : f32 to vector<1x8xf32>
    %199 = arith.subf %198, %196 : vector<1x8xf32>
    %200 = arith.subf %196, %197 : vector<1x8xf32>
    %201 = vector.extract_strided_slice %141 {offsets = [0, 0], sizes = [1, 8], strides = [1, 1]} : vector<15x8xf32> to vector<1x8xf32>
    %202 = arith.mulf %192, %199 : vector<1x8xf32>
    %203 = arith.addf %98, %202 : vector<1x8xf32>
    %204 = arith.mulf %192, %200 : vector<1x8xf32>
    %205 = arith.addf %70, %204 : vector<1x8xf32>
    %206 = arith.mulf %201, %203 : vector<1x8xf32>
    %207 = arith.mulf %206, %205 : vector<1x8xf32>
    %208 = arith.mulf %60, %205 : vector<1x8xf32>
    %cst_80 = arith.constant 0.000000e+00 : f32
    %209 = vector.broadcast %cst_80 : f32 to vector<1x8xf32>
    %210 = arith.subf %209, %207 : vector<1x8xf32>
    %211 = arith.subf %207, %208 : vector<1x8xf32>
    %212 = vector.extract_strided_slice %164 {offsets = [0, 0], sizes = [1, 8], strides = [1, 1]} : vector<15x8xf32> to vector<1x8xf32>
    %213 = arith.mulf %191, %210 : vector<1x8xf32>
    %214 = arith.addf %98, %213 : vector<1x8xf32>
    %215 = arith.mulf %192, %199 : vector<1x8xf32>
    %216 = arith.subf %214, %215 : vector<1x8xf32>
    %217 = arith.mulf %191, %211 : vector<1x8xf32>
    %218 = arith.addf %70, %217 : vector<1x8xf32>
    %219 = arith.mulf %192, %200 : vector<1x8xf32>
    %220 = arith.subf %218, %219 : vector<1x8xf32>
    %221 = arith.mulf %212, %216 : vector<1x8xf32>
    %222 = arith.mulf %221, %220 : vector<1x8xf32>
    %223 = arith.mulf %60, %220 : vector<1x8xf32>
    %cst_81 = arith.constant 0.000000e+00 : f32
    %224 = vector.broadcast %cst_81 : f32 to vector<1x8xf32>
    %225 = arith.subf %224, %222 : vector<1x8xf32>
    %226 = arith.subf %222, %223 : vector<1x8xf32>
    %227 = vector.extract_strided_slice %182 {offsets = [0, 0], sizes = [1, 8], strides = [1, 1]} : vector<15x8xf32> to vector<1x8xf32>
    %228 = arith.subf %199, %210 : vector<1x8xf32>
    %229 = arith.addf %228, %225 : vector<1x8xf32>
    %230 = arith.mulf %191, %229 : vector<1x8xf32>
    %231 = arith.addf %98, %230 : vector<1x8xf32>
    %232 = arith.subf %200, %211 : vector<1x8xf32>
    %233 = arith.addf %232, %226 : vector<1x8xf32>
    %234 = arith.mulf %191, %233 : vector<1x8xf32>
    %235 = arith.addf %70, %234 : vector<1x8xf32>
    %236 = arith.mulf %227, %231 : vector<1x8xf32>
    %237 = arith.mulf %236, %235 : vector<1x8xf32>
    %238 = arith.mulf %60, %235 : vector<1x8xf32>
    %cst_82 = arith.constant 0.000000e+00 : f32
    %239 = vector.broadcast %cst_82 : f32 to vector<1x8xf32>
    %240 = arith.subf %239, %237 : vector<1x8xf32>
    %241 = arith.subf %237, %238 : vector<1x8xf32>
    %242 = arith.addf %210, %225 : vector<1x8xf32>
    %cst_83 = arith.constant 3.000000e+00 : f32
    %243 = vector.broadcast %cst_83 : f32 to vector<1x8xf32>
    %244 = arith.mulf %243, %242 : vector<1x8xf32>
    %245 = arith.addf %199, %244 : vector<1x8xf32>
    %246 = arith.addf %245, %240 : vector<1x8xf32>
    %247 = arith.mulf %246, %193 : vector<1x8xf32>
    %248 = arith.addf %98, %247 : vector<1x8xf32>
    %249 = arith.addf %211, %226 : vector<1x8xf32>
    %cst_84 = arith.constant 3.000000e+00 : f32
    %250 = vector.broadcast %cst_84 : f32 to vector<1x8xf32>
    %251 = arith.mulf %250, %249 : vector<1x8xf32>
    %252 = arith.addf %200, %251 : vector<1x8xf32>
    %253 = arith.addf %252, %241 : vector<1x8xf32>
    %254 = arith.mulf %253, %193 : vector<1x8xf32>
    %255 = arith.addf %70, %254 : vector<1x8xf32>
    %256 = arith.subf %98, %248 : vector<1x8xf32>
    %c1_85 = arith.constant 1 : index
    %c0_86 = arith.constant 0 : index
    %257 = vector.load %arg9[%c1_85, %c0_86] : memref<16x8xf32, #tpu.memory_space<vmem>>, vector<1x8xf32>
    tpu.vector_store %arg9[%c1_85, %c0_86], %256 {strides = array<i32>} : memref<16x8xf32, #tpu.memory_space<vmem>>, vector<1x8xf32>,
    %258 = vector.extract_strided_slice %184 {offsets = [1, 0], sizes = [1, 8], strides = [1, 1]} : vector<15x8xf32> to vector<1x8xf32>
    %259 = vector.extract_strided_slice %186 {offsets = [1, 0], sizes = [1, 8], strides = [1, 1]} : vector<15x8xf32> to vector<1x8xf32>
    %260 = vector.extract_strided_slice %188 {offsets = [1, 0], sizes = [1, 8], strides = [1, 1]} : vector<15x8xf32> to vector<1x8xf32>
    %261 = vector.extract_strided_slice %120 {offsets = [1, 0], sizes = [1, 8], strides = [1, 1]} : vector<15x8xf32> to vector<1x8xf32>
    %262 = arith.mulf %261, %248 : vector<1x8xf32>
    %263 = arith.mulf %262, %255 : vector<1x8xf32>
    %264 = arith.mulf %60, %255 : vector<1x8xf32>
    %cst_87 = arith.constant 0.000000e+00 : f32
    %265 = vector.broadcast %cst_87 : f32 to vector<1x8xf32>
    %266 = arith.subf %265, %263 : vector<1x8xf32>
    %267 = arith.subf %263, %264 : vector<1x8xf32>
    %268 = vector.extract_strided_slice %141 {offsets = [1, 0], sizes = [1, 8], strides = [1, 1]} : vector<15x8xf32> to vector<1x8xf32>
    %269 = arith.mulf %259, %266 : vector<1x8xf32>
    %270 = arith.addf %248, %269 : vector<1x8xf32>
    %271 = arith.mulf %259, %267 : vector<1x8xf32>
    %272 = arith.addf %255, %271 : vector<1x8xf32>
    %273 = arith.mulf %268, %270 : vector<1x8xf32>
    %274 = arith.mulf %273, %272 : vector<1x8xf32>
    %275 = arith.mulf %60, %272 : vector<1x8xf32>
    %cst_88 = arith.constant 0.000000e+00 : f32
    %276 = vector.broadcast %cst_88 : f32 to vector<1x8xf32>
    %277 = arith.subf %276, %274 : vector<1x8xf32>
    %278 = arith.subf %274, %275 : vector<1x8xf32>
    %279 = vector.extract_strided_slice %164 {offsets = [1, 0], sizes = [1, 8], strides = [1, 1]} : vector<15x8xf32> to vector<1x8xf32>
    %280 = arith.mulf %258, %277 : vector<1x8xf32>
    %281 = arith.addf %248, %280 : vector<1x8xf32>
    %282 = arith.mulf %259, %266 : vector<1x8xf32>
    %283 = arith.subf %281, %282 : vector<1x8xf32>
    %284 = arith.mulf %258, %278 : vector<1x8xf32>
    %285 = arith.addf %255, %284 : vector<1x8xf32>
    %286 = arith.mulf %259, %267 : vector<1x8xf32>
    %287 = arith.subf %285, %286 : vector<1x8xf32>
    %288 = arith.mulf %279, %283 : vector<1x8xf32>
    %289 = arith.mulf %288, %287 : vector<1x8xf32>
    %290 = arith.mulf %60, %287 : vector<1x8xf32>
    %cst_89 = arith.constant 0.000000e+00 : f32
    %291 = vector.broadcast %cst_89 : f32 to vector<1x8xf32>
    %292 = arith.subf %291, %289 : vector<1x8xf32>
    %293 = arith.subf %289, %290 : vector<1x8xf32>
    %294 = vector.extract_strided_slice %182 {offsets = [1, 0], sizes = [1, 8], strides = [1, 1]} : vector<15x8xf32> to vector<1x8xf32>
    %295 = arith.subf %266, %277 : vector<1x8xf32>
    %296 = arith.addf %295, %292 : vector<1x8xf32>
    %297 = arith.mulf %258, %296 : vector<1x8xf32>
    %298 = arith.addf %248, %297 : vector<1x8xf32>
    %299 = arith.subf %267, %278 : vector<1x8xf32>
    %300 = arith.addf %299, %293 : vector<1x8xf32>
    %301 = arith.mulf %258, %300 : vector<1x8xf32>
    %302 = arith.addf %255, %301 : vector<1x8xf32>
    %303 = arith.mulf %294, %298 : vector<1x8xf32>
    %304 = arith.mulf %303, %302 : vector<1x8xf32>
    %305 = arith.mulf %60, %302 : vector<1x8xf32>
    %cst_90 = arith.constant 0.000000e+00 : f32
    %306 = vector.broadcast %cst_90 : f32 to vector<1x8xf32>
    %307 = arith.subf %306, %304 : vector<1x8xf32>
    %308 = arith.subf %304, %305 : vector<1x8xf32>
    %309 = arith.addf %277, %292 : vector<1x8xf32>
    %cst_91 = arith.constant 3.000000e+00 : f32
    %310 = vector.broadcast %cst_91 : f32 to vector<1x8xf32>
    %311 = arith.mulf %310, %309 : vector<1x8xf32>
    %312 = arith.addf %266, %311 : vector<1x8xf32>
    %313 = arith.addf %312, %307 : vector<1x8xf32>
    %314 = arith.mulf %313, %260 : vector<1x8xf32>
    %315 = arith.addf %248, %314 : vector<1x8xf32>
    %316 = arith.addf %278, %293 : vector<1x8xf32>
    %cst_92 = arith.constant 3.000000e+00 : f32
    %317 = vector.broadcast %cst_92 : f32 to vector<1x8xf32>
    %318 = arith.mulf %317, %316 : vector<1x8xf32>
    %319 = arith.addf %267, %318 : vector<1x8xf32>
    %320 = arith.addf %319, %308 : vector<1x8xf32>
    %321 = arith.mulf %320, %260 : vector<1x8xf32>
    %322 = arith.addf %255, %321 : vector<1x8xf32>
    %323 = arith.subf %248, %315 : vector<1x8xf32>
    %c2_93 = arith.constant 2 : index
    %c0_94 = arith.constant 0 : index
    %324 = vector.load %arg9[%c2_93, %c0_94] : memref<16x8xf32, #tpu.memory_space<vmem>>, vector<1x8xf32>
    tpu.vector_store %arg9[%c2_93, %c0_94], %323 {strides = array<i32>} : memref<16x8xf32, #tpu.memory_space<vmem>>, vector<1x8xf32>,
    %325 = vector.extract_strided_slice %184 {offsets = [2, 0], sizes = [1, 8], strides = [1, 1]} : vector<15x8xf32> to vector<1x8xf32>
    %326 = vector.extract_strided_slice %186 {offsets = [2, 0], sizes = [1, 8], strides = [1, 1]} : vector<15x8xf32> to vector<1x8xf32>
    %327 = vector.extract_strided_slice %188 {offsets = [2, 0], sizes = [1, 8], strides = [1, 1]} : vector<15x8xf32> to vector<1x8xf32>
    %328 = vector.extract_strided_slice %120 {offsets = [2, 0], sizes = [1, 8], strides = [1, 1]} : vector<15x8xf32> to vector<1x8xf32>
    %329 = arith.mulf %328, %315 : vector<1x8xf32>
    %330 = arith.mulf %329, %322 : vector<1x8xf32>
    %331 = arith.mulf %60, %322 : vector<1x8xf32>
    %cst_95 = arith.constant 0.000000e+00 : f32
    %332 = vector.broadcast %cst_95 : f32 to vector<1x8xf32>
    %333 = arith.subf %332, %330 : vector<1x8xf32>
    %334 = arith.subf %330, %331 : vector<1x8xf32>
    %335 = vector.extract_strided_slice %141 {offsets = [2, 0], sizes = [1, 8], strides = [1, 1]} : vector<15x8xf32> to vector<1x8xf32>
    %336 = arith.mulf %326, %333 : vector<1x8xf32>
    %337 = arith.addf %315, %336 : vector<1x8xf32>
    %338 = arith.mulf %326, %334 : vector<1x8xf32>
    %339 = arith.addf %322, %338 : vector<1x8xf32>
    %340 = arith.mulf %335, %337 : vector<1x8xf32>
    %341 = arith.mulf %340, %339 : vector<1x8xf32>
    %342 = arith.mulf %60, %339 : vector<1x8xf32>
    %cst_96 = arith.constant 0.000000e+00 : f32
    %343 = vector.broadcast %cst_96 : f32 to vector<1x8xf32>
    %344 = arith.subf %343, %341 : vector<1x8xf32>
    %345 = arith.subf %341, %342 : vector<1x8xf32>
    %346 = vector.extract_strided_slice %164 {offsets = [2, 0], sizes = [1, 8], strides = [1, 1]} : vector<15x8xf32> to vector<1x8xf32>
    %347 = arith.mulf %325, %344 : vector<1x8xf32>
    %348 = arith.addf %315, %347 : vector<1x8xf32>
    %349 = arith.mulf %326, %333 : vector<1x8xf32>
    %350 = arith.subf %348, %349 : vector<1x8xf32>
    %351 = arith.mulf %325, %345 : vector<1x8xf32>
    %352 = arith.addf %322, %351 : vector<1x8xf32>
    %353 = arith.mulf %326, %334 : vector<1x8xf32>
    %354 = arith.subf %352, %353 : vector<1x8xf32>
    %355 = arith.mulf %346, %350 : vector<1x8xf32>
    %356 = arith.mulf %355, %354 : vector<1x8xf32>
    %357 = arith.mulf %60, %354 : vector<1x8xf32>
    %cst_97 = arith.constant 0.000000e+00 : f32
    %358 = vector.broadcast %cst_97 : f32 to vector<1x8xf32>
    %359 = arith.subf %358, %356 : vector<1x8xf32>
    %360 = arith.subf %356, %357 : vector<1x8xf32>
    %361 = vector.extract_strided_slice %182 {offsets = [2, 0], sizes = [1, 8], strides = [1, 1]} : vector<15x8xf32> to vector<1x8xf32>
    %362 = arith.subf %333, %344 : vector<1x8xf32>
    %363 = arith.addf %362, %359 : vector<1x8xf32>
    %364 = arith.mulf %325, %363 : vector<1x8xf32>
    %365 = arith.addf %315, %364 : vector<1x8xf32>
    %366 = arith.subf %334, %345 : vector<1x8xf32>
    %367 = arith.addf %366, %360 : vector<1x8xf32>
    %368 = arith.mulf %325, %367 : vector<1x8xf32>
    %369 = arith.addf %322, %368 : vector<1x8xf32>
    %370 = arith.mulf %361, %365 : vector<1x8xf32>
    %371 = arith.mulf %370, %369 : vector<1x8xf32>
    %372 = arith.mulf %60, %369 : vector<1x8xf32>
    %cst_98 = arith.constant 0.000000e+00 : f32
    %373 = vector.broadcast %cst_98 : f32 to vector<1x8xf32>
    %374 = arith.subf %373, %371 : vector<1x8xf32>
    %375 = arith.subf %371, %372 : vector<1x8xf32>
    %376 = arith.addf %344, %359 : vector<1x8xf32>
    %cst_99 = arith.constant 3.000000e+00 : f32
    %377 = vector.broadcast %cst_99 : f32 to vector<1x8xf32>
    %378 = arith.mulf %377, %376 : vector<1x8xf32>
    %379 = arith.addf %333, %378 : vector<1x8xf32>
    %380 = arith.addf %379, %374 : vector<1x8xf32>
    %381 = arith.mulf %380, %327 : vector<1x8xf32>
    %382 = arith.addf %315, %381 : vector<1x8xf32>
    %383 = arith.addf %345, %360 : vector<1x8xf32>
    %cst_100 = arith.constant 3.000000e+00 : f32
    %384 = vector.broadcast %cst_100 : f32 to vector<1x8xf32>
    %385 = arith.mulf %384, %383 : vector<1x8xf32>
    %386 = arith.addf %334, %385 : vector<1x8xf32>
    %387 = arith.addf %386, %375 : vector<1x8xf32>
    %388 = arith.mulf %387, %327 : vector<1x8xf32>
    %389 = arith.addf %322, %388 : vector<1x8xf32>
    %390 = arith.subf %315, %382 : vector<1x8xf32>
    %c3 = arith.constant 3 : index
    %c0_101 = arith.constant 0 : index
    %391 = vector.load %arg9[%c3, %c0_101] : memref<16x8xf32, #tpu.memory_space<vmem>>, vector<1x8xf32>
    tpu.vector_store %arg9[%c3, %c0_101], %390 {strides = array<i32>} : memref<16x8xf32, #tpu.memory_space<vmem>>, vector<1x8xf32>,
    %392 = vector.extract_strided_slice %184 {offsets = [3, 0], sizes = [1, 8], strides = [1, 1]} : vector<15x8xf32> to vector<1x8xf32>
    %393 = vector.extract_strided_slice %186 {offsets = [3, 0], sizes = [1, 8], strides = [1, 1]} : vector<15x8xf32> to vector<1x8xf32>
    %394 = vector.extract_strided_slice %188 {offsets = [3, 0], sizes = [1, 8], strides = [1, 1]} : vector<15x8xf32> to vector<1x8xf32>
    %395 = vector.extract_strided_slice %120 {offsets = [3, 0], sizes = [1, 8], strides = [1, 1]} : vector<15x8xf32> to vector<1x8xf32>
    %396 = arith.mulf %395, %382 : vector<1x8xf32>
    %397 = arith.mulf %396, %389 : vector<1x8xf32>
    %398 = arith.mulf %60, %389 : vector<1x8xf32>
    %cst_102 = arith.constant 0.000000e+00 : f32
    %399 = vector.broadcast %cst_102 : f32 to vector<1x8xf32>
    %400 = arith.subf %399, %397 : vector<1x8xf32>
    %401 = arith.subf %397, %398 : vector<1x8xf32>
    %402 = vector.extract_strided_slice %141 {offsets = [3, 0], sizes = [1, 8], strides = [1, 1]} : vector<15x8xf32> to vector<1x8xf32>
    %403 = arith.mulf %393, %400 : vector<1x8xf32>
    %404 = arith.addf %382, %403 : vector<1x8xf32>
    %405 = arith.mulf %393, %401 : vector<1x8xf32>
    %406 = arith.addf %389, %405 : vector<1x8xf32>
    %407 = arith.mulf %402, %404 : vector<1x8xf32>
    %408 = arith.mulf %407, %406 : vector<1x8xf32>
    %409 = arith.mulf %60, %406 : vector<1x8xf32>
    %cst_103 = arith.constant 0.000000e+00 : f32
    %410 = vector.broadcast %cst_103 : f32 to vector<1x8xf32>
    %411 = arith.subf %410, %408 : vector<1x8xf32>
    %412 = arith.subf %408, %409 : vector<1x8xf32>
    %413 = vector.extract_strided_slice %164 {offsets = [3, 0], sizes = [1, 8], strides = [1, 1]} : vector<15x8xf32> to vector<1x8xf32>
    %414 = arith.mulf %392, %411 : vector<1x8xf32>
    %415 = arith.addf %382, %414 : vector<1x8xf32>
    %416 = arith.mulf %393, %400 : vector<1x8xf32>
    %417 = arith.subf %415, %416 : vector<1x8xf32>
    %418 = arith.mulf %392, %412 : vector<1x8xf32>
    %419 = arith.addf %389, %418 : vector<1x8xf32>
    %420 = arith.mulf %393, %401 : vector<1x8xf32>
    %421 = arith.subf %419, %420 : vector<1x8xf32>
    %422 = arith.mulf %413, %417 : vector<1x8xf32>
    %423 = arith.mulf %422, %421 : vector<1x8xf32>
    %424 = arith.mulf %60, %421 : vector<1x8xf32>
    %cst_104 = arith.constant 0.000000e+00 : f32
    %425 = vector.broadcast %cst_104 : f32 to vector<1x8xf32>
    %426 = arith.subf %425, %423 : vector<1x8xf32>
    %427 = arith.subf %423, %424 : vector<1x8xf32>
    %428 = vector.extract_strided_slice %182 {offsets = [3, 0], sizes = [1, 8], strides = [1, 1]} : vector<15x8xf32> to vector<1x8xf32>
    %429 = arith.subf %400, %411 : vector<1x8xf32>
    %430 = arith.addf %429, %426 : vector<1x8xf32>
    %431 = arith.mulf %392, %430 : vector<1x8xf32>
    %432 = arith.addf %382, %431 : vector<1x8xf32>
    %433 = arith.subf %401, %412 : vector<1x8xf32>
    %434 = arith.addf %433, %427 : vector<1x8xf32>
    %435 = arith.mulf %392, %434 : vector<1x8xf32>
    %436 = arith.addf %389, %435 : vector<1x8xf32>
    %437 = arith.mulf %428, %432 : vector<1x8xf32>
    %438 = arith.mulf %437, %436 : vector<1x8xf32>
    %439 = arith.mulf %60, %436 : vector<1x8xf32>
    %cst_105 = arith.constant 0.000000e+00 : f32
    %440 = vector.broadcast %cst_105 : f32 to vector<1x8xf32>
    %441 = arith.subf %440, %438 : vector<1x8xf32>
    %442 = arith.subf %438, %439 : vector<1x8xf32>
    %443 = arith.addf %411, %426 : vector<1x8xf32>
    %cst_106 = arith.constant 3.000000e+00 : f32
    %444 = vector.broadcast %cst_106 : f32 to vector<1x8xf32>
    %445 = arith.mulf %444, %443 : vector<1x8xf32>
    %446 = arith.addf %400, %445 : vector<1x8xf32>
    %447 = arith.addf %446, %441 : vector<1x8xf32>
    %448 = arith.mulf %447, %394 : vector<1x8xf32>
    %449 = arith.addf %382, %448 : vector<1x8xf32>
    %450 = arith.addf %412, %427 : vector<1x8xf32>
    %cst_107 = arith.constant 3.000000e+00 : f32
    %451 = vector.broadcast %cst_107 : f32 to vector<1x8xf32>
    %452 = arith.mulf %451, %450 : vector<1x8xf32>
    %453 = arith.addf %401, %452 : vector<1x8xf32>
    %454 = arith.addf %453, %442 : vector<1x8xf32>
    %455 = arith.mulf %454, %394 : vector<1x8xf32>
    %456 = arith.addf %389, %455 : vector<1x8xf32>
    %457 = arith.subf %382, %449 : vector<1x8xf32>
    %c4 = arith.constant 4 : index
    %c0_108 = arith.constant 0 : index
    %458 = vector.load %arg9[%c4, %c0_108] : memref<16x8xf32, #tpu.memory_space<vmem>>, vector<1x8xf32>
    tpu.vector_store %arg9[%c4, %c0_108], %457 {strides = array<i32>} : memref<16x8xf32, #tpu.memory_space<vmem>>, vector<1x8xf32>,
    %459 = vector.extract_strided_slice %184 {offsets = [4, 0], sizes = [1, 8], strides = [1, 1]} : vector<15x8xf32> to vector<1x8xf32>
    %460 = vector.extract_strided_slice %186 {offsets = [4, 0], sizes = [1, 8], strides = [1, 1]} : vector<15x8xf32> to vector<1x8xf32>
    %461 = vector.extract_strided_slice %188 {offsets = [4, 0], sizes = [1, 8], strides = [1, 1]} : vector<15x8xf32> to vector<1x8xf32>
    %462 = vector.extract_strided_slice %120 {offsets = [4, 0], sizes = [1, 8], strides = [1, 1]} : vector<15x8xf32> to vector<1x8xf32>
    %463 = arith.mulf %462, %449 : vector<1x8xf32>
    %464 = arith.mulf %463, %456 : vector<1x8xf32>
    %465 = arith.mulf %60, %456 : vector<1x8xf32>
    %cst_109 = arith.constant 0.000000e+00 : f32
    %466 = vector.broadcast %cst_109 : f32 to vector<1x8xf32>
    %467 = arith.subf %466, %464 : vector<1x8xf32>
    %468 = arith.subf %464, %465 : vector<1x8xf32>
    %469 = vector.extract_strided_slice %141 {offsets = [4, 0], sizes = [1, 8], strides = [1, 1]} : vector<15x8xf32> to vector<1x8xf32>
    %470 = arith.mulf %460, %467 : vector<1x8xf32>
    %471 = arith.addf %449, %470 : vector<1x8xf32>
    %472 = arith.mulf %460, %468 : vector<1x8xf32>
    %473 = arith.addf %456, %472 : vector<1x8xf32>
    %474 = arith.mulf %469, %471 : vector<1x8xf32>
    %475 = arith.mulf %474, %473 : vector<1x8xf32>
    %476 = arith.mulf %60, %473 : vector<1x8xf32>
    %cst_110 = arith.constant 0.000000e+00 : f32
    %477 = vector.broadcast %cst_110 : f32 to vector<1x8xf32>
    %478 = arith.subf %477, %475 : vector<1x8xf32>
    %479 = arith.subf %475, %476 : vector<1x8xf32>
    %480 = vector.extract_strided_slice %164 {offsets = [4, 0], sizes = [1, 8], strides = [1, 1]} : vector<15x8xf32> to vector<1x8xf32>
    %481 = arith.mulf %459, %478 : vector<1x8xf32>
    %482 = arith.addf %449, %481 : vector<1x8xf32>
    %483 = arith.mulf %460, %467 : vector<1x8xf32>
    %484 = arith.subf %482, %483 : vector<1x8xf32>
    %485 = arith.mulf %459, %479 : vector<1x8xf32>
    %486 = arith.addf %456, %485 : vector<1x8xf32>
    %487 = arith.mulf %460, %468 : vector<1x8xf32>
    %488 = arith.subf %486, %487 : vector<1x8xf32>
    %489 = arith.mulf %480, %484 : vector<1x8xf32>
    %490 = arith.mulf %489, %488 : vector<1x8xf32>
    %491 = arith.mulf %60, %488 : vector<1x8xf32>
    %cst_111 = arith.constant 0.000000e+00 : f32
    %492 = vector.broadcast %cst_111 : f32 to vector<1x8xf32>
    %493 = arith.subf %492, %490 : vector<1x8xf32>
    %494 = arith.subf %490, %491 : vector<1x8xf32>
    %495 = vector.extract_strided_slice %182 {offsets = [4, 0], sizes = [1, 8], strides = [1, 1]} : vector<15x8xf32> to vector<1x8xf32>
    %496 = arith.subf %467, %478 : vector<1x8xf32>
    %497 = arith.addf %496, %493 : vector<1x8xf32>
    %498 = arith.mulf %459, %497 : vector<1x8xf32>
    %499 = arith.addf %449, %498 : vector<1x8xf32>
    %500 = arith.subf %468, %479 : vector<1x8xf32>
    %501 = arith.addf %500, %494 : vector<1x8xf32>
    %502 = arith.mulf %459, %501 : vector<1x8xf32>
    %503 = arith.addf %456, %502 : vector<1x8xf32>
    %504 = arith.mulf %495, %499 : vector<1x8xf32>
    %505 = arith.mulf %504, %503 : vector<1x8xf32>
    %506 = arith.mulf %60, %503 : vector<1x8xf32>
    %cst_112 = arith.constant 0.000000e+00 : f32
    %507 = vector.broadcast %cst_112 : f32 to vector<1x8xf32>
    %508 = arith.subf %507, %505 : vector<1x8xf32>
    %509 = arith.subf %505, %506 : vector<1x8xf32>
    %510 = arith.addf %478, %493 : vector<1x8xf32>
    %cst_113 = arith.constant 3.000000e+00 : f32
    %511 = vector.broadcast %cst_113 : f32 to vector<1x8xf32>
    %512 = arith.mulf %511, %510 : vector<1x8xf32>
    %513 = arith.addf %467, %512 : vector<1x8xf32>
    %514 = arith.addf %513, %508 : vector<1x8xf32>
    %515 = arith.mulf %514, %461 : vector<1x8xf32>
    %516 = arith.addf %449, %515 : vector<1x8xf32>
    %517 = arith.addf %479, %494 : vector<1x8xf32>
    %cst_114 = arith.constant 3.000000e+00 : f32
    %518 = vector.broadcast %cst_114 : f32 to vector<1x8xf32>
    %519 = arith.mulf %518, %517 : vector<1x8xf32>
    %520 = arith.addf %468, %519 : vector<1x8xf32>
    %521 = arith.addf %520, %509 : vector<1x8xf32>
    %522 = arith.mulf %521, %461 : vector<1x8xf32>
    %523 = arith.addf %456, %522 : vector<1x8xf32>
    %524 = arith.subf %449, %516 : vector<1x8xf32>
    %c5 = arith.constant 5 : index
    %c0_115 = arith.constant 0 : index
    %525 = vector.load %arg9[%c5, %c0_115] : memref<16x8xf32, #tpu.memory_space<vmem>>, vector<1x8xf32>
    tpu.vector_store %arg9[%c5, %c0_115], %524 {strides = array<i32>} : memref<16x8xf32, #tpu.memory_space<vmem>>, vector<1x8xf32>,
    %526 = vector.extract_strided_slice %184 {offsets = [5, 0], sizes = [1, 8], strides = [1, 1]} : vector<15x8xf32> to vector<1x8xf32>
    %527 = vector.extract_strided_slice %186 {offsets = [5, 0], sizes = [1, 8], strides = [1, 1]} : vector<15x8xf32> to vector<1x8xf32>
    %528 = vector.extract_strided_slice %188 {offsets = [5, 0], sizes = [1, 8], strides = [1, 1]} : vector<15x8xf32> to vector<1x8xf32>
    %529 = vector.extract_strided_slice %120 {offsets = [5, 0], sizes = [1, 8], strides = [1, 1]} : vector<15x8xf32> to vector<1x8xf32>
    %530 = arith.mulf %529, %516 : vector<1x8xf32>
    %531 = arith.mulf %530, %523 : vector<1x8xf32>
    %532 = arith.mulf %60, %523 : vector<1x8xf32>
    %cst_116 = arith.constant 0.000000e+00 : f32
    %533 = vector.broadcast %cst_116 : f32 to vector<1x8xf32>
    %534 = arith.subf %533, %531 : vector<1x8xf32>
    %535 = arith.subf %531, %532 : vector<1x8xf32>
    %536 = vector.extract_strided_slice %141 {offsets = [5, 0], sizes = [1, 8], strides = [1, 1]} : vector<15x8xf32> to vector<1x8xf32>
    %537 = arith.mulf %527, %534 : vector<1x8xf32>
    %538 = arith.addf %516, %537 : vector<1x8xf32>
    %539 = arith.mulf %527, %535 : vector<1x8xf32>
    %540 = arith.addf %523, %539 : vector<1x8xf32>
    %541 = arith.mulf %536, %538 : vector<1x8xf32>
    %542 = arith.mulf %541, %540 : vector<1x8xf32>
    %543 = arith.mulf %60, %540 : vector<1x8xf32>
    %cst_117 = arith.constant 0.000000e+00 : f32
    %544 = vector.broadcast %cst_117 : f32 to vector<1x8xf32>
    %545 = arith.subf %544, %542 : vector<1x8xf32>
    %546 = arith.subf %542, %543 : vector<1x8xf32>
    %547 = vector.extract_strided_slice %164 {offsets = [5, 0], sizes = [1, 8], strides = [1, 1]} : vector<15x8xf32> to vector<1x8xf32>
    %548 = arith.mulf %526, %545 : vector<1x8xf32>
    %549 = arith.addf %516, %548 : vector<1x8xf32>
    %550 = arith.mulf %527, %534 : vector<1x8xf32>
    %551 = arith.subf %549, %550 : vector<1x8xf32>
    %552 = arith.mulf %526, %546 : vector<1x8xf32>
    %553 = arith.addf %523, %552 : vector<1x8xf32>
    %554 = arith.mulf %527, %535 : vector<1x8xf32>
    %555 = arith.subf %553, %554 : vector<1x8xf32>
    %556 = arith.mulf %547, %551 : vector<1x8xf32>
    %557 = arith.mulf %556, %555 : vector<1x8xf32>
    %558 = arith.mulf %60, %555 : vector<1x8xf32>
    %cst_118 = arith.constant 0.000000e+00 : f32
    %559 = vector.broadcast %cst_118 : f32 to vector<1x8xf32>
    %560 = arith.subf %559, %557 : vector<1x8xf32>
    %561 = arith.subf %557, %558 : vector<1x8xf32>
    %562 = vector.extract_strided_slice %182 {offsets = [5, 0], sizes = [1, 8], strides = [1, 1]} : vector<15x8xf32> to vector<1x8xf32>
    %563 = arith.subf %534, %545 : vector<1x8xf32>
    %564 = arith.addf %563, %560 : vector<1x8xf32>
    %565 = arith.mulf %526, %564 : vector<1x8xf32>
    %566 = arith.addf %516, %565 : vector<1x8xf32>
    %567 = arith.subf %535, %546 : vector<1x8xf32>
    %568 = arith.addf %567, %561 : vector<1x8xf32>
    %569 = arith.mulf %526, %568 : vector<1x8xf32>
    %570 = arith.addf %523, %569 : vector<1x8xf32>
    %571 = arith.mulf %562, %566 : vector<1x8xf32>
    %572 = arith.mulf %571, %570 : vector<1x8xf32>
    %573 = arith.mulf %60, %570 : vector<1x8xf32>
    %cst_119 = arith.constant 0.000000e+00 : f32
    %574 = vector.broadcast %cst_119 : f32 to vector<1x8xf32>
    %575 = arith.subf %574, %572 : vector<1x8xf32>
    %576 = arith.subf %572, %573 : vector<1x8xf32>
    %577 = arith.addf %545, %560 : vector<1x8xf32>
    %cst_120 = arith.constant 3.000000e+00 : f32
    %578 = vector.broadcast %cst_120 : f32 to vector<1x8xf32>
    %579 = arith.mulf %578, %577 : vector<1x8xf32>
    %580 = arith.addf %534, %579 : vector<1x8xf32>
    %581 = arith.addf %580, %575 : vector<1x8xf32>
    %582 = arith.mulf %581, %528 : vector<1x8xf32>
    %583 = arith.addf %516, %582 : vector<1x8xf32>
    %584 = arith.addf %546, %561 : vector<1x8xf32>
    %cst_121 = arith.constant 3.000000e+00 : f32
    %585 = vector.broadcast %cst_121 : f32 to vector<1x8xf32>
    %586 = arith.mulf %585, %584 : vector<1x8xf32>
    %587 = arith.addf %535, %586 : vector<1x8xf32>
    %588 = arith.addf %587, %576 : vector<1x8xf32>
    %589 = arith.mulf %588, %528 : vector<1x8xf32>
    %590 = arith.addf %523, %589 : vector<1x8xf32>
    %591 = arith.subf %516, %583 : vector<1x8xf32>
    %c6 = arith.constant 6 : index
    %c0_122 = arith.constant 0 : index
    %592 = vector.load %arg9[%c6, %c0_122] : memref<16x8xf32, #tpu.memory_space<vmem>>, vector<1x8xf32>
    tpu.vector_store %arg9[%c6, %c0_122], %591 {strides = array<i32>} : memref<16x8xf32, #tpu.memory_space<vmem>>, vector<1x8xf32>,
    %593 = vector.extract_strided_slice %184 {offsets = [6, 0], sizes = [1, 8], strides = [1, 1]} : vector<15x8xf32> to vector<1x8xf32>
    %594 = vector.extract_strided_slice %186 {offsets = [6, 0], sizes = [1, 8], strides = [1, 1]} : vector<15x8xf32> to vector<1x8xf32>
    %595 = vector.extract_strided_slice %188 {offsets = [6, 0], sizes = [1, 8], strides = [1, 1]} : vector<15x8xf32> to vector<1x8xf32>
    %596 = vector.extract_strided_slice %120 {offsets = [6, 0], sizes = [1, 8], strides = [1, 1]} : vector<15x8xf32> to vector<1x8xf32>
    %597 = arith.mulf %596, %583 : vector<1x8xf32>
    %598 = arith.mulf %597, %590 : vector<1x8xf32>
    %599 = arith.mulf %60, %590 : vector<1x8xf32>
    %cst_123 = arith.constant 0.000000e+00 : f32
    %600 = vector.broadcast %cst_123 : f32 to vector<1x8xf32>
    %601 = arith.subf %600, %598 : vector<1x8xf32>
    %602 = arith.subf %598, %599 : vector<1x8xf32>
    %603 = vector.extract_strided_slice %141 {offsets = [6, 0], sizes = [1, 8], strides = [1, 1]} : vector<15x8xf32> to vector<1x8xf32>
    %604 = arith.mulf %594, %601 : vector<1x8xf32>
    %605 = arith.addf %583, %604 : vector<1x8xf32>
    %606 = arith.mulf %594, %602 : vector<1x8xf32>
    %607 = arith.addf %590, %606 : vector<1x8xf32>
    %608 = arith.mulf %603, %605 : vector<1x8xf32>
    %609 = arith.mulf %608, %607 : vector<1x8xf32>
    %610 = arith.mulf %60, %607 : vector<1x8xf32>
    %cst_124 = arith.constant 0.000000e+00 : f32
    %611 = vector.broadcast %cst_124 : f32 to vector<1x8xf32>
    %612 = arith.subf %611, %609 : vector<1x8xf32>
    %613 = arith.subf %609, %610 : vector<1x8xf32>
    %614 = vector.extract_strided_slice %164 {offsets = [6, 0], sizes = [1, 8], strides = [1, 1]} : vector<15x8xf32> to vector<1x8xf32>
    %615 = arith.mulf %593, %612 : vector<1x8xf32>
    %616 = arith.addf %583, %615 : vector<1x8xf32>
    %617 = arith.mulf %594, %601 : vector<1x8xf32>
    %618 = arith.subf %616, %617 : vector<1x8xf32>
    %619 = arith.mulf %593, %613 : vector<1x8xf32>
    %620 = arith.addf %590, %619 : vector<1x8xf32>
    %621 = arith.mulf %594, %602 : vector<1x8xf32>
    %622 = arith.subf %620, %621 : vector<1x8xf32>
    %623 = arith.mulf %614, %618 : vector<1x8xf32>
    %624 = arith.mulf %623, %622 : vector<1x8xf32>
    %625 = arith.mulf %60, %622 : vector<1x8xf32>
    %cst_125 = arith.constant 0.000000e+00 : f32
    %626 = vector.broadcast %cst_125 : f32 to vector<1x8xf32>
    %627 = arith.subf %626, %624 : vector<1x8xf32>
    %628 = arith.subf %624, %625 : vector<1x8xf32>
    %629 = vector.extract_strided_slice %182 {offsets = [6, 0], sizes = [1, 8], strides = [1, 1]} : vector<15x8xf32> to vector<1x8xf32>
    %630 = arith.subf %601, %612 : vector<1x8xf32>
    %631 = arith.addf %630, %627 : vector<1x8xf32>
    %632 = arith.mulf %593, %631 : vector<1x8xf32>
    %633 = arith.addf %583, %632 : vector<1x8xf32>
    %634 = arith.subf %602, %613 : vector<1x8xf32>
    %635 = arith.addf %634, %628 : vector<1x8xf32>
    %636 = arith.mulf %593, %635 : vector<1x8xf32>
    %637 = arith.addf %590, %636 : vector<1x8xf32>
    %638 = arith.mulf %629, %633 : vector<1x8xf32>
    %639 = arith.mulf %638, %637 : vector<1x8xf32>
    %640 = arith.mulf %60, %637 : vector<1x8xf32>
    %cst_126 = arith.constant 0.000000e+00 : f32
    %641 = vector.broadcast %cst_126 : f32 to vector<1x8xf32>
    %642 = arith.subf %641, %639 : vector<1x8xf32>
    %643 = arith.subf %639, %640 : vector<1x8xf32>
    %644 = arith.addf %612, %627 : vector<1x8xf32>
    %cst_127 = arith.constant 3.000000e+00 : f32
    %645 = vector.broadcast %cst_127 : f32 to vector<1x8xf32>
    %646 = arith.mulf %645, %644 : vector<1x8xf32>
    %647 = arith.addf %601, %646 : vector<1x8xf32>
    %648 = arith.addf %647, %642 : vector<1x8xf32>
    %649 = arith.mulf %648, %595 : vector<1x8xf32>
    %650 = arith.addf %583, %649 : vector<1x8xf32>
    %651 = arith.addf %613, %628 : vector<1x8xf32>
    %cst_128 = arith.constant 3.000000e+00 : f32
    %652 = vector.broadcast %cst_128 : f32 to vector<1x8xf32>
    %653 = arith.mulf %652, %651 : vector<1x8xf32>
    %654 = arith.addf %602, %653 : vector<1x8xf32>
    %655 = arith.addf %654, %643 : vector<1x8xf32>
    %656 = arith.mulf %655, %595 : vector<1x8xf32>
    %657 = arith.addf %590, %656 : vector<1x8xf32>
    %658 = arith.subf %583, %650 : vector<1x8xf32>
    %c7 = arith.constant 7 : index
    %c0_129 = arith.constant 0 : index
    %659 = vector.load %arg9[%c7, %c0_129] : memref<16x8xf32, #tpu.memory_space<vmem>>, vector<1x8xf32>
    tpu.vector_store %arg9[%c7, %c0_129], %658 {strides = array<i32>} : memref<16x8xf32, #tpu.memory_space<vmem>>, vector<1x8xf32>,
    %660 = vector.extract_strided_slice %184 {offsets = [7, 0], sizes = [1, 8], strides = [1, 1]} : vector<15x8xf32> to vector<1x8xf32>
    %661 = vector.extract_strided_slice %186 {offsets = [7, 0], sizes = [1, 8], strides = [1, 1]} : vector<15x8xf32> to vector<1x8xf32>
    %662 = vector.extract_strided_slice %188 {offsets = [7, 0], sizes = [1, 8], strides = [1, 1]} : vector<15x8xf32> to vector<1x8xf32>
    %663 = vector.extract_strided_slice %120 {offsets = [7, 0], sizes = [1, 8], strides = [1, 1]} : vector<15x8xf32> to vector<1x8xf32>
    %664 = arith.mulf %663, %650 : vector<1x8xf32>
    %665 = arith.mulf %664, %657 : vector<1x8xf32>
    %666 = arith.mulf %60, %657 : vector<1x8xf32>
    %cst_130 = arith.constant 0.000000e+00 : f32
    %667 = vector.broadcast %cst_130 : f32 to vector<1x8xf32>
    %668 = arith.subf %667, %665 : vector<1x8xf32>
    %669 = arith.subf %665, %666 : vector<1x8xf32>
    %670 = vector.extract_strided_slice %141 {offsets = [7, 0], sizes = [1, 8], strides = [1, 1]} : vector<15x8xf32> to vector<1x8xf32>
    %671 = arith.mulf %661, %668 : vector<1x8xf32>
    %672 = arith.addf %650, %671 : vector<1x8xf32>
    %673 = arith.mulf %661, %669 : vector<1x8xf32>
    %674 = arith.addf %657, %673 : vector<1x8xf32>
    %675 = arith.mulf %670, %672 : vector<1x8xf32>
    %676 = arith.mulf %675, %674 : vector<1x8xf32>
    %677 = arith.mulf %60, %674 : vector<1x8xf32>
    %cst_131 = arith.constant 0.000000e+00 : f32
    %678 = vector.broadcast %cst_131 : f32 to vector<1x8xf32>
    %679 = arith.subf %678, %676 : vector<1x8xf32>
    %680 = arith.subf %676, %677 : vector<1x8xf32>
    %681 = vector.extract_strided_slice %164 {offsets = [7, 0], sizes = [1, 8], strides = [1, 1]} : vector<15x8xf32> to vector<1x8xf32>
    %682 = arith.mulf %660, %679 : vector<1x8xf32>
    %683 = arith.addf %650, %682 : vector<1x8xf32>
    %684 = arith.mulf %661, %668 : vector<1x8xf32>
    %685 = arith.subf %683, %684 : vector<1x8xf32>
    %686 = arith.mulf %660, %680 : vector<1x8xf32>
    %687 = arith.addf %657, %686 : vector<1x8xf32>
    %688 = arith.mulf %661, %669 : vector<1x8xf32>
    %689 = arith.subf %687, %688 : vector<1x8xf32>
    %690 = arith.mulf %681, %685 : vector<1x8xf32>
    %691 = arith.mulf %690, %689 : vector<1x8xf32>
    %692 = arith.mulf %60, %689 : vector<1x8xf32>
    %cst_132 = arith.constant 0.000000e+00 : f32
    %693 = vector.broadcast %cst_132 : f32 to vector<1x8xf32>
    %694 = arith.subf %693, %691 : vector<1x8xf32>
    %695 = arith.subf %691, %692 : vector<1x8xf32>
    %696 = vector.extract_strided_slice %182 {offsets = [7, 0], sizes = [1, 8], strides = [1, 1]} : vector<15x8xf32> to vector<1x8xf32>
    %697 = arith.subf %668, %679 : vector<1x8xf32>
    %698 = arith.addf %697, %694 : vector<1x8xf32>
    %699 = arith.mulf %660, %698 : vector<1x8xf32>
    %700 = arith.addf %650, %699 : vector<1x8xf32>
    %701 = arith.subf %669, %680 : vector<1x8xf32>
    %702 = arith.addf %701, %695 : vector<1x8xf32>
    %703 = arith.mulf %660, %702 : vector<1x8xf32>
    %704 = arith.addf %657, %703 : vector<1x8xf32>
    %705 = arith.mulf %696, %700 : vector<1x8xf32>
    %706 = arith.mulf %705, %704 : vector<1x8xf32>
    %707 = arith.mulf %60, %704 : vector<1x8xf32>
    %cst_133 = arith.constant 0.000000e+00 : f32
    %708 = vector.broadcast %cst_133 : f32 to vector<1x8xf32>
    %709 = arith.subf %708, %706 : vector<1x8xf32>
    %710 = arith.subf %706, %707 : vector<1x8xf32>
    %711 = arith.addf %679, %694 : vector<1x8xf32>
    %cst_134 = arith.constant 3.000000e+00 : f32
    %712 = vector.broadcast %cst_134 : f32 to vector<1x8xf32>
    %713 = arith.mulf %712, %711 : vector<1x8xf32>
    %714 = arith.addf %668, %713 : vector<1x8xf32>
    %715 = arith.addf %714, %709 : vector<1x8xf32>
    %716 = arith.mulf %715, %662 : vector<1x8xf32>
    %717 = arith.addf %650, %716 : vector<1x8xf32>
    %718 = arith.addf %680, %695 : vector<1x8xf32>
    %cst_135 = arith.constant 3.000000e+00 : f32
    %719 = vector.broadcast %cst_135 : f32 to vector<1x8xf32>
    %720 = arith.mulf %719, %718 : vector<1x8xf32>
    %721 = arith.addf %669, %720 : vector<1x8xf32>
    %722 = arith.addf %721, %710 : vector<1x8xf32>
    %723 = arith.mulf %722, %662 : vector<1x8xf32>
    %724 = arith.addf %657, %723 : vector<1x8xf32>
    %725 = arith.subf %650, %717 : vector<1x8xf32>
    %c8 = arith.constant 8 : index
    %c0_136 = arith.constant 0 : index
    %726 = vector.load %arg9[%c8, %c0_136] : memref<16x8xf32, #tpu.memory_space<vmem>>, vector<1x8xf32>
    tpu.vector_store %arg9[%c8, %c0_136], %725 {strides = array<i32>} : memref<16x8xf32, #tpu.memory_space<vmem>>, vector<1x8xf32>,
    %727 = vector.extract_strided_slice %184 {offsets = [8, 0], sizes = [1, 8], strides = [1, 1]} : vector<15x8xf32> to vector<1x8xf32>
    %728 = vector.extract_strided_slice %186 {offsets = [8, 0], sizes = [1, 8], strides = [1, 1]} : vector<15x8xf32> to vector<1x8xf32>
    %729 = vector.extract_strided_slice %188 {offsets = [8, 0], sizes = [1, 8], strides = [1, 1]} : vector<15x8xf32> to vector<1x8xf32>
    %730 = vector.extract_strided_slice %120 {offsets = [8, 0], sizes = [1, 8], strides = [1, 1]} : vector<15x8xf32> to vector<1x8xf32>
    %731 = arith.mulf %730, %717 : vector<1x8xf32>
    %732 = arith.mulf %731, %724 : vector<1x8xf32>
    %733 = arith.mulf %60, %724 : vector<1x8xf32>
    %cst_137 = arith.constant 0.000000e+00 : f32
    %734 = vector.broadcast %cst_137 : f32 to vector<1x8xf32>
    %735 = arith.subf %734, %732 : vector<1x8xf32>
    %736 = arith.subf %732, %733 : vector<1x8xf32>
    %737 = vector.extract_strided_slice %141 {offsets = [8, 0], sizes = [1, 8], strides = [1, 1]} : vector<15x8xf32> to vector<1x8xf32>
    %738 = arith.mulf %728, %735 : vector<1x8xf32>
    %739 = arith.addf %717, %738 : vector<1x8xf32>
    %740 = arith.mulf %728, %736 : vector<1x8xf32>
    %741 = arith.addf %724, %740 : vector<1x8xf32>
    %742 = arith.mulf %737, %739 : vector<1x8xf32>
    %743 = arith.mulf %742, %741 : vector<1x8xf32>
    %744 = arith.mulf %60, %741 : vector<1x8xf32>
    %cst_138 = arith.constant 0.000000e+00 : f32
    %745 = vector.broadcast %cst_138 : f32 to vector<1x8xf32>
    %746 = arith.subf %745, %743 : vector<1x8xf32>
    %747 = arith.subf %743, %744 : vector<1x8xf32>
    %748 = vector.extract_strided_slice %164 {offsets = [8, 0], sizes = [1, 8], strides = [1, 1]} : vector<15x8xf32> to vector<1x8xf32>
    %749 = arith.mulf %727, %746 : vector<1x8xf32>
    %750 = arith.addf %717, %749 : vector<1x8xf32>
    %751 = arith.mulf %728, %735 : vector<1x8xf32>
    %752 = arith.subf %750, %751 : vector<1x8xf32>
    %753 = arith.mulf %727, %747 : vector<1x8xf32>
    %754 = arith.addf %724, %753 : vector<1x8xf32>
    %755 = arith.mulf %728, %736 : vector<1x8xf32>
    %756 = arith.subf %754, %755 : vector<1x8xf32>
    %757 = arith.mulf %748, %752 : vector<1x8xf32>
    %758 = arith.mulf %757, %756 : vector<1x8xf32>
    %759 = arith.mulf %60, %756 : vector<1x8xf32>
    %cst_139 = arith.constant 0.000000e+00 : f32
    %760 = vector.broadcast %cst_139 : f32 to vector<1x8xf32>
    %761 = arith.subf %760, %758 : vector<1x8xf32>
    %762 = arith.subf %758, %759 : vector<1x8xf32>
    %763 = vector.extract_strided_slice %182 {offsets = [8, 0], sizes = [1, 8], strides = [1, 1]} : vector<15x8xf32> to vector<1x8xf32>
    %764 = arith.subf %735, %746 : vector<1x8xf32>
    %765 = arith.addf %764, %761 : vector<1x8xf32>
    %766 = arith.mulf %727, %765 : vector<1x8xf32>
    %767 = arith.addf %717, %766 : vector<1x8xf32>
    %768 = arith.subf %736, %747 : vector<1x8xf32>
    %769 = arith.addf %768, %762 : vector<1x8xf32>
    %770 = arith.mulf %727, %769 : vector<1x8xf32>
    %771 = arith.addf %724, %770 : vector<1x8xf32>
    %772 = arith.mulf %763, %767 : vector<1x8xf32>
    %773 = arith.mulf %772, %771 : vector<1x8xf32>
    %774 = arith.mulf %60, %771 : vector<1x8xf32>
    %cst_140 = arith.constant 0.000000e+00 : f32
    %775 = vector.broadcast %cst_140 : f32 to vector<1x8xf32>
    %776 = arith.subf %775, %773 : vector<1x8xf32>
    %777 = arith.subf %773, %774 : vector<1x8xf32>
    %778 = arith.addf %746, %761 : vector<1x8xf32>
    %cst_141 = arith.constant 3.000000e+00 : f32
    %779 = vector.broadcast %cst_141 : f32 to vector<1x8xf32>
    %780 = arith.mulf %779, %778 : vector<1x8xf32>
    %781 = arith.addf %735, %780 : vector<1x8xf32>
    %782 = arith.addf %781, %776 : vector<1x8xf32>
    %783 = arith.mulf %782, %729 : vector<1x8xf32>
    %784 = arith.addf %717, %783 : vector<1x8xf32>
    %785 = arith.addf %747, %762 : vector<1x8xf32>
    %cst_142 = arith.constant 3.000000e+00 : f32
    %786 = vector.broadcast %cst_142 : f32 to vector<1x8xf32>
    %787 = arith.mulf %786, %785 : vector<1x8xf32>
    %788 = arith.addf %736, %787 : vector<1x8xf32>
    %789 = arith.addf %788, %777 : vector<1x8xf32>
    %790 = arith.mulf %789, %729 : vector<1x8xf32>
    %791 = arith.addf %724, %790 : vector<1x8xf32>
    %792 = arith.subf %717, %784 : vector<1x8xf32>
    %c9 = arith.constant 9 : index
    %c0_143 = arith.constant 0 : index
    %793 = vector.load %arg9[%c9, %c0_143] : memref<16x8xf32, #tpu.memory_space<vmem>>, vector<1x8xf32>
    tpu.vector_store %arg9[%c9, %c0_143], %792 {strides = array<i32>} : memref<16x8xf32, #tpu.memory_space<vmem>>, vector<1x8xf32>,
    %794 = vector.extract_strided_slice %184 {offsets = [9, 0], sizes = [1, 8], strides = [1, 1]} : vector<15x8xf32> to vector<1x8xf32>
    %795 = vector.extract_strided_slice %186 {offsets = [9, 0], sizes = [1, 8], strides = [1, 1]} : vector<15x8xf32> to vector<1x8xf32>
    %796 = vector.extract_strided_slice %188 {offsets = [9, 0], sizes = [1, 8], strides = [1, 1]} : vector<15x8xf32> to vector<1x8xf32>
    %797 = vector.extract_strided_slice %120 {offsets = [9, 0], sizes = [1, 8], strides = [1, 1]} : vector<15x8xf32> to vector<1x8xf32>
    %798 = arith.mulf %797, %784 : vector<1x8xf32>
    %799 = arith.mulf %798, %791 : vector<1x8xf32>
    %800 = arith.mulf %60, %791 : vector<1x8xf32>
    %cst_144 = arith.constant 0.000000e+00 : f32
    %801 = vector.broadcast %cst_144 : f32 to vector<1x8xf32>
    %802 = arith.subf %801, %799 : vector<1x8xf32>
    %803 = arith.subf %799, %800 : vector<1x8xf32>
    %804 = vector.extract_strided_slice %141 {offsets = [9, 0], sizes = [1, 8], strides = [1, 1]} : vector<15x8xf32> to vector<1x8xf32>
    %805 = arith.mulf %795, %802 : vector<1x8xf32>
    %806 = arith.addf %784, %805 : vector<1x8xf32>
    %807 = arith.mulf %795, %803 : vector<1x8xf32>
    %808 = arith.addf %791, %807 : vector<1x8xf32>
    %809 = arith.mulf %804, %806 : vector<1x8xf32>
    %810 = arith.mulf %809, %808 : vector<1x8xf32>
    %811 = arith.mulf %60, %808 : vector<1x8xf32>
    %cst_145 = arith.constant 0.000000e+00 : f32
    %812 = vector.broadcast %cst_145 : f32 to vector<1x8xf32>
    %813 = arith.subf %812, %810 : vector<1x8xf32>
    %814 = arith.subf %810, %811 : vector<1x8xf32>
    %815 = vector.extract_strided_slice %164 {offsets = [9, 0], sizes = [1, 8], strides = [1, 1]} : vector<15x8xf32> to vector<1x8xf32>
    %816 = arith.mulf %794, %813 : vector<1x8xf32>
    %817 = arith.addf %784, %816 : vector<1x8xf32>
    %818 = arith.mulf %795, %802 : vector<1x8xf32>
    %819 = arith.subf %817, %818 : vector<1x8xf32>
    %820 = arith.mulf %794, %814 : vector<1x8xf32>
    %821 = arith.addf %791, %820 : vector<1x8xf32>
    %822 = arith.mulf %795, %803 : vector<1x8xf32>
    %823 = arith.subf %821, %822 : vector<1x8xf32>
    %824 = arith.mulf %815, %819 : vector<1x8xf32>
    %825 = arith.mulf %824, %823 : vector<1x8xf32>
    %826 = arith.mulf %60, %823 : vector<1x8xf32>
    %cst_146 = arith.constant 0.000000e+00 : f32
    %827 = vector.broadcast %cst_146 : f32 to vector<1x8xf32>
    %828 = arith.subf %827, %825 : vector<1x8xf32>
    %829 = arith.subf %825, %826 : vector<1x8xf32>
    %830 = vector.extract_strided_slice %182 {offsets = [9, 0], sizes = [1, 8], strides = [1, 1]} : vector<15x8xf32> to vector<1x8xf32>
    %831 = arith.subf %802, %813 : vector<1x8xf32>
    %832 = arith.addf %831, %828 : vector<1x8xf32>
    %833 = arith.mulf %794, %832 : vector<1x8xf32>
    %834 = arith.addf %784, %833 : vector<1x8xf32>
    %835 = arith.subf %803, %814 : vector<1x8xf32>
    %836 = arith.addf %835, %829 : vector<1x8xf32>
    %837 = arith.mulf %794, %836 : vector<1x8xf32>
    %838 = arith.addf %791, %837 : vector<1x8xf32>
    %839 = arith.mulf %830, %834 : vector<1x8xf32>
    %840 = arith.mulf %839, %838 : vector<1x8xf32>
    %841 = arith.mulf %60, %838 : vector<1x8xf32>
    %cst_147 = arith.constant 0.000000e+00 : f32
    %842 = vector.broadcast %cst_147 : f32 to vector<1x8xf32>
    %843 = arith.subf %842, %840 : vector<1x8xf32>
    %844 = arith.subf %840, %841 : vector<1x8xf32>
    %845 = arith.addf %813, %828 : vector<1x8xf32>
    %cst_148 = arith.constant 3.000000e+00 : f32
    %846 = vector.broadcast %cst_148 : f32 to vector<1x8xf32>
    %847 = arith.mulf %846, %845 : vector<1x8xf32>
    %848 = arith.addf %802, %847 : vector<1x8xf32>
    %849 = arith.addf %848, %843 : vector<1x8xf32>
    %850 = arith.mulf %849, %796 : vector<1x8xf32>
    %851 = arith.addf %784, %850 : vector<1x8xf32>
    %852 = arith.addf %814, %829 : vector<1x8xf32>
    %cst_149 = arith.constant 3.000000e+00 : f32
    %853 = vector.broadcast %cst_149 : f32 to vector<1x8xf32>
    %854 = arith.mulf %853, %852 : vector<1x8xf32>
    %855 = arith.addf %803, %854 : vector<1x8xf32>
    %856 = arith.addf %855, %844 : vector<1x8xf32>
    %857 = arith.mulf %856, %796 : vector<1x8xf32>
    %858 = arith.addf %791, %857 : vector<1x8xf32>
    %859 = arith.subf %784, %851 : vector<1x8xf32>
    %c10 = arith.constant 10 : index
    %c0_150 = arith.constant 0 : index
    %860 = vector.load %arg9[%c10, %c0_150] : memref<16x8xf32, #tpu.memory_space<vmem>>, vector<1x8xf32>
    tpu.vector_store %arg9[%c10, %c0_150], %859 {strides = array<i32>} : memref<16x8xf32, #tpu.memory_space<vmem>>, vector<1x8xf32>,
    %861 = vector.extract_strided_slice %184 {offsets = [10, 0], sizes = [1, 8], strides = [1, 1]} : vector<15x8xf32> to vector<1x8xf32>
    %862 = vector.extract_strided_slice %186 {offsets = [10, 0], sizes = [1, 8], strides = [1, 1]} : vector<15x8xf32> to vector<1x8xf32>
    %863 = vector.extract_strided_slice %188 {offsets = [10, 0], sizes = [1, 8], strides = [1, 1]} : vector<15x8xf32> to vector<1x8xf32>
    %864 = vector.extract_strided_slice %120 {offsets = [10, 0], sizes = [1, 8], strides = [1, 1]} : vector<15x8xf32> to vector<1x8xf32>
    %865 = arith.mulf %864, %851 : vector<1x8xf32>
    %866 = arith.mulf %865, %858 : vector<1x8xf32>
    %867 = arith.mulf %60, %858 : vector<1x8xf32>
    %cst_151 = arith.constant 0.000000e+00 : f32
    %868 = vector.broadcast %cst_151 : f32 to vector<1x8xf32>
    %869 = arith.subf %868, %866 : vector<1x8xf32>
    %870 = arith.subf %866, %867 : vector<1x8xf32>
    %871 = vector.extract_strided_slice %141 {offsets = [10, 0], sizes = [1, 8], strides = [1, 1]} : vector<15x8xf32> to vector<1x8xf32>
    %872 = arith.mulf %862, %869 : vector<1x8xf32>
    %873 = arith.addf %851, %872 : vector<1x8xf32>
    %874 = arith.mulf %862, %870 : vector<1x8xf32>
    %875 = arith.addf %858, %874 : vector<1x8xf32>
    %876 = arith.mulf %871, %873 : vector<1x8xf32>
    %877 = arith.mulf %876, %875 : vector<1x8xf32>
    %878 = arith.mulf %60, %875 : vector<1x8xf32>
    %cst_152 = arith.constant 0.000000e+00 : f32
    %879 = vector.broadcast %cst_152 : f32 to vector<1x8xf32>
    %880 = arith.subf %879, %877 : vector<1x8xf32>
    %881 = arith.subf %877, %878 : vector<1x8xf32>
    %882 = vector.extract_strided_slice %164 {offsets = [10, 0], sizes = [1, 8], strides = [1, 1]} : vector<15x8xf32> to vector<1x8xf32>
    %883 = arith.mulf %861, %880 : vector<1x8xf32>
    %884 = arith.addf %851, %883 : vector<1x8xf32>
    %885 = arith.mulf %862, %869 : vector<1x8xf32>
    %886 = arith.subf %884, %885 : vector<1x8xf32>
    %887 = arith.mulf %861, %881 : vector<1x8xf32>
    %888 = arith.addf %858, %887 : vector<1x8xf32>
    %889 = arith.mulf %862, %870 : vector<1x8xf32>
    %890 = arith.subf %888, %889 : vector<1x8xf32>
    %891 = arith.mulf %882, %886 : vector<1x8xf32>
    %892 = arith.mulf %891, %890 : vector<1x8xf32>
    %893 = arith.mulf %60, %890 : vector<1x8xf32>
    %cst_153 = arith.constant 0.000000e+00 : f32
    %894 = vector.broadcast %cst_153 : f32 to vector<1x8xf32>
    %895 = arith.subf %894, %892 : vector<1x8xf32>
    %896 = arith.subf %892, %893 : vector<1x8xf32>
    %897 = vector.extract_strided_slice %182 {offsets = [10, 0], sizes = [1, 8], strides = [1, 1]} : vector<15x8xf32> to vector<1x8xf32>
    %898 = arith.subf %869, %880 : vector<1x8xf32>
    %899 = arith.addf %898, %895 : vector<1x8xf32>
    %900 = arith.mulf %861, %899 : vector<1x8xf32>
    %901 = arith.addf %851, %900 : vector<1x8xf32>
    %902 = arith.subf %870, %881 : vector<1x8xf32>
    %903 = arith.addf %902, %896 : vector<1x8xf32>
    %904 = arith.mulf %861, %903 : vector<1x8xf32>
    %905 = arith.addf %858, %904 : vector<1x8xf32>
    %906 = arith.mulf %897, %901 : vector<1x8xf32>
    %907 = arith.mulf %906, %905 : vector<1x8xf32>
    %908 = arith.mulf %60, %905 : vector<1x8xf32>
    %cst_154 = arith.constant 0.000000e+00 : f32
    %909 = vector.broadcast %cst_154 : f32 to vector<1x8xf32>
    %910 = arith.subf %909, %907 : vector<1x8xf32>
    %911 = arith.subf %907, %908 : vector<1x8xf32>
    %912 = arith.addf %880, %895 : vector<1x8xf32>
    %cst_155 = arith.constant 3.000000e+00 : f32
    %913 = vector.broadcast %cst_155 : f32 to vector<1x8xf32>
    %914 = arith.mulf %913, %912 : vector<1x8xf32>
    %915 = arith.addf %869, %914 : vector<1x8xf32>
    %916 = arith.addf %915, %910 : vector<1x8xf32>
    %917 = arith.mulf %916, %863 : vector<1x8xf32>
    %918 = arith.addf %851, %917 : vector<1x8xf32>
    %919 = arith.addf %881, %896 : vector<1x8xf32>
    %cst_156 = arith.constant 3.000000e+00 : f32
    %920 = vector.broadcast %cst_156 : f32 to vector<1x8xf32>
    %921 = arith.mulf %920, %919 : vector<1x8xf32>
    %922 = arith.addf %870, %921 : vector<1x8xf32>
    %923 = arith.addf %922, %911 : vector<1x8xf32>
    %924 = arith.mulf %923, %863 : vector<1x8xf32>
    %925 = arith.addf %858, %924 : vector<1x8xf32>
    %926 = arith.subf %851, %918 : vector<1x8xf32>
    %c11 = arith.constant 11 : index
    %c0_157 = arith.constant 0 : index
    %927 = vector.load %arg9[%c11, %c0_157] : memref<16x8xf32, #tpu.memory_space<vmem>>, vector<1x8xf32>
    tpu.vector_store %arg9[%c11, %c0_157], %926 {strides = array<i32>} : memref<16x8xf32, #tpu.memory_space<vmem>>, vector<1x8xf32>,
    %928 = vector.extract_strided_slice %184 {offsets = [11, 0], sizes = [1, 8], strides = [1, 1]} : vector<15x8xf32> to vector<1x8xf32>
    %929 = vector.extract_strided_slice %186 {offsets = [11, 0], sizes = [1, 8], strides = [1, 1]} : vector<15x8xf32> to vector<1x8xf32>
    %930 = vector.extract_strided_slice %188 {offsets = [11, 0], sizes = [1, 8], strides = [1, 1]} : vector<15x8xf32> to vector<1x8xf32>
    %931 = vector.extract_strided_slice %120 {offsets = [11, 0], sizes = [1, 8], strides = [1, 1]} : vector<15x8xf32> to vector<1x8xf32>
    %932 = arith.mulf %931, %918 : vector<1x8xf32>
    %933 = arith.mulf %932, %925 : vector<1x8xf32>
    %934 = arith.mulf %60, %925 : vector<1x8xf32>
    %cst_158 = arith.constant 0.000000e+00 : f32
    %935 = vector.broadcast %cst_158 : f32 to vector<1x8xf32>
    %936 = arith.subf %935, %933 : vector<1x8xf32>
    %937 = arith.subf %933, %934 : vector<1x8xf32>
    %938 = vector.extract_strided_slice %141 {offsets = [11, 0], sizes = [1, 8], strides = [1, 1]} : vector<15x8xf32> to vector<1x8xf32>
    %939 = arith.mulf %929, %936 : vector<1x8xf32>
    %940 = arith.addf %918, %939 : vector<1x8xf32>
    %941 = arith.mulf %929, %937 : vector<1x8xf32>
    %942 = arith.addf %925, %941 : vector<1x8xf32>
    %943 = arith.mulf %938, %940 : vector<1x8xf32>
    %944 = arith.mulf %943, %942 : vector<1x8xf32>
    %945 = arith.mulf %60, %942 : vector<1x8xf32>
    %cst_159 = arith.constant 0.000000e+00 : f32
    %946 = vector.broadcast %cst_159 : f32 to vector<1x8xf32>
    %947 = arith.subf %946, %944 : vector<1x8xf32>
    %948 = arith.subf %944, %945 : vector<1x8xf32>
    %949 = vector.extract_strided_slice %164 {offsets = [11, 0], sizes = [1, 8], strides = [1, 1]} : vector<15x8xf32> to vector<1x8xf32>
    %950 = arith.mulf %928, %947 : vector<1x8xf32>
    %951 = arith.addf %918, %950 : vector<1x8xf32>
    %952 = arith.mulf %929, %936 : vector<1x8xf32>
    %953 = arith.subf %951, %952 : vector<1x8xf32>
    %954 = arith.mulf %928, %948 : vector<1x8xf32>
    %955 = arith.addf %925, %954 : vector<1x8xf32>
    %956 = arith.mulf %929, %937 : vector<1x8xf32>
    %957 = arith.subf %955, %956 : vector<1x8xf32>
    %958 = arith.mulf %949, %953 : vector<1x8xf32>
    %959 = arith.mulf %958, %957 : vector<1x8xf32>
    %960 = arith.mulf %60, %957 : vector<1x8xf32>
    %cst_160 = arith.constant 0.000000e+00 : f32
    %961 = vector.broadcast %cst_160 : f32 to vector<1x8xf32>
    %962 = arith.subf %961, %959 : vector<1x8xf32>
    %963 = arith.subf %959, %960 : vector<1x8xf32>
    %964 = vector.extract_strided_slice %182 {offsets = [11, 0], sizes = [1, 8], strides = [1, 1]} : vector<15x8xf32> to vector<1x8xf32>
    %965 = arith.subf %936, %947 : vector<1x8xf32>
    %966 = arith.addf %965, %962 : vector<1x8xf32>
    %967 = arith.mulf %928, %966 : vector<1x8xf32>
    %968 = arith.addf %918, %967 : vector<1x8xf32>
    %969 = arith.subf %937, %948 : vector<1x8xf32>
    %970 = arith.addf %969, %963 : vector<1x8xf32>
    %971 = arith.mulf %928, %970 : vector<1x8xf32>
    %972 = arith.addf %925, %971 : vector<1x8xf32>
    %973 = arith.mulf %964, %968 : vector<1x8xf32>
    %974 = arith.mulf %973, %972 : vector<1x8xf32>
    %975 = arith.mulf %60, %972 : vector<1x8xf32>
    %cst_161 = arith.constant 0.000000e+00 : f32
    %976 = vector.broadcast %cst_161 : f32 to vector<1x8xf32>
    %977 = arith.subf %976, %974 : vector<1x8xf32>
    %978 = arith.subf %974, %975 : vector<1x8xf32>
    %979 = arith.addf %947, %962 : vector<1x8xf32>
    %cst_162 = arith.constant 3.000000e+00 : f32
    %980 = vector.broadcast %cst_162 : f32 to vector<1x8xf32>
    %981 = arith.mulf %980, %979 : vector<1x8xf32>
    %982 = arith.addf %936, %981 : vector<1x8xf32>
    %983 = arith.addf %982, %977 : vector<1x8xf32>
    %984 = arith.mulf %983, %930 : vector<1x8xf32>
    %985 = arith.addf %918, %984 : vector<1x8xf32>
    %986 = arith.addf %948, %963 : vector<1x8xf32>
    %cst_163 = arith.constant 3.000000e+00 : f32
    %987 = vector.broadcast %cst_163 : f32 to vector<1x8xf32>
    %988 = arith.mulf %987, %986 : vector<1x8xf32>
    %989 = arith.addf %937, %988 : vector<1x8xf32>
    %990 = arith.addf %989, %978 : vector<1x8xf32>
    %991 = arith.mulf %990, %930 : vector<1x8xf32>
    %992 = arith.addf %925, %991 : vector<1x8xf32>
    %993 = arith.subf %918, %985 : vector<1x8xf32>
    %c12 = arith.constant 12 : index
    %c0_164 = arith.constant 0 : index
    %994 = vector.load %arg9[%c12, %c0_164] : memref<16x8xf32, #tpu.memory_space<vmem>>, vector<1x8xf32>
    tpu.vector_store %arg9[%c12, %c0_164], %993 {strides = array<i32>} : memref<16x8xf32, #tpu.memory_space<vmem>>, vector<1x8xf32>,
    %995 = vector.extract_strided_slice %184 {offsets = [12, 0], sizes = [1, 8], strides = [1, 1]} : vector<15x8xf32> to vector<1x8xf32>
    %996 = vector.extract_strided_slice %186 {offsets = [12, 0], sizes = [1, 8], strides = [1, 1]} : vector<15x8xf32> to vector<1x8xf32>
    %997 = vector.extract_strided_slice %188 {offsets = [12, 0], sizes = [1, 8], strides = [1, 1]} : vector<15x8xf32> to vector<1x8xf32>
    %998 = vector.extract_strided_slice %120 {offsets = [12, 0], sizes = [1, 8], strides = [1, 1]} : vector<15x8xf32> to vector<1x8xf32>
    %999 = arith.mulf %998, %985 : vector<1x8xf32>
    %1000 = arith.mulf %999, %992 : vector<1x8xf32>
    %1001 = arith.mulf %60, %992 : vector<1x8xf32>
    %cst_165 = arith.constant 0.000000e+00 : f32
    %1002 = vector.broadcast %cst_165 : f32 to vector<1x8xf32>
    %1003 = arith.subf %1002, %1000 : vector<1x8xf32>
    %1004 = arith.subf %1000, %1001 : vector<1x8xf32>
    %1005 = vector.extract_strided_slice %141 {offsets = [12, 0], sizes = [1, 8], strides = [1, 1]} : vector<15x8xf32> to vector<1x8xf32>
    %1006 = arith.mulf %996, %1003 : vector<1x8xf32>
    %1007 = arith.addf %985, %1006 : vector<1x8xf32>
    %1008 = arith.mulf %996, %1004 : vector<1x8xf32>
    %1009 = arith.addf %992, %1008 : vector<1x8xf32>
    %1010 = arith.mulf %1005, %1007 : vector<1x8xf32>
    %1011 = arith.mulf %1010, %1009 : vector<1x8xf32>
    %1012 = arith.mulf %60, %1009 : vector<1x8xf32>
    %cst_166 = arith.constant 0.000000e+00 : f32
    %1013 = vector.broadcast %cst_166 : f32 to vector<1x8xf32>
    %1014 = arith.subf %1013, %1011 : vector<1x8xf32>
    %1015 = arith.subf %1011, %1012 : vector<1x8xf32>
    %1016 = vector.extract_strided_slice %164 {offsets = [12, 0], sizes = [1, 8], strides = [1, 1]} : vector<15x8xf32> to vector<1x8xf32>
    %1017 = arith.mulf %995, %1014 : vector<1x8xf32>
    %1018 = arith.addf %985, %1017 : vector<1x8xf32>
    %1019 = arith.mulf %996, %1003 : vector<1x8xf32>
    %1020 = arith.subf %1018, %1019 : vector<1x8xf32>
    %1021 = arith.mulf %995, %1015 : vector<1x8xf32>
    %1022 = arith.addf %992, %1021 : vector<1x8xf32>
    %1023 = arith.mulf %996, %1004 : vector<1x8xf32>
    %1024 = arith.subf %1022, %1023 : vector<1x8xf32>
    %1025 = arith.mulf %1016, %1020 : vector<1x8xf32>
    %1026 = arith.mulf %1025, %1024 : vector<1x8xf32>
    %1027 = arith.mulf %60, %1024 : vector<1x8xf32>
    %cst_167 = arith.constant 0.000000e+00 : f32
    %1028 = vector.broadcast %cst_167 : f32 to vector<1x8xf32>
    %1029 = arith.subf %1028, %1026 : vector<1x8xf32>
    %1030 = arith.subf %1026, %1027 : vector<1x8xf32>
    %1031 = vector.extract_strided_slice %182 {offsets = [12, 0], sizes = [1, 8], strides = [1, 1]} : vector<15x8xf32> to vector<1x8xf32>
    %1032 = arith.subf %1003, %1014 : vector<1x8xf32>
    %1033 = arith.addf %1032, %1029 : vector<1x8xf32>
    %1034 = arith.mulf %995, %1033 : vector<1x8xf32>
    %1035 = arith.addf %985, %1034 : vector<1x8xf32>
    %1036 = arith.subf %1004, %1015 : vector<1x8xf32>
    %1037 = arith.addf %1036, %1030 : vector<1x8xf32>
    %1038 = arith.mulf %995, %1037 : vector<1x8xf32>
    %1039 = arith.addf %992, %1038 : vector<1x8xf32>
    %1040 = arith.mulf %1031, %1035 : vector<1x8xf32>
    %1041 = arith.mulf %1040, %1039 : vector<1x8xf32>
    %1042 = arith.mulf %60, %1039 : vector<1x8xf32>
    %cst_168 = arith.constant 0.000000e+00 : f32
    %1043 = vector.broadcast %cst_168 : f32 to vector<1x8xf32>
    %1044 = arith.subf %1043, %1041 : vector<1x8xf32>
    %1045 = arith.subf %1041, %1042 : vector<1x8xf32>
    %1046 = arith.addf %1014, %1029 : vector<1x8xf32>
    %cst_169 = arith.constant 3.000000e+00 : f32
    %1047 = vector.broadcast %cst_169 : f32 to vector<1x8xf32>
    %1048 = arith.mulf %1047, %1046 : vector<1x8xf32>
    %1049 = arith.addf %1003, %1048 : vector<1x8xf32>
    %1050 = arith.addf %1049, %1044 : vector<1x8xf32>
    %1051 = arith.mulf %1050, %997 : vector<1x8xf32>
    %1052 = arith.addf %985, %1051 : vector<1x8xf32>
    %1053 = arith.addf %1015, %1030 : vector<1x8xf32>
    %cst_170 = arith.constant 3.000000e+00 : f32
    %1054 = vector.broadcast %cst_170 : f32 to vector<1x8xf32>
    %1055 = arith.mulf %1054, %1053 : vector<1x8xf32>
    %1056 = arith.addf %1004, %1055 : vector<1x8xf32>
    %1057 = arith.addf %1056, %1045 : vector<1x8xf32>
    %1058 = arith.mulf %1057, %997 : vector<1x8xf32>
    %1059 = arith.addf %992, %1058 : vector<1x8xf32>
    %1060 = arith.subf %985, %1052 : vector<1x8xf32>
    %c13 = arith.constant 13 : index
    %c0_171 = arith.constant 0 : index
    %1061 = vector.load %arg9[%c13, %c0_171] : memref<16x8xf32, #tpu.memory_space<vmem>>, vector<1x8xf32>
    tpu.vector_store %arg9[%c13, %c0_171], %1060 {strides = array<i32>} : memref<16x8xf32, #tpu.memory_space<vmem>>, vector<1x8xf32>,
    %1062 = vector.extract_strided_slice %184 {offsets = [13, 0], sizes = [1, 8], strides = [1, 1]} : vector<15x8xf32> to vector<1x8xf32>
    %1063 = vector.extract_strided_slice %186 {offsets = [13, 0], sizes = [1, 8], strides = [1, 1]} : vector<15x8xf32> to vector<1x8xf32>
    %1064 = vector.extract_strided_slice %188 {offsets = [13, 0], sizes = [1, 8], strides = [1, 1]} : vector<15x8xf32> to vector<1x8xf32>
    %1065 = vector.extract_strided_slice %120 {offsets = [13, 0], sizes = [1, 8], strides = [1, 1]} : vector<15x8xf32> to vector<1x8xf32>
    %1066 = arith.mulf %1065, %1052 : vector<1x8xf32>
    %1067 = arith.mulf %1066, %1059 : vector<1x8xf32>
    %1068 = arith.mulf %60, %1059 : vector<1x8xf32>
    %cst_172 = arith.constant 0.000000e+00 : f32
    %1069 = vector.broadcast %cst_172 : f32 to vector<1x8xf32>
    %1070 = arith.subf %1069, %1067 : vector<1x8xf32>
    %1071 = arith.subf %1067, %1068 : vector<1x8xf32>
    %1072 = vector.extract_strided_slice %141 {offsets = [13, 0], sizes = [1, 8], strides = [1, 1]} : vector<15x8xf32> to vector<1x8xf32>
    %1073 = arith.mulf %1063, %1070 : vector<1x8xf32>
    %1074 = arith.addf %1052, %1073 : vector<1x8xf32>
    %1075 = arith.mulf %1063, %1071 : vector<1x8xf32>
    %1076 = arith.addf %1059, %1075 : vector<1x8xf32>
    %1077 = arith.mulf %1072, %1074 : vector<1x8xf32>
    %1078 = arith.mulf %1077, %1076 : vector<1x8xf32>
    %1079 = arith.mulf %60, %1076 : vector<1x8xf32>
    %cst_173 = arith.constant 0.000000e+00 : f32
    %1080 = vector.broadcast %cst_173 : f32 to vector<1x8xf32>
    %1081 = arith.subf %1080, %1078 : vector<1x8xf32>
    %1082 = arith.subf %1078, %1079 : vector<1x8xf32>
    %1083 = vector.extract_strided_slice %164 {offsets = [13, 0], sizes = [1, 8], strides = [1, 1]} : vector<15x8xf32> to vector<1x8xf32>
    %1084 = arith.mulf %1062, %1081 : vector<1x8xf32>
    %1085 = arith.addf %1052, %1084 : vector<1x8xf32>
    %1086 = arith.mulf %1063, %1070 : vector<1x8xf32>
    %1087 = arith.subf %1085, %1086 : vector<1x8xf32>
    %1088 = arith.mulf %1062, %1082 : vector<1x8xf32>
    %1089 = arith.addf %1059, %1088 : vector<1x8xf32>
    %1090 = arith.mulf %1063, %1071 : vector<1x8xf32>
    %1091 = arith.subf %1089, %1090 : vector<1x8xf32>
    %1092 = arith.mulf %1083, %1087 : vector<1x8xf32>
    %1093 = arith.mulf %1092, %1091 : vector<1x8xf32>
    %1094 = arith.mulf %60, %1091 : vector<1x8xf32>
    %cst_174 = arith.constant 0.000000e+00 : f32
    %1095 = vector.broadcast %cst_174 : f32 to vector<1x8xf32>
    %1096 = arith.subf %1095, %1093 : vector<1x8xf32>
    %1097 = arith.subf %1093, %1094 : vector<1x8xf32>
    %1098 = vector.extract_strided_slice %182 {offsets = [13, 0], sizes = [1, 8], strides = [1, 1]} : vector<15x8xf32> to vector<1x8xf32>
    %1099 = arith.subf %1070, %1081 : vector<1x8xf32>
    %1100 = arith.addf %1099, %1096 : vector<1x8xf32>
    %1101 = arith.mulf %1062, %1100 : vector<1x8xf32>
    %1102 = arith.addf %1052, %1101 : vector<1x8xf32>
    %1103 = arith.subf %1071, %1082 : vector<1x8xf32>
    %1104 = arith.addf %1103, %1097 : vector<1x8xf32>
    %1105 = arith.mulf %1062, %1104 : vector<1x8xf32>
    %1106 = arith.addf %1059, %1105 : vector<1x8xf32>
    %1107 = arith.mulf %1098, %1102 : vector<1x8xf32>
    %1108 = arith.mulf %1107, %1106 : vector<1x8xf32>
    %1109 = arith.mulf %60, %1106 : vector<1x8xf32>
    %cst_175 = arith.constant 0.000000e+00 : f32
    %1110 = vector.broadcast %cst_175 : f32 to vector<1x8xf32>
    %1111 = arith.subf %1110, %1108 : vector<1x8xf32>
    %1112 = arith.subf %1108, %1109 : vector<1x8xf32>
    %1113 = arith.addf %1081, %1096 : vector<1x8xf32>
    %cst_176 = arith.constant 3.000000e+00 : f32
    %1114 = vector.broadcast %cst_176 : f32 to vector<1x8xf32>
    %1115 = arith.mulf %1114, %1113 : vector<1x8xf32>
    %1116 = arith.addf %1070, %1115 : vector<1x8xf32>
    %1117 = arith.addf %1116, %1111 : vector<1x8xf32>
    %1118 = arith.mulf %1117, %1064 : vector<1x8xf32>
    %1119 = arith.addf %1052, %1118 : vector<1x8xf32>
    %1120 = arith.addf %1082, %1097 : vector<1x8xf32>
    %cst_177 = arith.constant 3.000000e+00 : f32
    %1121 = vector.broadcast %cst_177 : f32 to vector<1x8xf32>
    %1122 = arith.mulf %1121, %1120 : vector<1x8xf32>
    %1123 = arith.addf %1071, %1122 : vector<1x8xf32>
    %1124 = arith.addf %1123, %1112 : vector<1x8xf32>
    %1125 = arith.mulf %1124, %1064 : vector<1x8xf32>
    %1126 = arith.addf %1059, %1125 : vector<1x8xf32>
    %1127 = arith.subf %1052, %1119 : vector<1x8xf32>
    %c14 = arith.constant 14 : index
    %c0_178 = arith.constant 0 : index
    %1128 = vector.load %arg9[%c14, %c0_178] : memref<16x8xf32, #tpu.memory_space<vmem>>, vector<1x8xf32>
    tpu.vector_store %arg9[%c14, %c0_178], %1127 {strides = array<i32>} : memref<16x8xf32, #tpu.memory_space<vmem>>, vector<1x8xf32>,
    %1129 = vector.extract_strided_slice %184 {offsets = [14, 0], sizes = [1, 8], strides = [1, 1]} : vector<15x8xf32> to vector<1x8xf32>
    %1130 = vector.extract_strided_slice %186 {offsets = [14, 0], sizes = [1, 8], strides = [1, 1]} : vector<15x8xf32> to vector<1x8xf32>
    %1131 = vector.extract_strided_slice %188 {offsets = [14, 0], sizes = [1, 8], strides = [1, 1]} : vector<15x8xf32> to vector<1x8xf32>
    %1132 = vector.extract_strided_slice %120 {offsets = [14, 0], sizes = [1, 8], strides = [1, 1]} : vector<15x8xf32> to vector<1x8xf32>
    %1133 = arith.mulf %1132, %1119 : vector<1x8xf32>
    %1134 = arith.mulf %1133, %1126 : vector<1x8xf32>
    %1135 = arith.mulf %60, %1126 : vector<1x8xf32>
    %cst_179 = arith.constant 0.000000e+00 : f32
    %1136 = vector.broadcast %cst_179 : f32 to vector<1x8xf32>
    %1137 = arith.subf %1136, %1134 : vector<1x8xf32>
    %1138 = arith.subf %1134, %1135 : vector<1x8xf32>
    %1139 = vector.extract_strided_slice %141 {offsets = [14, 0], sizes = [1, 8], strides = [1, 1]} : vector<15x8xf32> to vector<1x8xf32>
    %1140 = arith.mulf %1130, %1137 : vector<1x8xf32>
    %1141 = arith.addf %1119, %1140 : vector<1x8xf32>
    %1142 = arith.mulf %1130, %1138 : vector<1x8xf32>
    %1143 = arith.addf %1126, %1142 : vector<1x8xf32>
    %1144 = arith.mulf %1139, %1141 : vector<1x8xf32>
    %1145 = arith.mulf %1144, %1143 : vector<1x8xf32>
    %1146 = arith.mulf %60, %1143 : vector<1x8xf32>
    %cst_180 = arith.constant 0.000000e+00 : f32
    %1147 = vector.broadcast %cst_180 : f32 to vector<1x8xf32>
    %1148 = arith.subf %1147, %1145 : vector<1x8xf32>
    %1149 = arith.subf %1145, %1146 : vector<1x8xf32>
    %1150 = vector.extract_strided_slice %164 {offsets = [14, 0], sizes = [1, 8], strides = [1, 1]} : vector<15x8xf32> to vector<1x8xf32>
    %1151 = arith.mulf %1129, %1148 : vector<1x8xf32>
    %1152 = arith.addf %1119, %1151 : vector<1x8xf32>
    %1153 = arith.mulf %1130, %1137 : vector<1x8xf32>
    %1154 = arith.subf %1152, %1153 : vector<1x8xf32>
    %1155 = arith.mulf %1129, %1149 : vector<1x8xf32>
    %1156 = arith.addf %1126, %1155 : vector<1x8xf32>
    %1157 = arith.mulf %1130, %1138 : vector<1x8xf32>
    %1158 = arith.subf %1156, %1157 : vector<1x8xf32>
    %1159 = arith.mulf %1150, %1154 : vector<1x8xf32>
    %1160 = arith.mulf %1159, %1158 : vector<1x8xf32>
    %1161 = arith.mulf %60, %1158 : vector<1x8xf32>
    %cst_181 = arith.constant 0.000000e+00 : f32
    %1162 = vector.broadcast %cst_181 : f32 to vector<1x8xf32>
    %1163 = arith.subf %1162, %1160 : vector<1x8xf32>
    %1164 = arith.subf %1160, %1161 : vector<1x8xf32>
    %1165 = vector.extract_strided_slice %182 {offsets = [14, 0], sizes = [1, 8], strides = [1, 1]} : vector<15x8xf32> to vector<1x8xf32>
    %1166 = arith.subf %1137, %1148 : vector<1x8xf32>
    %1167 = arith.addf %1166, %1163 : vector<1x8xf32>
    %1168 = arith.mulf %1129, %1167 : vector<1x8xf32>
    %1169 = arith.addf %1119, %1168 : vector<1x8xf32>
    %1170 = arith.subf %1138, %1149 : vector<1x8xf32>
    %1171 = arith.addf %1170, %1164 : vector<1x8xf32>
    %1172 = arith.mulf %1129, %1171 : vector<1x8xf32>
    %1173 = arith.addf %1126, %1172 : vector<1x8xf32>
    %1174 = arith.mulf %1165, %1169 : vector<1x8xf32>
    %1175 = arith.mulf %1174, %1173 : vector<1x8xf32>
    %cst_182 = arith.constant 0.000000e+00 : f32
    %1176 = vector.broadcast %cst_182 : f32 to vector<1x8xf32>
    %1177 = arith.subf %1176, %1175 : vector<1x8xf32>
    %1178 = arith.addf %1148, %1163 : vector<1x8xf32>
    %cst_183 = arith.constant 3.000000e+00 : f32
    %1179 = vector.broadcast %cst_183 : f32 to vector<1x8xf32>
    %1180 = arith.mulf %1179, %1178 : vector<1x8xf32>
    %1181 = arith.addf %1137, %1180 : vector<1x8xf32>
    %1182 = arith.addf %1181, %1177 : vector<1x8xf32>
    %1183 = arith.mulf %1182, %1131 : vector<1x8xf32>
    %1184 = arith.addf %1119, %1183 : vector<1x8xf32>
    %1185 = arith.subf %1119, %1184 : vector<1x8xf32>
    %c15 = arith.constant 15 : index
    %c0_184 = arith.constant 0 : index
    %1186 = vector.load %arg9[%c15, %c0_184] : memref<16x8xf32, #tpu.memory_space<vmem>>, vector<1x8xf32>
    tpu.vector_store %arg9[%c15, %c0_184], %1185 {strides = array<i32>} : memref<16x8xf32, #tpu.memory_space<vmem>>, vector<1x8xf32>,
    return
  }
  func.func @transform_0(%arg0: i32) -> (i32, i32) {
    %c0_i32 = arith.constant 0 : i32
    %c0_i32_0 = arith.constant 0 : i32
    return %arg0, %c0_i32 : i32, i32
  }
  func.func @transform_1(%arg0: i32) -> (i32, i32) {
    %c0_i32 = arith.constant 0 : i32
    %c0_i32_0 = arith.constant 0 : i32
    %c0_i32_1 = arith.constant 0 : i32
    return %c0_i32, %c0_i32_0 : i32, i32
  }
  func.func @transform_2(%arg0: i32) -> (i32, i32) {
    %c0_i32 = arith.constant 0 : i32
    %c0_i32_0 = arith.constant 0 : i32
    %c0_i32_1 = arith.constant 0 : i32
    return %c0_i32, %c0_i32_0 : i32, i32
  }
  func.func @transform_3(%arg0: i32) -> (i32, i32, i32) {
    %c0_i32 = arith.constant 0 : i32
    %c0_i32_0 = arith.constant 0 : i32
    %c0_i32_1 = arith.constant 0 : i32
    %c0_i32_2 = arith.constant 0 : i32
    return %c0_i32, %c0_i32_0, %c0_i32_1 : i32, i32, i32
  }
  func.func @transform_4(%arg0: i32) -> (i32, i32, i32) {
    %c0_i32 = arith.constant 0 : i32
    %c0_i32_0 = arith.constant 0 : i32
    %c0_i32_1 = arith.constant 0 : i32
    %c0_i32_2 = arith.constant 0 : i32
    return %c0_i32, %c0_i32_0, %c0_i32_1 : i32, i32, i32
  }
  func.func @transform_5(%arg0: i32) -> (i32, i32) {
    %c0_i32 = arith.constant 0 : i32
    %c0_i32_0 = arith.constant 0 : i32
    %c0_i32_1 = arith.constant 0 : i32
    return %c0_i32, %c0_i32_0 : i32, i32
  }
  func.func @transform_6(%arg0: i32) -> (i32, i32) {
    %c0_i32 = arith.constant 0 : i32
    %c0_i32_0 = arith.constant 0 : i32
    %c0_i32_1 = arith.constant 0 : i32
    return %c0_i32, %c0_i32_0 : i32, i32
  }
  func.func @transform_7(%arg0: i32) -> (i32, i32) {
    %c0_i32 = arith.constant 0 : i32
    %c0_i32_0 = arith.constant 0 : i32
    %c0_i32_1 = arith.constant 0 : i32
    return %c0_i32, %c0_i32_0 : i32, i32
  }
  func.func @transform_8(%arg0: i32) -> (i32, i32) {
    %c0_i32 = arith.constant 0 : i32
    %c0_i32_0 = arith.constant 0 : i32
    return %c0_i32, %arg0 : i32, i32
  }
}

</mosaic_0001>

<llo_original>
// kernel: tpu_custom_call.1
$region0: #{tpu_custom_call.1}
  #allocation0 [shape = 'u32[]', space=smem, size = 0x4, offset = 0x4, fixed_abs, tag = 'smem constant byte address 0x4 - core index']
  #allocation1 [shape = 'u32[144,128]{1,0:T(1,128)}', space=vmem, size = 0x12000, scoped, tag = 'internal scratch']
  %s0 = inlined_call_operand.vmem [shape: f32[8,4], index: 0, kind: input, shape index: {}]
  %s1 = inlined_call_operand.vmem [shape: f32[4,160], index: 1, kind: input, shape index: {}]
  %s2 = inlined_call_operand.vmem [shape: f32[1,160], index: 2, kind: input, shape index: {}]
  %s3 = inlined_call_operand.hbm [shape: f32[3,160,160], index: 3, kind: input, shape index: {}]
  %s4 = inlined_call_operand.vmem [shape: f32[3,1,160], index: 4, kind: input, shape index: {}]
  %s5 = inlined_call_operand.vmem [shape: f32[8,160], index: 5, kind: input, shape index: {}]
  %s6 = inlined_call_operand.vmem [shape: f32[8,1], index: 6, kind: input, shape index: {}]
  %s7 = inlined_call_operand.vmem [shape: f32[16,1], index: 7, kind: input, shape index: {}]
  %s8 = inlined_call_operand.vmem [shape: f32[16,8], index: 8, kind: output, shape index: {}]
  %s9 = sld [smem:[#allocation0]]
  $region46: #{tpu_custom_call.1} parent=0
    _
  %s11 = ssub.s32 1, %s9
  %s12 = scalar_select 0, %s11, %s9
  $region1: #{tpu_custom_call.1} parent=0
    #allocation2 [shape = 'u8[491520]{0}', space=vmem, size = 0x78000, scoped, tag = 'input window, operand 3, single buffered']
    #allocation3 [shape = 's32[1]{0}', space=sflag, size = 0x4, scoped, tag = 'scoped memory for tpu_custom_call.1']
    %13 = vsyncpa [#allocation3], 0
    // Predicated region
    $region2: #{tpu_custom_call.1} parent=1 // pred_check
      _
    $region3: #{tpu_custom_call.1} parent=1 // pred_check_branch
      %15 = sbr.rel (0) target = $region5
    $region4: #{tpu_custom_call.1} parent=1 // pred_region
      _
    $region5: #{tpu_custom_call.1} parent=1 // pred_fallthru
      _
    // Predicated region
    $region6: #{tpu_custom_call.1} parent=1 // pred_check
      _
    $region7: #{tpu_custom_call.1} parent=1 // pred_check_branch
      %17 = sbr.rel (0) target = $region9
    $region8: #{tpu_custom_call.1} parent=1 // pred_region
      _
    $region9: #{tpu_custom_call.1} parent=1 // pred_fallthru
      _
    // Predicated region
    $region10: #{tpu_custom_call.1} parent=1 // pred_check
      _
    $region11: #{tpu_custom_call.1} parent=1 // pred_check_branch
      %19 = sbr.rel (0) target = $region13
    $region12: #{tpu_custom_call.1} parent=1 // pred_region
      _
    $region13: #{tpu_custom_call.1} parent=1 // pred_fallthru
      _
    // Predicated region
    $region14: #{tpu_custom_call.1} parent=1 // pred_check
      _
    $region15: #{tpu_custom_call.1} parent=1 // pred_check_branch
      %21 = sbr.rel (0) target = $region17
    $region16: #{tpu_custom_call.1} parent=1 // pred_region
      %s23 = ssub.s32 15360, 15360
      %24 = vsyncadd [#allocation3], %s23
      %s25 = sshll.u32 [#allocation2], 4
      %s26 = int_to_ptr.vmem [resolvable:$true] %s25
      %31 = dma.hbm_to_vmem [thread:$0]  %s3, 15360, %s26, [#allocation3], 256, 256, 16
    $region17: #{tpu_custom_call.1} parent=1 // pred_fallthru
      _
    // Predicated region
    $region18: #{tpu_custom_call.1} parent=1 // pred_check
      _
    $region19: #{tpu_custom_call.1} parent=1 // pred_check_branch
      %33 = sbr.rel (0) target = $region21
    $region20: #{tpu_custom_call.1} parent=1 // pred_region
      _
    $region21: #{tpu_custom_call.1} parent=1 // pred_fallthru
      _
    // Predicated region
    $region22: #{tpu_custom_call.1} parent=1 // pred_check
      _
    $region23: #{tpu_custom_call.1} parent=1 // pred_check_branch
      %35 = sbr.rel (0) target = $region25
    $region24: #{tpu_custom_call.1} parent=1 // pred_region
      _
    $region25: #{tpu_custom_call.1} parent=1 // pred_fallthru
      _
    // Predicated region
    $region26: #{tpu_custom_call.1} parent=1 // pred_check
      _
    $region27: #{tpu_custom_call.1} parent=1 // pred_check_branch
      %37 = sbr.rel (0) target = $region29
    $region28: #{tpu_custom_call.1} parent=1 // pred_region
      _
    $region29: #{tpu_custom_call.1} parent=1 // pred_fallthru
      _
    // Predicated region
    $region30: #{tpu_custom_call.1} parent=1 // pred_check
      _
    $region31: #{tpu_custom_call.1} parent=1 // pred_check_branch
      %39 = sbr.rel (0) target = $region33
    $region32: #{tpu_custom_call.1} parent=1 // pred_region
      _
    $region33: #{tpu_custom_call.1} parent=1 // pred_fallthru
      _
    // Predicated region
    $region34: #{tpu_custom_call.1} parent=1 // pred_check
      _
    $region35: #{tpu_custom_call.1} parent=1 // pred_check_branch
      %41 = sbr.rel (0) target = $region37
    $region36: #{tpu_custom_call.1} parent=1 // pred_region
      %42 = dma.done [#allocation3], 15360
    $region37: #{tpu_custom_call.1} parent=1 // pred_fallthru
      _
    %v43 = vld [vmem:[%s0] sm:$0xff]
    %v44 = vld [vmem:[%s1] sm:$0xff]
    %v45 = vld [vmem:[%s2] sm:$0x3]
    %v47 = vlaneseq
    %v48 = vshrl.u32 %v47, 7
    %v49 = vsub.s32 0, %v48
    %v50 = vrot.slane %v45, %v49
    %v51 = vlaneseq
    %v52 = vshrl.u32 %v51, 7
    %v53 = vsub.s32 1, %v52
    %v54 = vrot.slane %v45, %v53
    %v58 = vcombine.high %v44, %v44
    %vm59 = vcmask 31744
    %v61 = vsel %vm59, %v43, 0
    %vm63 = vcmask 1043456
    %v64 = vsel %vm63, %v44, 0
    %v66 = vsel %vm63, %v58, 0
    %68 = vmatprep.subr.mxu0 %v66
    %69 = vmatpush1.msra.mxu0 %v64
    %70 = vmatprep.subr.mxu0 0.0
    %71 = vmatpush1.msra.mxu0 0.0
    %72 = vmatprep.subr.mxu0 0.0
    %73 = vmatpush1.msra.mxu0 0.0
    %74 = vmatprep.subr.mxu0 0.0
    %75 = vmatpush1.msra.mxu0 0.0
    %76 = vmatprep.subr.mxu0 0.0
    %77 = vmatpush1.msra.mxu0 0.0
    %78 = vmatprep.subr.mxu0 0.0
    %79 = vmatpush1.msra.mxu0 0.0
    %80 = vmatprep.subr.mxu0 0.0
    %81 = vmatpush1.msra.mxu0 0.0
    %82 = vmatprep.subr.mxu0 0.0
    %83 = vmatpush1.msra.mxu0 0.0
    %84 = vmatprep.subr.mxu0 0.0
    %85 = vmatpush1.msra.mxu0 0.0
    %86 = vmatprep.subr.mxu0 0.0
    %87 = vmatpush1.msra.mxu0 0.0
    %88 = vmatprep.subr.mxu0 0.0
    %89 = vmatpush1.msra.mxu0 0.0
    %90 = vmatprep.subr.mxu0 0.0
    %91 = vmatpush1.msra.mxu0 0.0
    %92 = vmatprep.subr.mxu0 0.0
    %93 = vmatpush1.msra.mxu0 0.0
    %94 = vmatprep.subr.mxu0 0.0
    %95 = vmatpush1.msra.mxu0 0.0
    %96 = vmatprep.subr.mxu0 0.0
    %97 = vmatpush1.msra.mxu0 0.0
    %98 = vmatprep.subr.mxu0 0.0
    %99 = vmatpush1.msra.mxu0 0.0
    %100 = vmatprep.subr.mxu0 0.0
    %101 = vmatpush1.msra.mxu0 0.0
    %102 = vmatprep.subr.mxu0 0.0
    %103 = vmatpush1.msra.mxu0 0.0
    %104 = vmatprep.subr.mxu0 0.0
    %105 = vmatpush1.msra.mxu0 0.0
    %106 = vmatprep.subr.mxu0 0.0
    %107 = vmatpush1.msra.mxu0 0.0
    %108 = vmatprep.subr.mxu0 0.0
    %109 = vmatpush1.msra.mxu0 0.0
    %110 = vmatprep.subr.mxu0 0.0
    %111 = vmatpush1.msra.mxu0 0.0
    %112 = vmatprep.subr.mxu0 0.0
    %113 = vmatpush1.msra.mxu0 0.0
    %114 = vmatprep.subr.mxu0 0.0
    %115 = vmatpush1.msra.mxu0 0.0
    %116 = vmatprep.subr.mxu0 0.0
    %117 = vmatpush1.msra.mxu0 0.0
    %118 = vmatprep.subr.mxu0 0.0
    %119 = vmatpush1.msra.mxu0 0.0
    %120 = vmatprep.subr.mxu0 0.0
    %121 = vmatpush1.msra.mxu0 0.0
    %122 = vmatprep.subr.mxu0 0.0
    %123 = vmatpush1.msra.mxu0 0.0
    %124 = vmatprep.subr.mxu0 0.0
    %125 = vmatpush1.msra.mxu0 0.0
    %126 = vmatprep.subr.mxu0 0.0
    %127 = vmatpush1.msra.mxu0 0.0
    %128 = vmatprep.subr.mxu0 0.0
    %129 = vmatpush1.msra.mxu0 0.0
    %130 = vmatprep.subr.mxu0 0.0
    %131 = vmatpush1.msra.mxu0 0.0
    %132 = vmatprep.mubr.f32.mxu0 0.0
    %133 = vmatmul.mubr.f32.gmra.mrb[0].mxu0 %v61
    %v134 = vpop.f32.mrb[0].mxu0
    %v135 = vadd.f32 %v50, %v134
    %v136 = vpop.f32.mrb[0].mxu0
    %v137 = vadd.f32 %v54, %v136
    %138 = vdwg.mxu0
    %v139 = vtanh.pop %v135
    %v140 = vtanh.pop %v137
    %v141 = vld [vmem:[#allocation2] sm:$0xff]
    %v142 = vld [vmem:[#allocation2 + $0x8] sm:$0xff]
    %v143 = vld [vmem:[#allocation2 + $0x10] sm:$0xff]
    %v144 = vld [vmem:[#allocation2 + $0x18] sm:$0xff]
    %v145 = vld [vmem:[#allocation2 + $0x20] sm:$0xff]
    %v146 = vld [vmem:[#allocation2 + $0x28] sm:$0xff]
    %v147 = vld [vmem:[#allocation2 + $0x30] sm:$0xff]
    %v148 = vld [vmem:[#allocation2 + $0x38] sm:$0xff]
    %v149 = vld [vmem:[#allocation2 + $0x40] sm:$0xff]
    %v150 = vld [vmem:[#allocation2 + $0x48] sm:$0xff]
    %v151 = vld [vmem:[#allocation2 + $0x50] sm:$0xff]
    %v152 = vld [vmem:[#allocation2 + $0x58] sm:$0xff]
    %v153 = vld [vmem:[#allocation2 + $0x60] sm:$0xff]
    %v154 = vld [vmem:[#allocation2 + $0x68] sm:$0xff]
    %v155 = vld [vmem:[#allocation2 + $0x70] sm:$0xff]
    %v156 = vld [vmem:[#allocation2 + $0x78] sm:$0xff]
    %v157 = vld [vmem:[#allocation2 + $0x80] sm:$0xff]
    %v158 = vld [vmem:[#allocation2 + $0x88] sm:$0xff]
    %v159 = vld [vmem:[#allocation2 + $0x90] sm:$0xff]
    %v160 = vld [vmem:[#allocation2 + $0x98] sm:$0xff]
    %v161 = vld [vmem:[#allocation2 + $0xa0] sm:$0xff]
    %v162 = vld [vmem:[#allocation2 + $0xa8] sm:$0xff]
    %v163 = vld [vmem:[#allocation2 + $0xb0] sm:$0xff]
    %v164 = vld [vmem:[#allocation2 + $0xb8] sm:$0xff]
    %v165 = vld [vmem:[#allocation2 + $0xc0] sm:$0xff]
    %v166 = vld [vmem:[#allocation2 + $0xc8] sm:$0xff]
    %v167 = vld [vmem:[#allocation2 + $0xd0] sm:$0xff]
    %v168 = vld [vmem:[#allocation2 + $0xd8] sm:$0xff]
    %v169 = vld [vmem:[#allocation2 + $0xe0] sm:$0xff]
    %v170 = vld [vmem:[#allocation2 + $0xe8] sm:$0xff]
    %v171 = vld [vmem:[#allocation2 + $0xf0] sm:$0xff]
    %v172 = vld [vmem:[#allocation2 + $0xf8] sm:$0xff]
    %v173 = vld [vmem:[#allocation2 + $0x100] sm:$0xff]
    %v174 = vld [vmem:[#allocation2 + $0x108] sm:$0xff]
    %v175 = vld [vmem:[#allocation2 + $0x110] sm:$0xff]
    %v176 = vld [vmem:[#allocation2 + $0x118] sm:$0xff]
    %v177 = vld [vmem:[#allocation2 + $0x120] sm:$0xff]
    %v178 = vld [vmem:[#allocation2 + $0x128] sm:$0xff]
    %v179 = vld [vmem:[#allocation2 + $0x130] sm:$0xff]
    %v180 = vld [vmem:[#allocation2 + $0x138] sm:$0xff]
    %v181 = vld [vmem:[%s4] sm:$0x3]
    %v183 = vlaneseq
    %v184 = vshrl.u32 %v183, 7
    %v185 = vsub.s32 0, %v184
    %v186 = vrot.slane %v181, %v185
    %v187 = vlaneseq
    %v188 = vshrl.u32 %v187, 7
    %v189 = vsub.s32 1, %v188
    %v190 = vrot.slane %v181, %v189
    %vm193 = vcmask 261120
    %v195 = vsel %vm193, %v140, 0
    %197 = vmatprep.subr.mxu0 %v142
    %198 = vmatpush1.msra.mxu0 %v141
    %199 = vmatprep.subr.mxu0 %v144
    %200 = vmatpush1.msra.mxu0 %v143
    %201 = vmatprep.subr.mxu0 %v146
    %202 = vmatpush1.msra.mxu0 %v145
    %203 = vmatprep.subr.mxu0 %v148
    %204 = vmatpush1.msra.mxu0 %v147
    %205 = vmatprep.subr.mxu0 %v150
    %206 = vmatpush1.msra.mxu0 %v149
    %207 = vmatprep.subr.mxu0 %v152
    %208 = vmatpush1.msra.mxu0 %v151
    %209 = vmatprep.subr.mxu0 %v154
    %210 = vmatpush1.msra.mxu0 %v153
    %211 = vmatprep.subr.mxu0 %v156
    %212 = vmatpush1.msra.mxu0 %v155
    %213 = vmatprep.subr.mxu0 %v158
    %214 = vmatpush1.msra.mxu0 %v157
    %215 = vmatprep.subr.mxu0 %v160
    %216 = vmatpush1.msra.mxu0 %v159
    %217 = vmatprep.subr.mxu0 %v162
    %218 = vmatpush1.msra.mxu0 %v161
    %219 = vmatprep.subr.mxu0 %v164
    %220 = vmatpush1.msra.mxu0 %v163
    %221 = vmatprep.subr.mxu0 %v166
    %222 = vmatpush1.msra.mxu0 %v165
    %223 = vmatprep.subr.mxu0 %v168
    %224 = vmatpush1.msra.mxu0 %v167
    %225 = vmatprep.subr.mxu0 %v170
    %226 = vmatpush1.msra.mxu0 %v169
    %227 = vmatprep.subr.mxu0 %v172
    %228 = vmatpush1.msra.mxu0 %v171
    %229 = vmatprep.subr.mxu0 %v174
    %230 = vmatpush1.msra.mxu0 %v173
    %231 = vmatprep.subr.mxu0 %v176
    %232 = vmatpush1.msra.mxu0 %v175
    %233 = vmatprep.subr.mxu0 %v178
    %234 = vmatpush1.msra.mxu0 %v177
    %235 = vmatprep.subr.mxu0 %v180
    %236 = vmatpush1.msra.mxu0 %v179
    %237 = vmatprep.subr.mxu0 0.0
    %238 = vmatpush1.msra.mxu0 0.0
    %239 = vmatprep.subr.mxu0 0.0
    %240 = vmatpush1.msra.mxu0 0.0
    %241 = vmatprep.subr.mxu0 0.0
    %242 = vmatpush1.msra.mxu0 0.0
    %243 = vmatprep.subr.mxu0 0.0
    %244 = vmatpush1.msra.mxu0 0.0
    %245 = vmatprep.subr.mxu0 0.0
    %246 = vmatpush1.msra.mxu0 0.0
    %247 = vmatprep.subr.mxu0 0.0
    %248 = vmatpush1.msra.mxu0 0.0
    %249 = vmatprep.subr.mxu0 0.0
    %250 = vmatpush1.msra.mxu0 0.0
    %251 = vmatprep.subr.mxu0 0.0
    %252 = vmatpush1.msra.mxu0 0.0
    %253 = vmatprep.subr.mxu0 0.0
    %254 = vmatpush1.msra.mxu0 0.0
    %255 = vmatprep.subr.mxu0 0.0
    %256 = vmatpush1.msra.mxu0 0.0
    %257 = vmatprep.subr.mxu0 0.0
    %258 = vmatpush1.msra.mxu0 0.0
    %259 = vmatprep.subr.mxu0 0.0
    %260 = vmatpush1.msra.mxu0 0.0
    %261 = vmatprep.mubr.f32.mxu0 %v195
    %262 = vmatmul.mubr.f32.gmra.mrb[0].mxu0 %v139
    %v263 = vpop.f32.mrb[0].mxu0
    %v264 = vadd.f32 %v186, %v263
    %v265 = vpop.f32.mrb[0].mxu0
    %v266 = vadd.f32 %v190, %v265
    %267 = vdwg.mxu0
    %v268 = vtanh.pop %v264
    %v269 = vtanh.pop %v266
    %s270 = scalar_lea.vmem [#allocation2], 320
    %v271 = vld [vmem:[%s270] sm:$0xff]
    %v272 = vld [vmem:[%s270 + $0x8] sm:$0xff]
    %v273 = vld [vmem:[%s270 + $0x10] sm:$0xff]
    %v274 = vld [vmem:[%s270 + $0x18] sm:$0xff]
    %v275 = vld [vmem:[%s270 + $0x20] sm:$0xff]
    %v276 = vld [vmem:[%s270 + $0x28] sm:$0xff]
    %v277 = vld [vmem:[%s270 + $0x30] sm:$0xff]
    %v278 = vld [vmem:[%s270 + $0x38] sm:$0xff]
    %v279 = vld [vmem:[%s270 + $0x40] sm:$0xff]
    %v280 = vld [vmem:[%s270 + $0x48] sm:$0xff]
    %v281 = vld [vmem:[%s270 + $0x50] sm:$0xff]
    %v282 = vld [vmem:[%s270 + $0x58] sm:$0xff]
    %v283 = vld [vmem:[%s270 + $0x60] sm:$0xff]
    %v284 = vld [vmem:[%s270 + $0x68] sm:$0xff]
    %v285 = vld [vmem:[%s270 + $0x70] sm:$0xff]
    %v286 = vld [vmem:[%s270 + $0x78] sm:$0xff]
    %v287 = vld [vmem:[%s270 + $0x80] sm:$0xff]
    %v288 = vld [vmem:[%s270 + $0x88] sm:$0xff]
    %v289 = vld [vmem:[%s270 + $0x90] sm:$0xff]
    %v290 = vld [vmem:[%s270 + $0x98] sm:$0xff]
    %v291 = vld [vmem:[%s270 + $0xa0] sm:$0xff]
    %v292 = vld [vmem:[%s270 + $0xa8] sm:$0xff]
    %v293 = vld [vmem:[%s270 + $0xb0] sm:$0xff]
    %v294 = vld [vmem:[%s270 + $0xb8] sm:$0xff]
    %v295 = vld [vmem:[%s270 + $0xc0] sm:$0xff]
    %v296 = vld [vmem:[%s270 + $0xc8] sm:$0xff]
    %v297 = vld [vmem:[%s270 + $0xd0] sm:$0xff]
    %v298 = vld [vmem:[%s270 + $0xd8] sm:$0xff]
    %v299 = vld [vmem:[%s270 + $0xe0] sm:$0xff]
    %v300 = vld [vmem:[%s270 + $0xe8] sm:$0xff]
    %v301 = vld [vmem:[%s270 + $0xf0] sm:$0xff]
    %v302 = vld [vmem:[%s270 + $0xf8] sm:$0xff]
    %v303 = vld [vmem:[%s270 + $0x100] sm:$0xff]
    %v304 = vld [vmem:[%s270 + $0x108] sm:$0xff]
    %v305 = vld [vmem:[%s270 + $0x110] sm:$0xff]
    %v306 = vld [vmem:[%s270 + $0x118] sm:$0xff]
    %v307 = vld [vmem:[%s270 + $0x120] sm:$0xff]
    %v308 = vld [vmem:[%s270 + $0x128] sm:$0xff]
    %v309 = vld [vmem:[%s270 + $0x130] sm:$0xff]
    %v310 = vld [vmem:[%s270 + $0x138] sm:$0xff]
    %s311 = scalar_lea.vmem %s4, 2
    %v312 = vld [vmem:[%s311] sm:$0x3]
    %v314 = vlaneseq
    %v315 = vshrl.u32 %v314, 7
    %v316 = vsub.s32 0, %v315
    %v317 = vrot.slane %v312, %v316
    %v318 = vlaneseq
    %v319 = vshrl.u32 %v318, 7
    %v320 = vsub.s32 1, %v319
    %v321 = vrot.slane %v312, %v320
    %v325 = vsel %vm193, %v269, 0
    %327 = vmatprep.subr.mxu0 %v272
    %328 = vmatpush1.msra.mxu0 %v271
    %329 = vmatprep.subr.mxu0 %v274
    %330 = vmatpush1.msra.mxu0 %v273
    %331 = vmatprep.subr.mxu0 %v276
    %332 = vmatpush1.msra.mxu0 %v275
    %333 = vmatprep.subr.mxu0 %v278
    %334 = vmatpush1.msra.mxu0 %v277
    %335 = vmatprep.subr.mxu0 %v280
    %336 = vmatpush1.msra.mxu0 %v279
    %337 = vmatprep.subr.mxu0 %v282
    %338 = vmatpush1.msra.mxu0 %v281
    %339 = vmatprep.subr.mxu0 %v284
    %340 = vmatpush1.msra.mxu0 %v283
    %341 = vmatprep.subr.mxu0 %v286
    %342 = vmatpush1.msra.mxu0 %v285
    %343 = vmatprep.subr.mxu0 %v288
    %344 = vmatpush1.msra.mxu0 %v287
    %345 = vmatprep.subr.mxu0 %v290
    %346 = vmatpush1.msra.mxu0 %v289
    %347 = vmatprep.subr.mxu0 %v292
    %348 = vmatpush1.msra.mxu0 %v291
    %349 = vmatprep.subr.mxu0 %v294
    %350 = vmatpush1.msra.mxu0 %v293
    %351 = vmatprep.subr.mxu0 %v296
    %352 = vmatpush1.msra.mxu0 %v295
    %353 = vmatprep.subr.mxu0 %v298
    %354 = vmatpush1.msra.mxu0 %v297
    %355 = vmatprep.subr.mxu0 %v300
    %356 = vmatpush1.msra.mxu0 %v299
    %357 = vmatprep.subr.mxu0 %v302
    %358 = vmatpush1.msra.mxu0 %v301
    %359 = vmatprep.subr.mxu0 %v304
    %360 = vmatpush1.msra.mxu0 %v303
    %361 = vmatprep.subr.mxu0 %v306
    %362 = vmatpush1.msra.mxu0 %v305
    %363 = vmatprep.subr.mxu0 %v308
    %364 = vmatpush1.msra.mxu0 %v307
    %365 = vmatprep.subr.mxu0 %v310
    %366 = vmatpush1.msra.mxu0 %v309
    %367 = vmatprep.subr.mxu0 0.0
    %368 = vmatpush1.msra.mxu0 0.0
    %369 = vmatprep.subr.mxu0 0.0
    %370 = vmatpush1.msra.mxu0 0.0
    %371 = vmatprep.subr.mxu0 0.0
    %372 = vmatpush1.msra.mxu0 0.0
    %373 = vmatprep.subr.mxu0 0.0
    %374 = vmatpush1.msra.mxu0 0.0
    %375 = vmatprep.subr.mxu0 0.0
    %376 = vmatpush1.msra.mxu0 0.0
    %377 = vmatprep.subr.mxu0 0.0
    %378 = vmatpush1.msra.mxu0 0.0
    %379 = vmatprep.subr.mxu0 0.0
    %380 = vmatpush1.msra.mxu0 0.0
    %381 = vmatprep.subr.mxu0 0.0
    %382 = vmatpush1.msra.mxu0 0.0
    %383 = vmatprep.subr.mxu0 0.0
    %384 = vmatpush1.msra.mxu0 0.0
    %385 = vmatprep.subr.mxu0 0.0
    %386 = vmatpush1.msra.mxu0 0.0
    %387 = vmatprep.subr.mxu0 0.0
    %388 = vmatpush1.msra.mxu0 0.0
    %389 = vmatprep.subr.mxu0 0.0
    %390 = vmatpush1.msra.mxu0 0.0
    %391 = vmatprep.mubr.f32.mxu0 %v325
    %392 = vmatmul.mubr.f32.gmra.mrb[0].mxu0 %v268
    %v393 = vpop.f32.mrb[0].mxu0
    %v394 = vadd.f32 %v317, %v393
    %v395 = vpop.f32.mrb[0].mxu0
    %v396 = vadd.f32 %v321, %v395
    %397 = vdwg.mxu0
    %v398 = vtanh.pop %v394
    %v399 = vtanh.pop %v396
    %s400 = scalar_lea.vmem [#allocation2], 640
    %v401 = vld [vmem:[%s400] sm:$0xff]
    %v402 = vld [vmem:[%s400 + $0x8] sm:$0xff]
    %v403 = vld [vmem:[%s400 + $0x10] sm:$0xff]
    %v404 = vld [vmem:[%s400 + $0x18] sm:$0xff]
    %v405 = vld [vmem:[%s400 + $0x20] sm:$0xff]
    %v406 = vld [vmem:[%s400 + $0x28] sm:$0xff]
    %v407 = vld [vmem:[%s400 + $0x30] sm:$0xff]
    %v408 = vld [vmem:[%s400 + $0x38] sm:$0xff]
    %v409 = vld [vmem:[%s400 + $0x40] sm:$0xff]
    %v410 = vld [vmem:[%s400 + $0x48] sm:$0xff]
    %v411 = vld [vmem:[%s400 + $0x50] sm:$0xff]
    %v412 = vld [vmem:[%s400 + $0x58] sm:$0xff]
    %v413 = vld [vmem:[%s400 + $0x60] sm:$0xff]
    %v414 = vld [vmem:[%s400 + $0x68] sm:$0xff]
    %v415 = vld [vmem:[%s400 + $0x70] sm:$0xff]
    %v416 = vld [vmem:[%s400 + $0x78] sm:$0xff]
    %v417 = vld [vmem:[%s400 + $0x80] sm:$0xff]
    %v418 = vld [vmem:[%s400 + $0x88] sm:$0xff]
    %v419 = vld [vmem:[%s400 + $0x90] sm:$0xff]
    %v420 = vld [vmem:[%s400 + $0x98] sm:$0xff]
    %v421 = vld [vmem:[%s400 + $0xa0] sm:$0xff]
    %v422 = vld [vmem:[%s400 + $0xa8] sm:$0xff]
    %v423 = vld [vmem:[%s400 + $0xb0] sm:$0xff]
    %v424 = vld [vmem:[%s400 + $0xb8] sm:$0xff]
    %v425 = vld [vmem:[%s400 + $0xc0] sm:$0xff]
    %v426 = vld [vmem:[%s400 + $0xc8] sm:$0xff]
    %v427 = vld [vmem:[%s400 + $0xd0] sm:$0xff]
    %v428 = vld [vmem:[%s400 + $0xd8] sm:$0xff]
    %v429 = vld [vmem:[%s400 + $0xe0] sm:$0xff]
    %v430 = vld [vmem:[%s400 + $0xe8] sm:$0xff]
    %v431 = vld [vmem:[%s400 + $0xf0] sm:$0xff]
    %v432 = vld [vmem:[%s400 + $0xf8] sm:$0xff]
    %v433 = vld [vmem:[%s400 + $0x100] sm:$0xff]
    %v434 = vld [vmem:[%s400 + $0x108] sm:$0xff]
    %v435 = vld [vmem:[%s400 + $0x110] sm:$0xff]
    %v436 = vld [vmem:[%s400 + $0x118] sm:$0xff]
    %v437 = vld [vmem:[%s400 + $0x120] sm:$0xff]
    %v438 = vld [vmem:[%s400 + $0x128] sm:$0xff]
    %v439 = vld [vmem:[%s400 + $0x130] sm:$0xff]
    %v440 = vld [vmem:[%s400 + $0x138] sm:$0xff]
    %s441 = scalar_lea.vmem %s4, 4
    %v442 = vld [vmem:[%s441] sm:$0x3]
    %v444 = vlaneseq
    %v445 = vshrl.u32 %v444, 7
    %v446 = vsub.s32 0, %v445
    %v447 = vrot.slane %v442, %v446
    %v448 = vlaneseq
    %v449 = vshrl.u32 %v448, 7
    %v450 = vsub.s32 1, %v449
    %v451 = vrot.slane %v442, %v450
    %v455 = vsel %vm193, %v399, 0
    %457 = vmatprep.subr.mxu0 %v402
    %458 = vmatpush1.msra.mxu0 %v401
    %459 = vmatprep.subr.mxu0 %v404
    %460 = vmatpush1.msra.mxu0 %v403
    %461 = vmatprep.subr.mxu0 %v406
    %462 = vmatpush1.msra.mxu0 %v405
    %463 = vmatprep.subr.mxu0 %v408
    %464 = vmatpush1.msra.mxu0 %v407
    %465 = vmatprep.subr.mxu0 %v410
    %466 = vmatpush1.msra.mxu0 %v409
    %467 = vmatprep.subr.mxu0 %v412
    %468 = vmatpush1.msra.mxu0 %v411
    %469 = vmatprep.subr.mxu0 %v414
    %470 = vmatpush1.msra.mxu0 %v413
    %471 = vmatprep.subr.mxu0 %v416
    %472 = vmatpush1.msra.mxu0 %v415
    %473 = vmatprep.subr.mxu0 %v418
    %474 = vmatpush1.msra.mxu0 %v417
    %475 = vmatprep.subr.mxu0 %v420
    %476 = vmatpush1.msra.mxu0 %v419
    %477 = vmatprep.subr.mxu0 %v422
    %478 = vmatpush1.msra.mxu0 %v421
    %479 = vmatprep.subr.mxu0 %v424
    %480 = vmatpush1.msra.mxu0 %v423
    %481 = vmatprep.subr.mxu0 %v426
    %482 = vmatpush1.msra.mxu0 %v425
    %483 = vmatprep.subr.mxu0 %v428
    %484 = vmatpush1.msra.mxu0 %v427
    %485 = vmatprep.subr.mxu0 %v430
    %486 = vmatpush1.msra.mxu0 %v429
    %487 = vmatprep.subr.mxu0 %v432
    %488 = vmatpush1.msra.mxu0 %v431
    %489 = vmatprep.subr.mxu0 %v434
    %490 = vmatpush1.msra.mxu0 %v433
    %491 = vmatprep.subr.mxu0 %v436
    %492 = vmatpush1.msra.mxu0 %v435
    %493 = vmatprep.subr.mxu0 %v438
    %494 = vmatpush1.msra.mxu0 %v437
    %495 = vmatprep.subr.mxu0 %v440
    %496 = vmatpush1.msra.mxu0 %v439
    %497 = vmatprep.subr.mxu0 0.0
    %498 = vmatpush1.msra.mxu0 0.0
    %499 = vmatprep.subr.mxu0 0.0
    %500 = vmatpush1.msra.mxu0 0.0
    %501 = vmatprep.subr.mxu0 0.0
    %502 = vmatpush1.msra.mxu0 0.0
    %503 = vmatprep.subr.mxu0 0.0
    %504 = vmatpush1.msra.mxu0 0.0
    %505 = vmatprep.subr.mxu0 0.0
    %506 = vmatpush1.msra.mxu0 0.0
    %507 = vmatprep.subr.mxu0 0.0
    %508 = vmatpush1.msra.mxu0 0.0
    %509 = vmatprep.subr.mxu0 0.0
    %510 = vmatpush1.msra.mxu0 0.0
    %511 = vmatprep.subr.mxu0 0.0
    %512 = vmatpush1.msra.mxu0 0.0
    %513 = vmatprep.subr.mxu0 0.0
    %514 = vmatpush1.msra.mxu0 0.0
    %515 = vmatprep.subr.mxu0 0.0
    %516 = vmatpush1.msra.mxu0 0.0
    %517 = vmatprep.subr.mxu0 0.0
    %518 = vmatpush1.msra.mxu0 0.0
    %519 = vmatprep.subr.mxu0 0.0
    %520 = vmatpush1.msra.mxu0 0.0
    %521 = vmatprep.mubr.f32.mxu0 %v455
    %522 = vmatmul.mubr.f32.gmra.mrb[0].mxu0 %v398
    %v523 = vpop.f32.mrb[0].mxu0
    %v524 = vadd.f32 %v447, %v523
    %v525 = vpop.f32.mrb[0].mxu0
    %v526 = vadd.f32 %v451, %v525
    %527 = vdwg.mxu0
    %v528 = vtanh.pop %v524
    %v529 = vtanh.pop %v526
    %v530 = vld [vmem:[%s5] sm:$0xff]
    %v531 = vld [vmem:[%s5 + $0x8] sm:$0xff]
    %v532 = vld [vmem:[%s6] sm:$0xff]
    %534 = vset.pattern.permute.xlu0 0
    %535 = vperm.xlu0 %534, %v532
    %v536 = vpop.permute.xlu0 %535
    %v539 = vsel %vm193, %v531, 0
    %v542 = vsel %vm193, %v529, 0
    %544 = vmatprep.subr.mxu0 %v542
    %545 = vmatpush1.xpose.msra.mxu0 %v528
    %546 = vmatprep.subr.mxu0 0.0
    %547 = vmatpush1.xpose.msra.mxu0 0.0
    %548 = vmatprep.subr.mxu0 0.0
    %549 = vmatpush1.xpose.msra.mxu0 0.0
    %550 = vmatprep.subr.mxu0 0.0
    %551 = vmatpush1.xpose.msra.mxu0 0.0
    %552 = vmatprep.subr.mxu0 0.0
    %553 = vmatpush1.xpose.msra.mxu0 0.0
    %554 = vmatprep.subr.mxu0 0.0
    %555 = vmatpush1.xpose.msra.mxu0 0.0
    %556 = vmatprep.subr.mxu0 0.0
    %557 = vmatpush1.xpose.msra.mxu0 0.0
    %558 = vmatprep.subr.mxu0 0.0
    %559 = vmatpush1.xpose.msra.mxu0 0.0
    %560 = vmatprep.subr.mxu0 0.0
    %561 = vmatpush1.xpose.msra.mxu0 0.0
    %562 = vmatprep.subr.mxu0 0.0
    %563 = vmatpush1.xpose.msra.mxu0 0.0
    %564 = vmatprep.subr.mxu0 0.0
    %565 = vmatpush1.xpose.msra.mxu0 0.0
    %566 = vmatprep.subr.mxu0 0.0
    %567 = vmatpush1.xpose.msra.mxu0 0.0
    %568 = vmatprep.subr.mxu0 0.0
    %569 = vmatpush1.xpose.msra.mxu0 0.0
    %570 = vmatprep.subr.mxu0 0.0
    %571 = vmatpush1.xpose.msra.mxu0 0.0
    %572 = vmatprep.subr.mxu0 0.0
    %573 = vmatpush1.xpose.msra.mxu0 0.0
    %574 = vmatprep.subr.mxu0 0.0
    %575 = vmatpush1.xpose.msra.mxu0 0.0
    %576 = vmatprep.subr.mxu0 0.0
    %577 = vmatpush1.xpose.msra.mxu0 0.0
    %578 = vmatprep.subr.mxu0 0.0
    %579 = vmatpush1.xpose.msra.mxu0 0.0
    %580 = vmatprep.subr.mxu0 0.0
    %581 = vmatpush1.xpose.msra.mxu0 0.0
    %582 = vmatprep.subr.mxu0 0.0
    %583 = vmatpush1.xpose.msra.mxu0 0.0
    %584 = vmatprep.subr.mxu0 0.0
    %585 = vmatpush1.xpose.msra.mxu0 0.0
    %586 = vmatprep.subr.mxu0 0.0
    %587 = vmatpush1.xpose.msra.mxu0 0.0
    %588 = vmatprep.subr.mxu0 0.0
    %589 = vmatpush1.xpose.msra.mxu0 0.0
    %590 = vmatprep.subr.mxu0 0.0
    %591 = vmatpush1.xpose.msra.mxu0 0.0
    %592 = vmatprep.subr.mxu0 0.0
    %593 = vmatpush1.xpose.msra.mxu0 0.0
    %594 = vmatprep.subr.mxu0 0.0
    %595 = vmatpush1.xpose.msra.mxu0 0.0
    %596 = vmatprep.subr.mxu0 0.0
    %597 = vmatpush1.xpose.msra.mxu0 0.0
    %598 = vmatprep.subr.mxu0 0.0
    %599 = vmatpush1.xpose.msra.mxu0 0.0
    %600 = vmatprep.subr.mxu0 0.0
    %601 = vmatpush1.xpose.msra.mxu0 0.0
    %602 = vmatprep.subr.mxu0 0.0
    %603 = vmatpush1.xpose.msra.mxu0 0.0
    %604 = vmatprep.subr.mxu0 0.0
    %605 = vmatpush1.xpose.msra.mxu0 0.0
    %606 = vmatprep.subr.mxu0 0.0
    %607 = vmatpush1.xpose.msra.mxu0 0.0
    %608 = vmatprep.mubr.f32.mxu0 %v539
    %609 = vmatmul.mubr.f32.gmra.mrb[0].mxu0 %v530
    %v610 = vpop.f32.mrb[0].mxu0
    %v611 = vadd.f32 %v536, %v610
    %v612 = vpop.f32.mrb[0].mxu0
    %613 = vdwg.mxu0
    %vm614 = vcmp.gt.f32.partialorder %v611, 20.0
    %v615 = vmin.f32 %v611, 20.0
    %v616 = vmul.f32 %v615, 1.442695
    %v617 = vpow.pop %v616
    %v618 = vadd.f32 %v617, 1.0
    %v619 = vlog2.pop %v618
    %v620 = vmul.f32 %v619, 0.6931472
    %v621 = vsel %vm614, %v611, %v620
    %v622 = vadd.f32 %v621, 1.5
    %v623 = vadd.f32 %v621, 0.1
    %v624 = vadd.f32 %v621, 20.0
    %v626 = vrot.slane %v623, 1
    %v628 = vmul.f32 %v622, %v626
    %v629 = vsub.f32 %v621, 1.0
    %v631 = vrot.slane %v629, 3
    %v633 = vmul.f32 %v628, %v631
    %v634 = vsub.f32 8600000.0, %v621
    %v635 = vld [vmem:[%s7] sm:$0xff]
    %v636 = vld [vmem:[%s7 + $0x8] sm:$0xff]
    %vm639 = vcmask 1040384
    %v640 = vrot.slane %v635, 7
    %v641 = vrot.slane %v636, 7
    %v642 = vsel %vm639, %v640, %v641
    %v645 = vsub.f32 %v635, %v640
    %v646 = vsub.f32 %v636, %v642
    %647 = vset.pattern.permute.xlu0 0
    %648 = vperm.xlu0 %647, %v635
    %v649 = vpop.permute.xlu0 %648
    %651 = vset.pattern.permute.xlu0 0
    %652 = vperm.xlu0 %651, %v636
    %v653 = vpop.permute.xlu0 %652
    %v655 = vlaneseq
    %v656 = vshrl.u32 %v655, 7
    %v657 = vsub.s32 4, %v656
    %v658 = vrot.slane %v624, %v657
    %v659 = vsub.f32 %v649, %v658
    %v660 = vsub.f32 %v653, %v658
    %v661 = vmul.f32 %v659, 0.5714286
    %v662 = vmul.f32 %v660, 0.5714286
    %v663 = vsub.f32 0.0, %v661
    %v664 = vsub.f32 0.0, %v662
    %v665 = vmul.f32 %v663, 1.442695
    %v666 = vpow.pop %v665
    %v667 = vmul.f32 %v664, 1.442695
    %v668 = vpow.pop %v667
    %v669 = vadd.f32 %v666, 1.0
    %v670 = vadd.f32 %v668, 1.0
    %v671 = vrcp.pop %v669
    %v672 = vmul.f32 1.0, %v671
    %v673 = vrcp.pop %v670
    %v674 = vmul.f32 1.0, %v673
    %v675 = vlaneseq
    %v676 = vshrl.u32 %v675, 7
    %v677 = vsub.s32 0, %v676
    %v678 = vrot.slane %v633, %v677
    %v679 = vmul.f32 %v672, %v678
    %v680 = vmul.f32 %v674, %v678
    %v681 = vlaneseq
    %v682 = vshrl.u32 %v681, 7
    %v683 = vsub.s32 0, %v682
    %v684 = vrot.slane %v628, %v683
    %v685 = vadd.f32 %v679, %v684
    %v686 = vadd.f32 %v680, %v684
    %v687 = vmul.f32 %v685, 1.1627907e-07
    %v688 = vmul.f32 %v686, 1.1627907e-07
    %v689 = vmul.f32 %v645, 0.33333334
    %v690 = vmul.f32 %v646, 0.33333334
    %vm693 = vcmask 1046528
    %v694 = vrot.slane %v689, 1
    %v695 = vrot.slane %v690, 1
    %v696 = vsel %vm693, %v694, %v695
    %v699 = vadd.f32 %v635, %v696
    %v700 = vadd.f32 %v636, %v695
    %702 = vset.pattern.permute.xlu0 0
    %703 = vperm.xlu0 %702, %v699
    %v704 = vpop.permute.xlu0 %703
    %707 = vset.pattern.permute.xlu0 0
    %708 = vperm.xlu0 %707, %v700
    %v709 = vpop.permute.xlu0 %708
    %v711 = vsub.f32 %v704, %v658
    %v712 = vsub.f32 %v709, %v658
    %v713 = vmul.f32 %v711, 0.5714286
    %v714 = vmul.f32 %v712, 0.5714286
    %v715 = vsub.f32 0.0, %v713
    %v716 = vsub.f32 0.0, %v714
    %v717 = vmul.f32 %v715, 1.442695
    %v718 = vpow.pop %v717
    %v719 = vmul.f32 %v716, 1.442695
    %v720 = vpow.pop %v719
    %v721 = vadd.f32 %v718, 1.0
    %v722 = vadd.f32 %v720, 1.0
    %v723 = vrcp.pop %v721
    %v724 = vmul.f32 1.0, %v723
    %v725 = vrcp.pop %v722
    %v726 = vmul.f32 1.0, %v725
    %v727 = vmul.f32 %v724, %v678
    %v728 = vmul.f32 %v726, %v678
    %v729 = vadd.f32 %v727, %v684
    %v730 = vadd.f32 %v728, %v684
    %v731 = vmul.f32 %v729, 1.1627907e-07
    %v732 = vmul.f32 %v730, 1.1627907e-07
    %v733 = vmul.f32 %v645, 2.0
    %v734 = vmul.f32 %v646, 2.0
    %v735 = vmul.f32 %v733, 0.33333334
    %v736 = vmul.f32 %v734, 0.33333334
    %v739 = vrot.slane %v735, 1
    %v740 = vrot.slane %v736, 1
    %v741 = vsel %vm693, %v739, %v740
    %v744 = vadd.f32 %v635, %v741
    %v745 = vadd.f32 %v636, %v740
    %747 = vset.pattern.permute.xlu0 0
    %748 = vperm.xlu0 %747, %v744
    %v749 = vpop.permute.xlu0 %748
    %752 = vset.pattern.permute.xlu0 0
    %753 = vperm.xlu0 %752, %v745
    %v754 = vpop.permute.xlu0 %753
    %v756 = vsub.f32 %v749, %v658
    %v757 = vsub.f32 %v754, %v658
    %v758 = vmul.f32 %v756, 0.5714286
    %v759 = vmul.f32 %v757, 0.5714286
    %v760 = vsub.f32 0.0, %v758
    %v761 = vsub.f32 0.0, %v759
    %v762 = vmul.f32 %v760, 1.442695
    %v763 = vpow.pop %v762
    %v764 = vmul.f32 %v761, 1.442695
    %v765 = vpow.pop %v764
    %v766 = vadd.f32 %v763, 1.0
    %v767 = vadd.f32 %v765, 1.0
    %v768 = vrcp.pop %v766
    %v769 = vmul.f32 1.0, %v768
    %v770 = vrcp.pop %v767
    %v771 = vmul.f32 1.0, %v770
    %v772 = vmul.f32 %v769, %v678
    %v773 = vmul.f32 %v771, %v678
    %v774 = vadd.f32 %v772, %v684
    %v775 = vadd.f32 %v773, %v684
    %v776 = vmul.f32 %v774, 1.1627907e-07
    %v777 = vmul.f32 %v775, 1.1627907e-07
    %779 = vset.pattern.permute.xlu0 0
    %780 = vperm.xlu0 %779, %v645
    %v781 = vpop.permute.xlu0 %780
    %784 = vset.pattern.permute.xlu0 0
    %785 = vperm.xlu0 %784, %v646
    %v786 = vpop.permute.xlu0 %785
    %v788 = vmul.f32 %v781, 0.33333334
    %v789 = vmul.f32 %v786, 0.33333334
    %v790 = vmul.f32 %v781, 0.125
    %v791 = vmul.f32 %v786, 0.125
    %vm792 = vcmask 57344
    %793 = vst.msk [vmem:[%s8] sm:$0x1] %vm792, 0.0
    %v795 = vrot.slane %v634, 2
    %v797 = vmul.f32 %v687, %v795
    %v799 = vrot.slane %v621, 2
    %v801 = vmul.f32 %v797, %v799
    %v802 = vrot.slane %v621, 1
    %v804 = vmul.f32 %v623, %v802
    %v805 = vsub.f32 0.0, %v801
    %v807 = vrot.slane %v804, 1
    %v809 = vsub.f32 %v801, %v807
    %v811 = vrot.slane %v805, 7
    %v813 = vmul.f32 %v788, %v811
    %v815 = vrot.slane %v813, 7
    %v817 = vadd.f32 %v634, %v815
    %v819 = vrot.slane %v809, 7
    %v821 = vmul.f32 %v788, %v819
    %v823 = vrot.slane %v821, 7
    %v825 = vadd.f32 %v621, %v823
    %v827 = vrot.slane %v817, 2
    %v829 = vmul.f32 %v731, %v827
    %v831 = vrot.slane %v825, 2
    %v833 = vmul.f32 %v829, %v831
    %v834 = vrot.slane %v825, 1
    %v836 = vmul.f32 %v623, %v834
    %v837 = vsub.f32 0.0, %v833
    %v839 = vrot.slane %v836, 1
    %v841 = vsub.f32 %v833, %v839
    %v843 = vrot.slane %v837, 7
    %v845 = vmul.f32 %v781, %v843
    %v847 = vrot.slane %v845, 7
    %v849 = vadd.f32 %v634, %v847
    %v850 = vsub.f32 %v849, %v815
    %v852 = vrot.slane %v841, 7
    %v854 = vmul.f32 %v781, %v852
    %v856 = vrot.slane %v854, 7
    %v858 = vadd.f32 %v621, %v856
    %v859 = vsub.f32 %v858, %v823
    %v861 = vrot.slane %v850, 2
    %v863 = vmul.f32 %v776, %v861
    %v865 = vrot.slane %v859, 2
    %v867 = vmul.f32 %v863, %v865
    %v868 = vrot.slane %v859, 1
    %v870 = vmul.f32 %v623, %v868
    %v871 = vsub.f32 0.0, %v867
    %v873 = vrot.slane %v870, 1
    %v875 = vsub.f32 %v867, %v873
    %v876 = vsub.f32 %v805, %v837
    %v877 = vadd.f32 %v876, %v871
    %v879 = vrot.slane %v877, 7
    %v881 = vmul.f32 %v781, %v879
    %v883 = vrot.slane %v881, 7
    %v885 = vadd.f32 %v634, %v883
    %v886 = vsub.f32 %v809, %v841
    %v887 = vadd.f32 %v886, %v875
    %v889 = vrot.slane %v887, 7
    %v891 = vmul.f32 %v781, %v889
    %v893 = vrot.slane %v891, 7
    %v895 = vadd.f32 %v621, %v893
    %v897 = vrot.slane %v885, 1
    %v899 = vmul.f32 %v687, %v897
    %v901 = vrot.slane %v895, 1
    %v903 = vmul.f32 %v899, %v901
    %v904 = vmul.f32 %v623, %v901
    %v905 = vsub.f32 0.0, %v903
    %v906 = vsub.f32 %v903, %v904
    %v907 = vadd.f32 %v837, %v871
    %v908 = vmul.f32 %v907, 3.0
    %v909 = vadd.f32 %v805, %v908
    %v911 = vrot.slane %v905, 1
    %v913 = vadd.f32 %v909, %v911
    %v915 = vrot.slane %v790, 1
    %v917 = vmul.f32 %v913, %v915
    %v919 = vrot.slane %v917, 6
    %v921 = vadd.f32 %v634, %v919
    %v922 = vadd.f32 %v841, %v875
    %v923 = vmul.f32 %v922, 3.0
    %v924 = vadd.f32 %v809, %v923
    %v926 = vrot.slane %v906, 1
    %v928 = vadd.f32 %v924, %v926
    %v929 = vmul.f32 %v928, %v915
    %v931 = vrot.slane %v929, 6
    %v933 = vadd.f32 %v621, %v931
    %v934 = vsub.f32 %v634, %v921
    %vm935 = vcmask 59394
    %936 = vst.msk [vmem:[%s8 - $0x1] sm:$0x4] %vm935, %v934
    %v938 = vrot.slane %v921, 1
    %v940 = vmul.f32 %v687, %v938
    %v942 = vrot.slane %v933, 1
    %v944 = vmul.f32 %v940, %v942
    %v945 = vmul.f32 %v623, %v942
    %v946 = vsub.f32 0.0, %v944
    %v947 = vsub.f32 %v944, %v945
    %v949 = vrot.slane %v946, 7
    %v951 = vmul.f32 %v788, %v949
    %v952 = vadd.f32 %v921, %v951
    %v954 = vrot.slane %v947, 7
    %v956 = vmul.f32 %v788, %v954
    %v957 = vadd.f32 %v933, %v956
    %v959 = vrot.slane %v952, 1
    %v961 = vmul.f32 %v731, %v959
    %v963 = vrot.slane %v957, 1
    %v965 = vmul.f32 %v961, %v963
    %v966 = vmul.f32 %v623, %v963
    %v967 = vsub.f32 0.0, %v965
    %v968 = vsub.f32 %v965, %v966
    %v970 = vrot.slane %v967, 7
    %v972 = vmul.f32 %v781, %v970
    %v973 = vadd.f32 %v921, %v972
    %v974 = vsub.f32 %v973, %v951
    %v976 = vrot.slane %v968, 7
    %v978 = vmul.f32 %v781, %v976
    %v979 = vadd.f32 %v933, %v978
    %v980 = vsub.f32 %v979, %v956
    %v982 = vrot.slane %v974, 1
    %v984 = vmul.f32 %v776, %v982
    %v986 = vrot.slane %v980, 1
    %v988 = vmul.f32 %v984, %v986
    %v989 = vmul.f32 %v623, %v986
    %v990 = vsub.f32 0.0, %v988
    %v991 = vsub.f32 %v988, %v989
    %v992 = vsub.f32 %v946, %v967
    %v993 = vadd.f32 %v992, %v990
    %v995 = vrot.slane %v993, 7
    %v997 = vmul.f32 %v781, %v995
    %v998 = vadd.f32 %v921, %v997
    %v999 = vsub.f32 %v947, %v968
    %v1000 = vadd.f32 %v999, %v991
    %v1002 = vrot.slane %v1000, 7
    %v1004 = vmul.f32 %v781, %v1002
    %v1005 = vadd.f32 %v933, %v1004
    %v1006 = vmul.f32 %v687, %v998
    %v1007 = vmul.f32 %v1006, %v1005
    %v1009 = vrot.slane %v1005, 1
    %v1011 = vmul.f32 %v623, %v1009
    %v1012 = vsub.f32 0.0, %v1007
    %v1014 = vrot.slane %v1011, 7
    %v1016 = vsub.f32 %v1007, %v1014
    %v1017 = vadd.f32 %v967, %v990
    %v1018 = vmul.f32 %v1017, 3.0
    %v1019 = vadd.f32 %v946, %v1018
    %v1021 = vrot.slane %v1012, 1
    %v1023 = vadd.f32 %v1019, %v1021
    %v1024 = vmul.f32 %v1023, %v915
    %v1026 = vrot.slane %v1024, 7
    %v1028 = vadd.f32 %v921, %v1026
    %v1029 = vadd.f32 %v968, %v991
    %v1030 = vmul.f32 %v1029, 3.0
    %v1031 = vadd.f32 %v947, %v1030
    %v1033 = vrot.slane %v1016, 1
    %v1035 = vadd.f32 %v1031, %v1033
    %v1036 = vmul.f32 %v1035, %v915
    %v1038 = vrot.slane %v1036, 7
    %v1040 = vadd.f32 %v933, %v1038
    %v1041 = vsub.f32 %v921, %v1028
    %1042 = vst.msk [vmem:[%s8] sm:$0x4] %vm935, %v1041
    %v1043 = vmul.f32 %v687, %v1028
    %v1044 = vmul.f32 %v1043, %v1040
    %v1046 = vrot.slane %v1040, 1
    %v1048 = vmul.f32 %v623, %v1046
    %v1049 = vsub.f32 0.0, %v1044
    %v1051 = vrot.slane %v1048, 7
    %v1053 = vsub.f32 %v1044, %v1051
    %v1055 = vrot.slane %v1049, 7
    %v1057 = vmul.f32 %v788, %v1055
    %v1059 = vrot.slane %v1057, 1
    %v1061 = vadd.f32 %v1028, %v1059
    %v1063 = vrot.slane %v1053, 7
    %v1065 = vmul.f32 %v788, %v1063
    %v1067 = vrot.slane %v1065, 1
    %v1069 = vadd.f32 %v1040, %v1067
    %v1070 = vmul.f32 %v731, %v1061
    %v1071 = vmul.f32 %v1070, %v1069
    %v1073 = vrot.slane %v1069, 1
    %v1075 = vmul.f32 %v623, %v1073
    %v1076 = vsub.f32 0.0, %v1071
    %v1078 = vrot.slane %v1075, 7
    %v1080 = vsub.f32 %v1071, %v1078
    %v1082 = vrot.slane %v1076, 7
    %v1084 = vmul.f32 %v781, %v1082
    %v1086 = vrot.slane %v1084, 1
    %v1088 = vadd.f32 %v1028, %v1086
    %v1089 = vsub.f32 %v1088, %v1059
    %v1091 = vrot.slane %v1080, 7
    %v1093 = vmul.f32 %v781, %v1091
    %v1095 = vrot.slane %v1093, 1
    %v1097 = vadd.f32 %v1040, %v1095
    %v1098 = vsub.f32 %v1097, %v1067
    %v1099 = vmul.f32 %v776, %v1089
    %v1100 = vmul.f32 %v1099, %v1098
    %v1102 = vrot.slane %v1098, 1
    %v1104 = vmul.f32 %v623, %v1102
    %v1105 = vsub.f32 0.0, %v1100
    %v1107 = vrot.slane %v1104, 7
    %v1109 = vsub.f32 %v1100, %v1107
    %v1110 = vsub.f32 %v1049, %v1076
    %v1111 = vadd.f32 %v1110, %v1105
    %v1113 = vrot.slane %v1111, 7
    %v1115 = vmul.f32 %v781, %v1113
    %v1117 = vrot.slane %v1115, 1
    %v1119 = vadd.f32 %v1028, %v1117
    %v1120 = vsub.f32 %v1053, %v1080
    %v1121 = vadd.f32 %v1120, %v1109
    %v1123 = vrot.slane %v1121, 7
    %v1125 = vmul.f32 %v781, %v1123
    %v1127 = vrot.slane %v1125, 1
    %v1129 = vadd.f32 %v1040, %v1127
    %v1131 = vrot.slane %v1119, 7
    %v1133 = vmul.f32 %v687, %v1131
    %v1135 = vrot.slane %v1129, 7
    %v1137 = vmul.f32 %v1133, %v1135
    %v1138 = vrot.slane %v1129, 1
    %v1140 = vmul.f32 %v623, %v1138
    %v1141 = vsub.f32 0.0, %v1137
    %v1143 = vrot.slane %v1140, 6
    %v1145 = vsub.f32 %v1137, %v1143
    %v1146 = vadd.f32 %v1076, %v1105
    %v1147 = vmul.f32 %v1146, 3.0
    %v1148 = vadd.f32 %v1049, %v1147
    %v1150 = vrot.slane %v1141, 1
    %v1152 = vadd.f32 %v1148, %v1150
    %v1153 = vmul.f32 %v1152, %v915
    %v1154 = vadd.f32 %v1028, %v1153
    %v1155 = vadd.f32 %v1080, %v1109
    %v1156 = vmul.f32 %v1155, 3.0
    %v1157 = vadd.f32 %v1053, %v1156
    %v1159 = vrot.slane %v1145, 1
    %v1161 = vadd.f32 %v1157, %v1159
    %v1162 = vmul.f32 %v1161, %v915
    %v1163 = vadd.f32 %v1040, %v1162
    %v1164 = vsub.f32 %v1028, %v1154
    %1165 = vst.msk [vmem:[%s8 + $0x1] sm:$0x4] %vm935, %v1164
    %v1167 = vrot.slane %v1154, 7
    %v1169 = vmul.f32 %v687, %v1167
    %v1171 = vrot.slane %v1163, 7
    %v1173 = vmul.f32 %v1169, %v1171
    %v1174 = vrot.slane %v1163, 1
    %v1176 = vmul.f32 %v623, %v1174
    %v1177 = vsub.f32 0.0, %v1173
    %v1179 = vrot.slane %v1176, 6
    %v1181 = vsub.f32 %v1173, %v1179
    %v1183 = vrot.slane %v1177, 7
    %v1185 = vmul.f32 %v788, %v1183
    %v1187 = vrot.slane %v1185, 2
    %v1189 = vadd.f32 %v1154, %v1187
    %v1191 = vrot.slane %v1181, 7
    %v1193 = vmul.f32 %v788, %v1191
    %v1195 = vrot.slane %v1193, 2
    %v1197 = vadd.f32 %v1163, %v1195
    %v1199 = vrot.slane %v1189, 7
    %v1201 = vmul.f32 %v731, %v1199
    %v1203 = vrot.slane %v1197, 7
    %v1205 = vmul.f32 %v1201, %v1203
    %v1206 = vrot.slane %v1197, 1
    %v1208 = vmul.f32 %v623, %v1206
    %v1209 = vsub.f32 0.0, %v1205
    %v1211 = vrot.slane %v1208, 6
    %v1213 = vsub.f32 %v1205, %v1211
    %v1215 = vrot.slane %v1209, 7
    %v1217 = vmul.f32 %v781, %v1215
    %v1219 = vrot.slane %v1217, 2
    %v1221 = vadd.f32 %v1154, %v1219
    %v1222 = vsub.f32 %v1221, %v1187
    %v1224 = vrot.slane %v1213, 7
    %v1226 = vmul.f32 %v781, %v1224
    %v1228 = vrot.slane %v1226, 2
    %v1230 = vadd.f32 %v1163, %v1228
    %v1231 = vsub.f32 %v1230, %v1195
    %v1233 = vrot.slane %v1222, 7
    %v1235 = vmul.f32 %v776, %v1233
    %v1237 = vrot.slane %v1231, 7
    %v1239 = vmul.f32 %v1235, %v1237
    %v1240 = vrot.slane %v1231, 1
    %v1242 = vmul.f32 %v623, %v1240
    %v1243 = vsub.f32 0.0, %v1239
    %v1245 = vrot.slane %v1242, 6
    %v1247 = vsub.f32 %v1239, %v1245
    %v1248 = vsub.f32 %v1177, %v1209
    %v1249 = vadd.f32 %v1248, %v1243
    %v1251 = vrot.slane %v1249, 7
    %v1253 = vmul.f32 %v781, %v1251
    %v1255 = vrot.slane %v1253, 2
    %v1257 = vadd.f32 %v1154, %v1255
    %v1258 = vsub.f32 %v1181, %v1213
    %v1259 = vadd.f32 %v1258, %v1247
    %v1261 = vrot.slane %v1259, 7
    %v1263 = vmul.f32 %v781, %v1261
    %v1265 = vrot.slane %v1263, 2
    %v1267 = vadd.f32 %v1163, %v1265
    %v1269 = vrot.slane %v1257, 6
    %v1271 = vmul.f32 %v687, %v1269
    %v1273 = vrot.slane %v1267, 6
    %v1275 = vmul.f32 %v1271, %v1273
    %v1276 = vrot.slane %v1267, 1
    %v1278 = vmul.f32 %v623, %v1276
    %v1279 = vsub.f32 0.0, %v1275
    %v1281 = vrot.slane %v1278, 5
    %v1283 = vsub.f32 %v1275, %v1281
    %v1284 = vadd.f32 %v1209, %v1243
    %v1285 = vmul.f32 %v1284, 3.0
    %v1286 = vadd.f32 %v1177, %v1285
    %v1288 = vrot.slane %v1279, 1
    %v1290 = vadd.f32 %v1286, %v1288
    %v1291 = vmul.f32 %v1290, %v915
    %v1293 = vrot.slane %v1291, 1
    %v1295 = vadd.f32 %v1154, %v1293
    %v1296 = vadd.f32 %v1213, %v1247
    %v1297 = vmul.f32 %v1296, 3.0
    %v1298 = vadd.f32 %v1181, %v1297
    %v1300 = vrot.slane %v1283, 1
    %v1302 = vadd.f32 %v1298, %v1300
    %v1303 = vmul.f32 %v1302, %v915
    %v1305 = vrot.slane %v1303, 1
    %v1307 = vadd.f32 %v1163, %v1305
    %v1308 = vsub.f32 %v1154, %v1295
    %1309 = vst.msk [vmem:[%s8 + $0x2] sm:$0x4] %vm935, %v1308
    %v1311 = vrot.slane %v1295, 6
    %v1313 = vmul.f32 %v687, %v1311
    %v1315 = vrot.slane %v1307, 6
    %v1317 = vmul.f32 %v1313, %v1315
    %v1318 = vrot.slane %v1307, 1
    %v1320 = vmul.f32 %v623, %v1318
    %v1321 = vsub.f32 0.0, %v1317
    %v1323 = vrot.slane %v1320, 5
    %v1325 = vsub.f32 %v1317, %v1323
    %v1327 = vrot.slane %v1321, 7
    %v1329 = vmul.f32 %v788, %v1327
    %v1331 = vrot.slane %v1329, 3
    %v1333 = vadd.f32 %v1295, %v1331
    %v1335 = vrot.slane %v1325, 7
    %v1337 = vmul.f32 %v788, %v1335
    %v1339 = vrot.slane %v1337, 3
    %v1341 = vadd.f32 %v1307, %v1339
    %v1343 = vrot.slane %v1333, 6
    %v1345 = vmul.f32 %v731, %v1343
    %v1347 = vrot.slane %v1341, 6
    %v1349 = vmul.f32 %v1345, %v1347
    %v1350 = vrot.slane %v1341, 1
    %v1352 = vmul.f32 %v623, %v1350
    %v1353 = vsub.f32 0.0, %v1349
    %v1355 = vrot.slane %v1352, 5
    %v1357 = vsub.f32 %v1349, %v1355
    %v1359 = vrot.slane %v1353, 7
    %v1361 = vmul.f32 %v781, %v1359
    %v1363 = vrot.slane %v1361, 3
    %v1365 = vadd.f32 %v1295, %v1363
    %v1366 = vsub.f32 %v1365, %v1331
    %v1368 = vrot.slane %v1357, 7
    %v1370 = vmul.f32 %v781, %v1368
    %v1372 = vrot.slane %v1370, 3
    %v1374 = vadd.f32 %v1307, %v1372
    %v1375 = vsub.f32 %v1374, %v1339
    %v1377 = vrot.slane %v1366, 6
    %v1379 = vmul.f32 %v776, %v1377
    %v1381 = vrot.slane %v1375, 6
    %v1383 = vmul.f32 %v1379, %v1381
    %v1384 = vrot.slane %v1375, 1
    %v1386 = vmul.f32 %v623, %v1384
    %v1387 = vsub.f32 0.0, %v1383
    %v1389 = vrot.slane %v1386, 5
    %v1391 = vsub.f32 %v1383, %v1389
    %v1392 = vsub.f32 %v1321, %v1353
    %v1393 = vadd.f32 %v1392, %v1387
    %v1395 = vrot.slane %v1393, 7
    %v1397 = vmul.f32 %v781, %v1395
    %v1399 = vrot.slane %v1397, 3
    %v1401 = vadd.f32 %v1295, %v1399
    %v1402 = vsub.f32 %v1325, %v1357
    %v1403 = vadd.f32 %v1402, %v1391
    %v1405 = vrot.slane %v1403, 7
    %v1407 = vmul.f32 %v781, %v1405
    %v1409 = vrot.slane %v1407, 3
    %v1411 = vadd.f32 %v1307, %v1409
    %v1413 = vrot.slane %v1401, 5
    %v1415 = vmul.f32 %v687, %v1413
    %v1417 = vrot.slane %v1411, 5
    %v1419 = vmul.f32 %v1415, %v1417
    %v1420 = vrot.slane %v1411, 1
    %v1422 = vmul.f32 %v623, %v1420
    %v1423 = vsub.f32 0.0, %v1419
    %v1425 = vrot.slane %v1422, 4
    %v1427 = vsub.f32 %v1419, %v1425
    %v1428 = vadd.f32 %v1353, %v1387
    %v1429 = vmul.f32 %v1428, 3.0
    %v1430 = vadd.f32 %v1321, %v1429
    %v1432 = vrot.slane %v1423, 1
    %v1434 = vadd.f32 %v1430, %v1432
    %v1435 = vmul.f32 %v1434, %v915
    %v1437 = vrot.slane %v1435, 2
    %v1439 = vadd.f32 %v1295, %v1437
    %v1440 = vadd.f32 %v1357, %v1391
    %v1441 = vmul.f32 %v1440, 3.0
    %v1442 = vadd.f32 %v1325, %v1441
    %v1444 = vrot.slane %v1427, 1
    %v1446 = vadd.f32 %v1442, %v1444
    %v1447 = vmul.f32 %v1446, %v915
    %v1449 = vrot.slane %v1447, 2
    %v1451 = vadd.f32 %v1307, %v1449
    %v1452 = vsub.f32 %v1295, %v1439
    %1453 = vst.msk [vmem:[%s8 + $0x3] sm:$0x4] %vm935, %v1452
    %v1455 = vrot.slane %v1439, 5
    %v1457 = vmul.f32 %v687, %v1455
    %v1459 = vrot.slane %v1451, 5
    %v1461 = vmul.f32 %v1457, %v1459
    %v1462 = vrot.slane %v1451, 1
    %v1464 = vmul.f32 %v623, %v1462
    %v1465 = vsub.f32 0.0, %v1461
    %v1467 = vrot.slane %v1464, 4
    %v1469 = vsub.f32 %v1461, %v1467
    %v1471 = vrot.slane %v1465, 7
    %v1473 = vmul.f32 %v788, %v1471
    %v1475 = vrot.slane %v1473, 4
    %v1477 = vadd.f32 %v1439, %v1475
    %v1479 = vrot.slane %v1469, 7
    %v1481 = vmul.f32 %v788, %v1479
    %v1483 = vrot.slane %v1481, 4
    %v1485 = vadd.f32 %v1451, %v1483
    %v1487 = vrot.slane %v1477, 5
    %v1489 = vmul.f32 %v731, %v1487
    %v1491 = vrot.slane %v1485, 5
    %v1493 = vmul.f32 %v1489, %v1491
    %v1494 = vrot.slane %v1485, 1
    %v1496 = vmul.f32 %v623, %v1494
    %v1497 = vsub.f32 0.0, %v1493
    %v1499 = vrot.slane %v1496, 4
    %v1501 = vsub.f32 %v1493, %v1499
    %v1503 = vrot.slane %v1497, 7
    %v1505 = vmul.f32 %v781, %v1503
    %v1507 = vrot.slane %v1505, 4
    %v1509 = vadd.f32 %v1439, %v1507
    %v1510 = vsub.f32 %v1509, %v1475
    %v1512 = vrot.slane %v1501, 7
    %v1514 = vmul.f32 %v781, %v1512
    %v1516 = vrot.slane %v1514, 4
    %v1518 = vadd.f32 %v1451, %v1516
    %v1519 = vsub.f32 %v1518, %v1483
    %v1521 = vrot.slane %v1510, 5
    %v1523 = vmul.f32 %v776, %v1521
    %v1525 = vrot.slane %v1519, 5
    %v1527 = vmul.f32 %v1523, %v1525
    %v1528 = vrot.slane %v1519, 1
    %v1530 = vmul.f32 %v623, %v1528
    %v1531 = vsub.f32 0.0, %v1527
    %v1533 = vrot.slane %v1530, 4
    %v1535 = vsub.f32 %v1527, %v1533
    %v1536 = vsub.f32 %v1465, %v1497
    %v1537 = vadd.f32 %v1536, %v1531
    %v1539 = vrot.slane %v1537, 7
    %v1541 = vmul.f32 %v781, %v1539
    %v1543 = vrot.slane %v1541, 4
    %v1545 = vadd.f32 %v1439, %v1543
    %v1546 = vsub.f32 %v1469, %v1501
    %v1547 = vadd.f32 %v1546, %v1535
    %v1549 = vrot.slane %v1547, 7
    %v1551 = vmul.f32 %v781, %v1549
    %v1553 = vrot.slane %v1551, 4
    %v1555 = vadd.f32 %v1451, %v1553
    %v1557 = vrot.slane %v1545, 4
    %v1559 = vmul.f32 %v687, %v1557
    %v1561 = vrot.slane %v1555, 4
    %v1563 = vmul.f32 %v1559, %v1561
    %v1564 = vrot.slane %v1555, 1
    %v1566 = vmul.f32 %v623, %v1564
    %v1567 = vsub.f32 0.0, %v1563
    %v1569 = vrot.slane %v1566, 3
    %v1571 = vsub.f32 %v1563, %v1569
    %v1572 = vadd.f32 %v1497, %v1531
    %v1573 = vmul.f32 %v1572, 3.0
    %v1574 = vadd.f32 %v1465, %v1573
    %v1576 = vrot.slane %v1567, 1
    %v1578 = vadd.f32 %v1574, %v1576
    %v1579 = vmul.f32 %v1578, %v915
    %v1581 = vrot.slane %v1579, 3
    %v1583 = vadd.f32 %v1439, %v1581
    %v1584 = vadd.f32 %v1501, %v1535
    %v1585 = vmul.f32 %v1584, 3.0
    %v1586 = vadd.f32 %v1469, %v1585
    %v1588 = vrot.slane %v1571, 1
    %v1590 = vadd.f32 %v1586, %v1588
    %v1591 = vmul.f32 %v1590, %v915
    %v1593 = vrot.slane %v1591, 3
    %v1595 = vadd.f32 %v1451, %v1593
    %v1596 = vsub.f32 %v1439, %v1583
    %1597 = vst.msk [vmem:[%s8 + $0x4] sm:$0x4] %vm935, %v1596
    %v1599 = vrot.slane %v1583, 4
    %v1601 = vmul.f32 %v687, %v1599
    %v1603 = vrot.slane %v1595, 4
    %v1605 = vmul.f32 %v1601, %v1603
    %v1606 = vrot.slane %v1595, 1
    %v1608 = vmul.f32 %v623, %v1606
    %v1609 = vsub.f32 0.0, %v1605
    %v1611 = vrot.slane %v1608, 3
    %v1613 = vsub.f32 %v1605, %v1611
    %v1615 = vrot.slane %v1609, 7
    %v1617 = vmul.f32 %v788, %v1615
    %v1619 = vrot.slane %v1617, 5
    %v1621 = vadd.f32 %v1583, %v1619
    %v1623 = vrot.slane %v1613, 7
    %v1625 = vmul.f32 %v788, %v1623
    %v1627 = vrot.slane %v1625, 5
    %v1629 = vadd.f32 %v1595, %v1627
    %v1631 = vrot.slane %v1621, 4
    %v1633 = vmul.f32 %v731, %v1631
    %v1635 = vrot.slane %v1629, 4
    %v1637 = vmul.f32 %v1633, %v1635
    %v1638 = vrot.slane %v1629, 1
    %v1640 = vmul.f32 %v623, %v1638
    %v1641 = vsub.f32 0.0, %v1637
    %v1643 = vrot.slane %v1640, 3
    %v1645 = vsub.f32 %v1637, %v1643
    %v1647 = vrot.slane %v1641, 7
    %v1649 = vmul.f32 %v781, %v1647
    %v1651 = vrot.slane %v1649, 5
    %v1653 = vadd.f32 %v1583, %v1651
    %v1654 = vsub.f32 %v1653, %v1619
    %v1656 = vrot.slane %v1645, 7
    %v1658 = vmul.f32 %v781, %v1656
    %v1660 = vrot.slane %v1658, 5
    %v1662 = vadd.f32 %v1595, %v1660
    %v1663 = vsub.f32 %v1662, %v1627
    %v1665 = vrot.slane %v1654, 4
    %v1667 = vmul.f32 %v776, %v1665
    %v1669 = vrot.slane %v1663, 4
    %v1671 = vmul.f32 %v1667, %v1669
    %v1672 = vrot.slane %v1663, 1
    %v1674 = vmul.f32 %v623, %v1672
    %v1675 = vsub.f32 0.0, %v1671
    %v1677 = vrot.slane %v1674, 3
    %v1679 = vsub.f32 %v1671, %v1677
    %v1680 = vsub.f32 %v1609, %v1641
    %v1681 = vadd.f32 %v1680, %v1675
    %v1683 = vrot.slane %v1681, 7
    %v1685 = vmul.f32 %v781, %v1683
    %v1687 = vrot.slane %v1685, 5
    %v1689 = vadd.f32 %v1583, %v1687
    %v1690 = vsub.f32 %v1613, %v1645
    %v1691 = vadd.f32 %v1690, %v1679
    %v1693 = vrot.slane %v1691, 7
    %v1695 = vmul.f32 %v781, %v1693
    %v1697 = vrot.slane %v1695, 5
    %v1699 = vadd.f32 %v1595, %v1697
    %v1701 = vrot.slane %v1689, 3
    %v1703 = vmul.f32 %v687, %v1701
    %v1705 = vrot.slane %v1699, 3
    %v1707 = vmul.f32 %v1703, %v1705
    %v1708 = vrot.slane %v1699, 1
    %v1710 = vmul.f32 %v623, %v1708
    %v1711 = vsub.f32 0.0, %v1707
    %v1713 = vrot.slane %v1710, 2
    %v1715 = vsub.f32 %v1707, %v1713
    %v1716 = vadd.f32 %v1641, %v1675
    %v1717 = vmul.f32 %v1716, 3.0
    %v1718 = vadd.f32 %v1609, %v1717
    %v1720 = vrot.slane %v1711, 1
    %v1722 = vadd.f32 %v1718, %v1720
    %v1723 = vmul.f32 %v1722, %v915
    %v1725 = vrot.slane %v1723, 4
    %v1727 = vadd.f32 %v1583, %v1725
    %v1728 = vadd.f32 %v1645, %v1679
    %v1729 = vmul.f32 %v1728, 3.0
    %v1730 = vadd.f32 %v1613, %v1729
    %v1732 = vrot.slane %v1715, 1
    %v1734 = vadd.f32 %v1730, %v1732
    %v1735 = vmul.f32 %v1734, %v915
    %v1737 = vrot.slane %v1735, 4
    %v1739 = vadd.f32 %v1595, %v1737
    %v1740 = vsub.f32 %v1583, %v1727
    %1741 = vst.msk [vmem:[%s8 + $0x5] sm:$0x4] %vm935, %v1740
    %v1743 = vrot.slane %v1727, 3
    %v1745 = vmul.f32 %v687, %v1743
    %v1747 = vrot.slane %v1739, 3
    %v1749 = vmul.f32 %v1745, %v1747
    %v1750 = vrot.slane %v1739, 1
    %v1752 = vmul.f32 %v623, %v1750
    %v1753 = vsub.f32 0.0, %v1749
    %v1755 = vrot.slane %v1752, 2
    %v1757 = vsub.f32 %v1749, %v1755
    %v1759 = vrot.slane %v1753, 7
    %v1761 = vmul.f32 %v789, %v1759
    %v1763 = vrot.slane %v1761, 6
    %v1765 = vadd.f32 %v1727, %v1763
    %v1767 = vrot.slane %v1757, 7
    %v1769 = vmul.f32 %v789, %v1767
    %v1771 = vrot.slane %v1769, 6
    %v1773 = vadd.f32 %v1739, %v1771
    %v1775 = vrot.slane %v1765, 3
    %v1777 = vmul.f32 %v731, %v1775
    %v1779 = vrot.slane %v1773, 3
    %v1781 = vmul.f32 %v1777, %v1779
    %v1782 = vrot.slane %v1773, 1
    %v1784 = vmul.f32 %v623, %v1782
    %v1785 = vsub.f32 0.0, %v1781
    %v1787 = vrot.slane %v1784, 2
    %v1789 = vsub.f32 %v1781, %v1787
    %v1791 = vrot.slane %v1785, 7
    %v1793 = vmul.f32 %v786, %v1791
    %v1795 = vrot.slane %v1793, 6
    %v1797 = vadd.f32 %v1727, %v1795
    %v1798 = vsub.f32 %v1797, %v1763
    %v1800 = vrot.slane %v1789, 7
    %v1802 = vmul.f32 %v786, %v1800
    %v1804 = vrot.slane %v1802, 6
    %v1806 = vadd.f32 %v1739, %v1804
    %v1807 = vsub.f32 %v1806, %v1771
    %v1809 = vrot.slane %v1798, 3
    %v1811 = vmul.f32 %v776, %v1809
    %v1813 = vrot.slane %v1807, 3
    %v1815 = vmul.f32 %v1811, %v1813
    %v1816 = vrot.slane %v1807, 1
    %v1818 = vmul.f32 %v623, %v1816
    %v1819 = vsub.f32 0.0, %v1815
    %v1821 = vrot.slane %v1818, 2
    %v1823 = vsub.f32 %v1815, %v1821
    %v1824 = vsub.f32 %v1753, %v1785
    %v1825 = vadd.f32 %v1824, %v1819
    %v1827 = vrot.slane %v1825, 7
    %v1829 = vmul.f32 %v786, %v1827
    %v1831 = vrot.slane %v1829, 6
    %v1833 = vadd.f32 %v1727, %v1831
    %v1834 = vsub.f32 %v1757, %v1789
    %v1835 = vadd.f32 %v1834, %v1823
    %v1837 = vrot.slane %v1835, 7
    %v1839 = vmul.f32 %v786, %v1837
    %v1841 = vrot.slane %v1839, 6
    %v1843 = vadd.f32 %v1739, %v1841
    %v1845 = vrot.slane %v1833, 2
    %v1847 = vmul.f32 %v688, %v1845
    %v1849 = vrot.slane %v1843, 2
    %v1851 = vmul.f32 %v1847, %v1849
    %v1852 = vrot.slane %v1843, 1
    %v1854 = vmul.f32 %v623, %v1852
    %v1855 = vsub.f32 0.0, %v1851
    %v1857 = vrot.slane %v1854, 1
    %v1859 = vsub.f32 %v1851, %v1857
    %v1860 = vadd.f32 %v1785, %v1819
    %v1861 = vmul.f32 %v1860, 3.0
    %v1862 = vadd.f32 %v1753, %v1861
    %v1864 = vrot.slane %v1855, 1
    %v1866 = vadd.f32 %v1862, %v1864
    %v1868 = vrot.slane %v791, 1
    %v1870 = vmul.f32 %v1866, %v1868
    %v1872 = vrot.slane %v1870, 5
    %v1874 = vadd.f32 %v1727, %v1872
    %v1875 = vadd.f32 %v1789, %v1823
    %v1876 = vmul.f32 %v1875, 3.0
    %v1877 = vadd.f32 %v1757, %v1876
    %v1879 = vrot.slane %v1859, 1
    %v1881 = vadd.f32 %v1877, %v1879
    %v1882 = vmul.f32 %v1881, %v1868
    %v1884 = vrot.slane %v1882, 5
    %v1886 = vadd.f32 %v1739, %v1884
    %v1887 = vsub.f32 %v1727, %v1874
    %1888 = vst.msk [vmem:[%s8 + $0x6] sm:$0x4] %vm935, %v1887
    %v1890 = vrot.slane %v1874, 2
    %v1892 = vmul.f32 %v688, %v1890
    %v1894 = vrot.slane %v1886, 2
    %v1896 = vmul.f32 %v1892, %v1894
    %v1897 = vrot.slane %v1886, 1
    %v1899 = vmul.f32 %v623, %v1897
    %v1900 = vsub.f32 0.0, %v1896
    %v1902 = vrot.slane %v1899, 1
    %v1904 = vsub.f32 %v1896, %v1902
    %v1906 = vrot.slane %v1900, 7
    %v1908 = vmul.f32 %v789, %v1906
    %v1910 = vrot.slane %v1908, 7
    %v1912 = vadd.f32 %v1874, %v1910
    %v1914 = vrot.slane %v1904, 7
    %v1916 = vmul.f32 %v789, %v1914
    %v1918 = vrot.slane %v1916, 7
    %v1920 = vadd.f32 %v1886, %v1918
    %v1922 = vrot.slane %v1912, 2
    %v1924 = vmul.f32 %v732, %v1922
    %v1926 = vrot.slane %v1920, 2
    %v1928 = vmul.f32 %v1924, %v1926
    %v1929 = vrot.slane %v1920, 1
    %v1931 = vmul.f32 %v623, %v1929
    %v1932 = vsub.f32 0.0, %v1928
    %v1934 = vrot.slane %v1931, 1
    %v1936 = vsub.f32 %v1928, %v1934
    %v1938 = vrot.slane %v1932, 7
    %v1940 = vmul.f32 %v786, %v1938
    %v1942 = vrot.slane %v1940, 7
    %v1944 = vadd.f32 %v1874, %v1942
    %v1945 = vsub.f32 %v1944, %v1910
    %v1947 = vrot.slane %v1936, 7
    %v1949 = vmul.f32 %v786, %v1947
    %v1951 = vrot.slane %v1949, 7
    %v1953 = vadd.f32 %v1886, %v1951
    %v1954 = vsub.f32 %v1953, %v1918
    %v1956 = vrot.slane %v1945, 2
    %v1958 = vmul.f32 %v777, %v1956
    %v1960 = vrot.slane %v1954, 2
    %v1962 = vmul.f32 %v1958, %v1960
    %v1963 = vrot.slane %v1954, 1
    %v1965 = vmul.f32 %v623, %v1963
    %v1966 = vsub.f32 0.0, %v1962
    %v1968 = vrot.slane %v1965, 1
    %v1970 = vsub.f32 %v1962, %v1968
    %v1971 = vsub.f32 %v1900, %v1932
    %v1972 = vadd.f32 %v1971, %v1966
    %v1974 = vrot.slane %v1972, 7
    %v1976 = vmul.f32 %v786, %v1974
    %v1978 = vrot.slane %v1976, 7
    %v1980 = vadd.f32 %v1874, %v1978
    %v1981 = vsub.f32 %v1904, %v1936
    %v1982 = vadd.f32 %v1981, %v1970
    %v1984 = vrot.slane %v1982, 7
    %v1986 = vmul.f32 %v786, %v1984
    %v1988 = vrot.slane %v1986, 7
    %v1990 = vadd.f32 %v1886, %v1988
    %v1992 = vrot.slane %v1980, 1
    %v1994 = vmul.f32 %v688, %v1992
    %v1996 = vrot.slane %v1990, 1
    %v1998 = vmul.f32 %v1994, %v1996
    %v1999 = vmul.f32 %v623, %v1996
    %v2000 = vsub.f32 0.0, %v1998
    %v2001 = vsub.f32 %v1998, %v1999
    %v2002 = vadd.f32 %v1932, %v1966
    %v2003 = vmul.f32 %v2002, 3.0
    %v2004 = vadd.f32 %v1900, %v2003
    %v2006 = vrot.slane %v2000, 1
    %v2008 = vadd.f32 %v2004, %v2006
    %v2009 = vmul.f32 %v2008, %v1868
    %v2011 = vrot.slane %v2009, 6
    %v2013 = vadd.f32 %v1874, %v2011
    %v2014 = vadd.f32 %v1936, %v1970
    %v2015 = vmul.f32 %v2014, 3.0
    %v2016 = vadd.f32 %v1904, %v2015
    %v2018 = vrot.slane %v2001, 1
    %v2020 = vadd.f32 %v2016, %v2018
    %v2021 = vmul.f32 %v2020, %v1868
    %v2023 = vrot.slane %v2021, 6
    %v2025 = vadd.f32 %v1886, %v2023
    %v2026 = vsub.f32 %v1874, %v2013
    %2027 = vst.msk [vmem:[%s8 + $0x7] sm:$0x4] %vm935, %v2026
    %v2029 = vrot.slane %v2013, 1
    %v2031 = vmul.f32 %v688, %v2029
    %v2033 = vrot.slane %v2025, 1
    %v2035 = vmul.f32 %v2031, %v2033
    %v2036 = vmul.f32 %v623, %v2033
    %v2037 = vsub.f32 0.0, %v2035
    %v2038 = vsub.f32 %v2035, %v2036
    %v2040 = vrot.slane %v2037, 7
    %v2042 = vmul.f32 %v789, %v2040
    %v2043 = vadd.f32 %v2013, %v2042
    %v2045 = vrot.slane %v2038, 7
    %v2047 = vmul.f32 %v789, %v2045
    %v2048 = vadd.f32 %v2025, %v2047
    %v2050 = vrot.slane %v2043, 1
    %v2052 = vmul.f32 %v732, %v2050
    %v2054 = vrot.slane %v2048, 1
    %v2056 = vmul.f32 %v2052, %v2054
    %v2057 = vmul.f32 %v623, %v2054
    %v2058 = vsub.f32 0.0, %v2056
    %v2059 = vsub.f32 %v2056, %v2057
    %v2061 = vrot.slane %v2058, 7
    %v2063 = vmul.f32 %v786, %v2061
    %v2064 = vadd.f32 %v2013, %v2063
    %v2065 = vsub.f32 %v2064, %v2042
    %v2067 = vrot.slane %v2059, 7
    %v2069 = vmul.f32 %v786, %v2067
    %v2070 = vadd.f32 %v2025, %v2069
    %v2071 = vsub.f32 %v2070, %v2047
    %v2073 = vrot.slane %v2065, 1
    %v2075 = vmul.f32 %v777, %v2073
    %v2077 = vrot.slane %v2071, 1
    %v2079 = vmul.f32 %v2075, %v2077
    %v2080 = vmul.f32 %v623, %v2077
    %v2081 = vsub.f32 0.0, %v2079
    %v2082 = vsub.f32 %v2079, %v2080
    %v2083 = vsub.f32 %v2037, %v2058
    %v2084 = vadd.f32 %v2083, %v2081
    %v2086 = vrot.slane %v2084, 7
    %v2088 = vmul.f32 %v786, %v2086
    %v2089 = vadd.f32 %v2013, %v2088
    %v2090 = vsub.f32 %v2038, %v2059
    %v2091 = vadd.f32 %v2090, %v2082
    %v2093 = vrot.slane %v2091, 7
    %v2095 = vmul.f32 %v786, %v2093
    %v2096 = vadd.f32 %v2025, %v2095
    %v2097 = vmul.f32 %v688, %v2089
    %v2098 = vmul.f32 %v2097, %v2096
    %v2100 = vrot.slane %v2096, 1
    %v2102 = vmul.f32 %v623, %v2100
    %v2103 = vsub.f32 0.0, %v2098
    %v2105 = vrot.slane %v2102, 7
    %v2107 = vsub.f32 %v2098, %v2105
    %v2108 = vadd.f32 %v2058, %v2081
    %v2109 = vmul.f32 %v2108, 3.0
    %v2110 = vadd.f32 %v2037, %v2109
    %v2112 = vrot.slane %v2103, 1
    %v2114 = vadd.f32 %v2110, %v2112
    %v2115 = vmul.f32 %v2114, %v1868
    %v2117 = vrot.slane %v2115, 7
    %v2119 = vadd.f32 %v2013, %v2117
    %v2120 = vadd.f32 %v2059, %v2082
    %v2121 = vmul.f32 %v2120, 3.0
    %v2122 = vadd.f32 %v2038, %v2121
    %v2124 = vrot.slane %v2107, 1
    %v2126 = vadd.f32 %v2122, %v2124
    %v2127 = vmul.f32 %v2126, %v1868
    %v2129 = vrot.slane %v2127, 7
    %v2131 = vadd.f32 %v2025, %v2129
    %v2132 = vsub.f32 %v2013, %v2119
    %2133 = vst.msk [vmem:[%s8 + $0x8] sm:$0x4] %vm935, %v2132
    %v2134 = vmul.f32 %v688, %v2119
    %v2135 = vmul.f32 %v2134, %v2131
    %v2137 = vrot.slane %v2131, 1
    %v2139 = vmul.f32 %v623, %v2137
    %v2140 = vsub.f32 0.0, %v2135
    %v2142 = vrot.slane %v2139, 7
    %v2144 = vsub.f32 %v2135, %v2142
    %v2146 = vrot.slane %v2140, 7
    %v2148 = vmul.f32 %v789, %v2146
    %v2150 = vrot.slane %v2148, 1
    %v2152 = vadd.f32 %v2119, %v2150
    %v2154 = vrot.slane %v2144, 7
    %v2156 = vmul.f32 %v789, %v2154
    %v2158 = vrot.slane %v2156, 1
    %v2160 = vadd.f32 %v2131, %v2158
    %v2161 = vmul.f32 %v732, %v2152
    %v2162 = vmul.f32 %v2161, %v2160
    %v2164 = vrot.slane %v2160, 1
    %v2166 = vmul.f32 %v623, %v2164
    %v2167 = vsub.f32 0.0, %v2162
    %v2169 = vrot.slane %v2166, 7
    %v2171 = vsub.f32 %v2162, %v2169
    %v2173 = vrot.slane %v2167, 7
    %v2175 = vmul.f32 %v786, %v2173
    %v2177 = vrot.slane %v2175, 1
    %v2179 = vadd.f32 %v2119, %v2177
    %v2180 = vsub.f32 %v2179, %v2150
    %v2182 = vrot.slane %v2171, 7
    %v2184 = vmul.f32 %v786, %v2182
    %v2186 = vrot.slane %v2184, 1
    %v2188 = vadd.f32 %v2131, %v2186
    %v2189 = vsub.f32 %v2188, %v2158
    %v2190 = vmul.f32 %v777, %v2180
    %v2191 = vmul.f32 %v2190, %v2189
    %v2193 = vrot.slane %v2189, 1
    %v2195 = vmul.f32 %v623, %v2193
    %v2196 = vsub.f32 0.0, %v2191
    %v2198 = vrot.slane %v2195, 7
    %v2200 = vsub.f32 %v2191, %v2198
    %v2201 = vsub.f32 %v2140, %v2167
    %v2202 = vadd.f32 %v2201, %v2196
    %v2204 = vrot.slane %v2202, 7
    %v2206 = vmul.f32 %v786, %v2204
    %v2208 = vrot.slane %v2206, 1
    %v2210 = vadd.f32 %v2119, %v2208
    %v2211 = vsub.f32 %v2144, %v2171
    %v2212 = vadd.f32 %v2211, %v2200
    %v2214 = vrot.slane %v2212, 7
    %v2216 = vmul.f32 %v786, %v2214
    %v2218 = vrot.slane %v2216, 1
    %v2220 = vadd.f32 %v2131, %v2218
    %v2222 = vrot.slane %v2210, 7
    %v2224 = vmul.f32 %v688, %v2222
    %v2226 = vrot.slane %v2220, 7
    %v2228 = vmul.f32 %v2224, %v2226
    %v2229 = vrot.slane %v2220, 1
    %v2231 = vmul.f32 %v623, %v2229
    %v2232 = vsub.f32 0.0, %v2228
    %v2234 = vrot.slane %v2231, 6
    %v2236 = vsub.f32 %v2228, %v2234
    %v2237 = vadd.f32 %v2167, %v2196
    %v2238 = vmul.f32 %v2237, 3.0
    %v2239 = vadd.f32 %v2140, %v2238
    %v2241 = vrot.slane %v2232, 1
    %v2243 = vadd.f32 %v2239, %v2241
    %v2244 = vmul.f32 %v2243, %v1868
    %v2245 = vadd.f32 %v2119, %v2244
    %v2246 = vadd.f32 %v2171, %v2200
    %v2247 = vmul.f32 %v2246, 3.0
    %v2248 = vadd.f32 %v2144, %v2247
    %v2250 = vrot.slane %v2236, 1
    %v2252 = vadd.f32 %v2248, %v2250
    %v2253 = vmul.f32 %v2252, %v1868
    %v2254 = vadd.f32 %v2131, %v2253
    %v2255 = vsub.f32 %v2119, %v2245
    %2256 = vst.msk [vmem:[%s8 + $0x9] sm:$0x4] %vm935, %v2255
    %v2258 = vrot.slane %v2245, 7
    %v2260 = vmul.f32 %v688, %v2258
    %v2262 = vrot.slane %v2254, 7
    %v2264 = vmul.f32 %v2260, %v2262
    %v2265 = vrot.slane %v2254, 1
    %v2267 = vmul.f32 %v623, %v2265
    %v2268 = vsub.f32 0.0, %v2264
    %v2270 = vrot.slane %v2267, 6
    %v2272 = vsub.f32 %v2264, %v2270
    %v2274 = vrot.slane %v2268, 7
    %v2276 = vmul.f32 %v789, %v2274
    %v2278 = vrot.slane %v2276, 2
    %v2280 = vadd.f32 %v2245, %v2278
    %v2282 = vrot.slane %v2272, 7
    %v2284 = vmul.f32 %v789, %v2282
    %v2286 = vrot.slane %v2284, 2
    %v2288 = vadd.f32 %v2254, %v2286
    %v2290 = vrot.slane %v2280, 7
    %v2292 = vmul.f32 %v732, %v2290
    %v2294 = vrot.slane %v2288, 7
    %v2296 = vmul.f32 %v2292, %v2294
    %v2297 = vrot.slane %v2288, 1
    %v2299 = vmul.f32 %v623, %v2297
    %v2300 = vsub.f32 0.0, %v2296
    %v2302 = vrot.slane %v2299, 6
    %v2304 = vsub.f32 %v2296, %v2302
    %v2306 = vrot.slane %v2300, 7
    %v2308 = vmul.f32 %v786, %v2306
    %v2310 = vrot.slane %v2308, 2
    %v2312 = vadd.f32 %v2245, %v2310
    %v2313 = vsub.f32 %v2312, %v2278
    %v2315 = vrot.slane %v2304, 7
    %v2317 = vmul.f32 %v786, %v2315
    %v2319 = vrot.slane %v2317, 2
    %v2321 = vadd.f32 %v2254, %v2319
    %v2322 = vsub.f32 %v2321, %v2286
    %v2324 = vrot.slane %v2313, 7
    %v2326 = vmul.f32 %v777, %v2324
    %v2328 = vrot.slane %v2322, 7
    %v2330 = vmul.f32 %v2326, %v2328
    %v2331 = vrot.slane %v2322, 1
    %v2333 = vmul.f32 %v623, %v2331
    %v2334 = vsub.f32 0.0, %v2330
    %v2336 = vrot.slane %v2333, 6
    %v2338 = vsub.f32 %v2330, %v2336
    %v2339 = vsub.f32 %v2268, %v2300
    %v2340 = vadd.f32 %v2339, %v2334
    %v2342 = vrot.slane %v2340, 7
    %v2344 = vmul.f32 %v786, %v2342
    %v2346 = vrot.slane %v2344, 2
    %v2348 = vadd.f32 %v2245, %v2346
    %v2349 = vsub.f32 %v2272, %v2304
    %v2350 = vadd.f32 %v2349, %v2338
    %v2352 = vrot.slane %v2350, 7
    %v2354 = vmul.f32 %v786, %v2352
    %v2356 = vrot.slane %v2354, 2
    %v2358 = vadd.f32 %v2254, %v2356
    %v2360 = vrot.slane %v2348, 6
    %v2362 = vmul.f32 %v688, %v2360
    %v2364 = vrot.slane %v2358, 6
    %v2366 = vmul.f32 %v2362, %v2364
    %v2367 = vrot.slane %v2358, 1
    %v2369 = vmul.f32 %v623, %v2367
    %v2370 = vsub.f32 0.0, %v2366
    %v2372 = vrot.slane %v2369, 5
    %v2374 = vsub.f32 %v2366, %v2372
    %v2375 = vadd.f32 %v2300, %v2334
    %v2376 = vmul.f32 %v2375, 3.0
    %v2377 = vadd.f32 %v2268, %v2376
    %v2379 = vrot.slane %v2370, 1
    %v2381 = vadd.f32 %v2377, %v2379
    %v2382 = vmul.f32 %v2381, %v1868
    %v2384 = vrot.slane %v2382, 1
    %v2386 = vadd.f32 %v2245, %v2384
    %v2387 = vadd.f32 %v2304, %v2338
    %v2388 = vmul.f32 %v2387, 3.0
    %v2389 = vadd.f32 %v2272, %v2388
    %v2391 = vrot.slane %v2374, 1
    %v2393 = vadd.f32 %v2389, %v2391
    %v2394 = vmul.f32 %v2393, %v1868
    %v2396 = vrot.slane %v2394, 1
    %v2398 = vadd.f32 %v2254, %v2396
    %v2399 = vsub.f32 %v2245, %v2386
    %2400 = vst.msk [vmem:[%s8 + $0xa] sm:$0x4] %vm935, %v2399
    %v2402 = vrot.slane %v2386, 6
    %v2404 = vmul.f32 %v688, %v2402
    %v2406 = vrot.slane %v2398, 6
    %v2408 = vmul.f32 %v2404, %v2406
    %v2409 = vrot.slane %v2398, 1
    %v2411 = vmul.f32 %v623, %v2409
    %v2412 = vsub.f32 0.0, %v2408
    %v2414 = vrot.slane %v2411, 5
    %v2416 = vsub.f32 %v2408, %v2414
    %v2418 = vrot.slane %v2412, 7
    %v2420 = vmul.f32 %v789, %v2418
    %v2422 = vrot.slane %v2420, 3
    %v2424 = vadd.f32 %v2386, %v2422
    %v2426 = vrot.slane %v2416, 7
    %v2428 = vmul.f32 %v789, %v2426
    %v2430 = vrot.slane %v2428, 3
    %v2432 = vadd.f32 %v2398, %v2430
    %v2434 = vrot.slane %v2424, 6
    %v2436 = vmul.f32 %v732, %v2434
    %v2438 = vrot.slane %v2432, 6
    %v2440 = vmul.f32 %v2436, %v2438
    %v2441 = vrot.slane %v2432, 1
    %v2443 = vmul.f32 %v623, %v2441
    %v2444 = vsub.f32 0.0, %v2440
    %v2446 = vrot.slane %v2443, 5
    %v2448 = vsub.f32 %v2440, %v2446
    %v2450 = vrot.slane %v2444, 7
    %v2452 = vmul.f32 %v786, %v2450
    %v2454 = vrot.slane %v2452, 3
    %v2456 = vadd.f32 %v2386, %v2454
    %v2457 = vsub.f32 %v2456, %v2422
    %v2459 = vrot.slane %v2448, 7
    %v2461 = vmul.f32 %v786, %v2459
    %v2463 = vrot.slane %v2461, 3
    %v2465 = vadd.f32 %v2398, %v2463
    %v2466 = vsub.f32 %v2465, %v2430
    %v2468 = vrot.slane %v2457, 6
    %v2470 = vmul.f32 %v777, %v2468
    %v2472 = vrot.slane %v2466, 6
    %v2474 = vmul.f32 %v2470, %v2472
    %v2475 = vrot.slane %v2466, 1
    %v2477 = vmul.f32 %v623, %v2475
    %v2478 = vsub.f32 0.0, %v2474
    %v2480 = vrot.slane %v2477, 5
    %v2482 = vsub.f32 %v2474, %v2480
    %v2483 = vsub.f32 %v2412, %v2444
    %v2484 = vadd.f32 %v2483, %v2478
    %v2486 = vrot.slane %v2484, 7
    %v2488 = vmul.f32 %v786, %v2486
    %v2490 = vrot.slane %v2488, 3
    %v2492 = vadd.f32 %v2386, %v2490
    %v2493 = vsub.f32 %v2416, %v2448
    %v2494 = vadd.f32 %v2493, %v2482
    %v2496 = vrot.slane %v2494, 7
    %v2498 = vmul.f32 %v786, %v2496
    %v2500 = vrot.slane %v2498, 3
    %v2502 = vadd.f32 %v2398, %v2500
    %v2504 = vrot.slane %v2492, 5
    %v2506 = vmul.f32 %v688, %v2504
    %v2508 = vrot.slane %v2502, 5
    %v2510 = vmul.f32 %v2506, %v2508
    %v2511 = vrot.slane %v2502, 1
    %v2513 = vmul.f32 %v623, %v2511
    %v2514 = vsub.f32 0.0, %v2510
    %v2516 = vrot.slane %v2513, 4
    %v2518 = vsub.f32 %v2510, %v2516
    %v2519 = vadd.f32 %v2444, %v2478
    %v2520 = vmul.f32 %v2519, 3.0
    %v2521 = vadd.f32 %v2412, %v2520
    %v2523 = vrot.slane %v2514, 1
    %v2525 = vadd.f32 %v2521, %v2523
    %v2526 = vmul.f32 %v2525, %v1868
    %v2528 = vrot.slane %v2526, 2
    %v2530 = vadd.f32 %v2386, %v2528
    %v2531 = vadd.f32 %v2448, %v2482
    %v2532 = vmul.f32 %v2531, 3.0
    %v2533 = vadd.f32 %v2416, %v2532
    %v2535 = vrot.slane %v2518, 1
    %v2537 = vadd.f32 %v2533, %v2535
    %v2538 = vmul.f32 %v2537, %v1868
    %v2540 = vrot.slane %v2538, 2
    %v2542 = vadd.f32 %v2398, %v2540
    %v2543 = vsub.f32 %v2386, %v2530
    %2544 = vst.msk [vmem:[%s8 + $0xb] sm:$0x4] %vm935, %v2543
    %v2546 = vrot.slane %v2530, 5
    %v2548 = vmul.f32 %v688, %v2546
    %v2550 = vrot.slane %v2542, 5
    %v2552 = vmul.f32 %v2548, %v2550
    %v2553 = vrot.slane %v2542, 1
    %v2555 = vmul.f32 %v623, %v2553
    %v2556 = vsub.f32 0.0, %v2552
    %v2558 = vrot.slane %v2555, 4
    %v2560 = vsub.f32 %v2552, %v2558
    %v2562 = vrot.slane %v2556, 7
    %v2564 = vmul.f32 %v789, %v2562
    %v2566 = vrot.slane %v2564, 4
    %v2568 = vadd.f32 %v2530, %v2566
    %v2570 = vrot.slane %v2560, 7
    %v2572 = vmul.f32 %v789, %v2570
    %v2574 = vrot.slane %v2572, 4
    %v2576 = vadd.f32 %v2542, %v2574
    %v2578 = vrot.slane %v2568, 5
    %v2580 = vmul.f32 %v732, %v2578
    %v2582 = vrot.slane %v2576, 5
    %v2584 = vmul.f32 %v2580, %v2582
    %v2585 = vrot.slane %v2576, 1
    %v2587 = vmul.f32 %v623, %v2585
    %v2588 = vsub.f32 0.0, %v2584
    %v2590 = vrot.slane %v2587, 4
    %v2592 = vsub.f32 %v2584, %v2590
    %v2594 = vrot.slane %v2588, 7
    %v2596 = vmul.f32 %v786, %v2594
    %v2598 = vrot.slane %v2596, 4
    %v2600 = vadd.f32 %v2530, %v2598
    %v2601 = vsub.f32 %v2600, %v2566
    %v2603 = vrot.slane %v2592, 7
    %v2605 = vmul.f32 %v786, %v2603
    %v2607 = vrot.slane %v2605, 4
    %v2609 = vadd.f32 %v2542, %v2607
    %v2610 = vsub.f32 %v2609, %v2574
    %v2612 = vrot.slane %v2601, 5
    %v2614 = vmul.f32 %v777, %v2612
    %v2616 = vrot.slane %v2610, 5
    %v2618 = vmul.f32 %v2614, %v2616
    %v2619 = vrot.slane %v2610, 1
    %v2621 = vmul.f32 %v623, %v2619
    %v2622 = vsub.f32 0.0, %v2618
    %v2624 = vrot.slane %v2621, 4
    %v2626 = vsub.f32 %v2618, %v2624
    %v2627 = vsub.f32 %v2556, %v2588
    %v2628 = vadd.f32 %v2627, %v2622
    %v2630 = vrot.slane %v2628, 7
    %v2632 = vmul.f32 %v786, %v2630
    %v2634 = vrot.slane %v2632, 4
    %v2636 = vadd.f32 %v2530, %v2634
    %v2637 = vsub.f32 %v2560, %v2592
    %v2638 = vadd.f32 %v2637, %v2626
    %v2640 = vrot.slane %v2638, 7
    %v2642 = vmul.f32 %v786, %v2640
    %v2644 = vrot.slane %v2642, 4
    %v2646 = vadd.f32 %v2542, %v2644
    %v2648 = vrot.slane %v2636, 4
    %v2650 = vmul.f32 %v688, %v2648
    %v2652 = vrot.slane %v2646, 4
    %v2654 = vmul.f32 %v2650, %v2652
    %v2655 = vrot.slane %v2646, 1
    %v2657 = vmul.f32 %v623, %v2655
    %v2658 = vsub.f32 0.0, %v2654
    %v2660 = vrot.slane %v2657, 3
    %v2662 = vsub.f32 %v2654, %v2660
    %v2663 = vadd.f32 %v2588, %v2622
    %v2664 = vmul.f32 %v2663, 3.0
    %v2665 = vadd.f32 %v2556, %v2664
    %v2667 = vrot.slane %v2658, 1
    %v2669 = vadd.f32 %v2665, %v2667
    %v2670 = vmul.f32 %v2669, %v1868
    %v2672 = vrot.slane %v2670, 3
    %v2674 = vadd.f32 %v2530, %v2672
    %v2675 = vadd.f32 %v2592, %v2626
    %v2676 = vmul.f32 %v2675, 3.0
    %v2677 = vadd.f32 %v2560, %v2676
    %v2679 = vrot.slane %v2662, 1
    %v2681 = vadd.f32 %v2677, %v2679
    %v2682 = vmul.f32 %v2681, %v1868
    %v2684 = vrot.slane %v2682, 3
    %v2686 = vadd.f32 %v2542, %v2684
    %v2687 = vsub.f32 %v2530, %v2674
    %2688 = vst.msk [vmem:[%s8 + $0xc] sm:$0x4] %vm935, %v2687
    %v2690 = vrot.slane %v2674, 4
    %v2692 = vmul.f32 %v688, %v2690
    %v2694 = vrot.slane %v2686, 4
    %v2696 = vmul.f32 %v2692, %v2694
    %v2697 = vrot.slane %v2686, 1
    %v2699 = vmul.f32 %v623, %v2697
    %v2700 = vsub.f32 0.0, %v2696
    %v2702 = vrot.slane %v2699, 3
    %v2704 = vsub.f32 %v2696, %v2702
    %v2706 = vrot.slane %v2700, 7
    %v2708 = vmul.f32 %v789, %v2706
    %v2710 = vrot.slane %v2708, 5
    %v2712 = vadd.f32 %v2674, %v2710
    %v2714 = vrot.slane %v2704, 7
    %v2716 = vmul.f32 %v789, %v2714
    %v2718 = vrot.slane %v2716, 5
    %v2720 = vadd.f32 %v2686, %v2718
    %v2722 = vrot.slane %v2712, 4
    %v2724 = vmul.f32 %v732, %v2722
    %v2726 = vrot.slane %v2720, 4
    %v2728 = vmul.f32 %v2724, %v2726
    %v2729 = vrot.slane %v2720, 1
    %v2731 = vmul.f32 %v623, %v2729
    %v2732 = vsub.f32 0.0, %v2728
    %v2734 = vrot.slane %v2731, 3
    %v2736 = vsub.f32 %v2728, %v2734
    %v2738 = vrot.slane %v2732, 7
    %v2740 = vmul.f32 %v786, %v2738
    %v2742 = vrot.slane %v2740, 5
    %v2744 = vadd.f32 %v2674, %v2742
    %v2745 = vsub.f32 %v2744, %v2710
    %v2747 = vrot.slane %v2736, 7
    %v2749 = vmul.f32 %v786, %v2747
    %v2751 = vrot.slane %v2749, 5
    %v2753 = vadd.f32 %v2686, %v2751
    %v2754 = vsub.f32 %v2753, %v2718
    %v2756 = vrot.slane %v2745, 4
    %v2758 = vmul.f32 %v777, %v2756
    %v2760 = vrot.slane %v2754, 4
    %v2762 = vmul.f32 %v2758, %v2760
    %v2763 = vrot.slane %v2754, 1
    %v2765 = vmul.f32 %v623, %v2763
    %v2766 = vsub.f32 0.0, %v2762
    %v2768 = vrot.slane %v2765, 3
    %v2770 = vsub.f32 %v2762, %v2768
    %v2771 = vsub.f32 %v2700, %v2732
    %v2772 = vadd.f32 %v2771, %v2766
    %v2774 = vrot.slane %v2772, 7
    %v2776 = vmul.f32 %v786, %v2774
    %v2778 = vrot.slane %v2776, 5
    %v2780 = vadd.f32 %v2674, %v2778
    %v2781 = vsub.f32 %v2704, %v2736
    %v2782 = vadd.f32 %v2781, %v2770
    %v2784 = vrot.slane %v2782, 7
    %v2786 = vmul.f32 %v786, %v2784
    %v2788 = vrot.slane %v2786, 5
    %v2790 = vadd.f32 %v2686, %v2788
    %v2792 = vrot.slane %v2780, 3
    %v2794 = vmul.f32 %v688, %v2792
    %v2796 = vrot.slane %v2790, 3
    %v2798 = vmul.f32 %v2794, %v2796
    %v2799 = vsub.f32 0.0, %v2798
    %v2800 = vadd.f32 %v2732, %v2766
    %v2801 = vmul.f32 %v2800, 3.0
    %v2802 = vadd.f32 %v2700, %v2801
    %v2804 = vrot.slane %v2799, 1
    %v2806 = vadd.f32 %v2802, %v2804
    %v2807 = vmul.f32 %v2806, %v1868
    %v2809 = vrot.slane %v2807, 4
    %v2811 = vadd.f32 %v2674, %v2809
    %v2812 = vsub.f32 %v2674, %v2811
    %2813 = vst.msk [vmem:[%s8 + $0xd] sm:$0x4] %vm935, %v2812
    // Predicated region
    $region38: #{tpu_custom_call.1} parent=1 // pred_check
      _
    $region39: #{tpu_custom_call.1} parent=1 // pred_check_branch
      %2815 = sbr.rel (0) target = $region41
    $region40: #{tpu_custom_call.1} parent=1 // pred_region
      _
    $region41: #{tpu_custom_call.1} parent=1 // pred_fallthru
      _
    // Predicated region
    $region42: #{tpu_custom_call.1} parent=1 // pred_check
      _
    $region43: #{tpu_custom_call.1} parent=1 // pred_check_branch
      %2817 = sbr.rel (0) target = $region45
    $region44: #{tpu_custom_call.1} parent=1 // pred_region
      _
    $region45: #{tpu_custom_call.1} parent=1 // pred_fallthru
      _
    %2818 = vsyncpa [#allocation3], 1

</llo_original>
